<compile_context>
chip_gen: v7x
topology: tpu7x:2x2x1
jax: 0.10.0
libtpu: 0.0.40
codegen_flags: <defaults>
</compile_context>

<pallas_src>
import functools

import jax
import jax.numpy as jnp
from jax.experimental import pallas as pl
from jax.experimental.pallas import tpu as pltpu

IN_DIM = 1024
HID_DIM = 512
OUT_DIM = 1
MAX_TB = 1024                       # 1024x1024 f32 x-tile = 4 MiB; x2 buffers + w1 + temps ~ 20 MiB
VMEM_LIMIT_BYTES = 40 * 1024 * 1024  # > 16/32 MiB scoped defaults, < v7x 64 MiB physical


def _cdiv(a, b):
    return (a + b - 1) // b


def _round_up(n, m):
    return ((n + m - 1) // m) * m


def _choose_tb(B):
    # Keep every MXU pass full: tile height is a multiple of 128.  Split the batch
    # for the v7x megacore (2 TCs) only when each half still holds >= 256 rows.
    half = _round_up(_cdiv(B, 2), 128)
    tb = half if half >= 256 else _round_up(B, 128)
    return min(tb, MAX_TB)


def reward_model_kernel(x_ref, w1_ref, b1_ref, w2_ref, b2_ref, o_ref):
    # fc1 on the MXU: bf16 operands, f32 accumulation.  The cast is a no-op when the
    # caller already feeds bf16 activations (the preferred, bandwidth-halving path).
    x_bf = x_ref[...].astype(jnp.bfloat16)
    h = jnp.dot(x_bf, w1_ref[...], preferred_element_type=jnp.float32)
    # Bias + ReLU stay in f32 on the VPU (v5e has no bf16 VPU/EUP).
    h = jnp.maximum(h + b1_ref[...], 0.0)
    # fc2 (512 -> 1): VPU multiply + XLU lane reduction; a 1-column MXU matmul would
    # waste >99% of the MXU output columns while the MXU is busy with fc1 anyway.
    logit = jnp.sum(h * w2_ref[...], axis=-1) + b2_ref[0]          # [tb]
    # Exact sigmoid: exp lands on the otherwise-idle EUP; exact divide is essentially
    # free at <= tb elements.  Store lane-dense into the [1, tb] output row.
    o_ref[0, :] = (1.0 / (1.0 + jnp.exp(-logit))).astype(o_ref.dtype)


def prepare_params(w1, b1, w2, b2):
    """One-time parameter packing (hoisted out of the per-call forward path).

    w1: [1024, 512] (transposed vs. torch's [out, in]); b1: [512]-like;
    w2: [512, 1]-like; b2: scalar-like.
    """
    w1_bf = jnp.asarray(w1, jnp.bfloat16)                        # resident MXU operand
    b1_row = jnp.asarray(b1, jnp.float32).reshape(1, HID_DIM)
    w2_row = jnp.asarray(w2, jnp.float32).reshape(1, HID_DIM)    # column -> lane-dense row
    b2_s = jnp.asarray(b2, jnp.float32).reshape(1)               # scalar bias -> SMEM
    return w1_bf, b1_row, w2_row, b2_s


@functools.partial(jax.jit, static_argnames=("tb",))
def reward_model_forward(x, params, *, tb=None):
    """x: [B, 1024] (bf16 preferred, f32 accepted) -> [B, 1] float32 probabilities."""
    w1_bf, b1_row, w2_row, b2_s = params
    B = x.shape[0]
    if tb is None:
        tb = _choose_tb(B)
    num_blocks = _cdiv(B, tb)
    padded_b = num_blocks * tb

    cost = pl.CostEstimate(
        flops=2 * B * IN_DIM * HID_DIM + 2 * B * HID_DIM,
        transcendentals=B,
        bytes_accessed=(x.size * x.dtype.itemsize
                        + w1_bf.size * w1_bf.dtype.itemsize
                        + b1_row.size * 4 + w2_row.size * 4 + 4
                        + padded_b * 4),
    )

    out_row = pl.pallas_call(
        reward_model_kernel,
        out_shape=jax.ShapeDtypeStruct((1, padded_b), jnp.float32),
        grid_spec=pltpu.PrefetchScalarGridSpec(
            num_scalar_prefetch=0,
            grid=(num_blocks,),                                   # no host-side padding copy
            in_specs=[
                pl.BlockSpec((tb, IN_DIM), lambda i: (i, 0)),         # x tile
                pl.BlockSpec((IN_DIM, HID_DIM), lambda i: (0, 0)),    # w1 (resident, bf16)
                pl.BlockSpec((1, HID_DIM), lambda i: (0, 0)),         # b1 row
                pl.BlockSpec((1, HID_DIM), lambda i: (0, 0)),         # w2 row
                pl.BlockSpec(memory_space=pltpu.MemorySpace.SMEM),    # b2 scalar
            ],
            out_specs=pl.BlockSpec((1, tb), lambda i: (0, i)),        # lane-dense output row
        ),
        compiler_params=pltpu.CompilerParams(
            dimension_semantics=("parallel",),
            vmem_limit_bytes=VMEM_LIMIT_BYTES,
        ),
        cost_estimate=cost,
    )(x, w1_bf, b1_row, w2_row, b2_s)

    # Layout plumbing only: drop boundary padding and present the PyTorch (B, 1) shape.
    return out_row.reshape(padded_b, 1)[:B]


def init_params(key):
    """Deterministic init mimicking torch.nn.Linear default (U[-1/sqrt(fan_in), 1/sqrt(fan_in)])."""
    k1, k2, k3, k4 = jax.random.split(key, 4)
    s1 = 1.0 / jnp.sqrt(IN_DIM)
    s2 = 1.0 / jnp.sqrt(HID_DIM)
    w1 = jax.random.uniform(k1, (IN_DIM, HID_DIM), jnp.float32, -s1, s1)
    b1 = jax.random.uniform(k2, (1, HID_DIM), jnp.float32, -s1, s1)
    w2 = jax.random.uniform(k3, (HID_DIM, OUT_DIM), jnp.float32, -s2, s2)
    b2 = jax.random.uniform(k4, (1, OUT_DIM), jnp.float32, -s2, s2)
    return w1, b1, w2, b2


if __name__ == "__main__":
    key = jax.random.PRNGKey(0)
    kx, kp, kx2 = jax.random.split(key, 3)

    w1, b1, w2, b2 = init_params(kp)
    params = prepare_params(w1, b1, w2, b2)   # one-time; no per-call weight cast

    def reference(xf):
        hp = jax.lax.Precision.HIGHEST
        h = jnp.maximum(jnp.dot(xf, w1, precision=hp) + b1, 0.0)
        return 1.0 / (1.0 + jnp.exp(-(jnp.dot(h, w2, precision=hp) + b2)))

    # Primary small case (f32 caller, single partial block).
    B = 2
    x = jax.random.normal(kx, (B, IN_DIM), jnp.float32)
    out = jax.block_until_ready(reward_model_forward(x, params))
    ref = reference(x)
    assert out.shape == (B, OUT_DIM)
    assert bool(jnp.isfinite(out).all())
    assert jnp.allclose(out, ref, atol=1e-2, rtol=0.0), (
        f"max abs diff {jnp.max(jnp.abs(out - ref))}")

    # Boundary case: B not a multiple of the tile + bf16 activations (preferred path).
    B2 = 300
    x2 = jax.random.normal(kx2, (B2, IN_DIM), jnp.float32).astype(jnp.bfloat16)
    out2 = jax.block_until_ready(reward_model_forward(x2, params))
    ref2 = reference(x2.astype(jnp.float32))
    assert out2.shape == (B2, OUT_DIM)
    assert bool(jnp.isfinite(out2).all())
    assert jnp.allclose(out2, ref2, atol=1e-2, rtol=0.0), (
        f"max abs diff {jnp.max(jnp.abs(out2 - ref2))}")

    print("KERNEL_OK")
</pallas_src>

<mosaic_0001>
module attributes {stable_mosaic.version = 11 : i64} {
  func.func @reward_model_kernel(%arg0: i32, %arg1: memref<128x1024xf32, #tpu.memory_space<vmem>>, %arg2: memref<1024x512xbf16, #tpu.memory_space<vmem>>, %arg3: memref<1x512xf32, #tpu.memory_space<vmem>>, %arg4: memref<1x512xf32, #tpu.memory_space<vmem>>, %arg5: memref<1xf32, #tpu.memory_space<smem>>, %arg6: memref<1x128xf32, #tpu.memory_space<vmem>>) attributes {dimension_semantics = [#tpu.dimension_semantics<parallel>], iteration_bounds = array<i64: 1>, scalar_prefetch = 0 : i64, scratch_operands = 0 : i64, tpu.core_type = #tpu.core_type<tc>, window_params = [{transform_indices = @transform_0, window_bounds = array<i64: 128, 1024>}, {pipeline_mode = #tpu.pipeline_mode<synchronous>, transform_indices = @transform_1, window_bounds = array<i64: 1024, 512>}, {pipeline_mode = #tpu.pipeline_mode<synchronous>, transform_indices = @transform_2, window_bounds = array<i64: 1, 512>}, {pipeline_mode = #tpu.pipeline_mode<synchronous>, transform_indices = @transform_3, window_bounds = array<i64: 1, 512>}, {transform_indices = @transform_4, window_bounds = array<i64: 1>}, {transform_indices = @transform_5, window_bounds = array<i64: 1, 128>}]} {
    %c0 = arith.constant 0 : index
    %c0_0 = arith.constant 0 : index
    %0 = vector.load %arg1[%c0, %c0_0] : memref<128x1024xf32, #tpu.memory_space<vmem>>, vector<128x1024xf32>
    %1 = arith.truncf %0 : vector<128x1024xf32> to vector<128x1024xbf16>
    %c0_1 = arith.constant 0 : index
    %c0_2 = arith.constant 0 : index
    %2 = vector.load %arg2[%c0_1, %c0_2] : memref<1024x512xbf16, #tpu.memory_space<vmem>>, vector<1024x512xbf16>
    %cst = arith.constant dense<0.000000e+00> : vector<128x512xf32>
    %3 = tpu.matmul %1, %2, %cst {dimension_numbers = #tpu.dot_dimension_numbers<[1], [0], [0], [1], [0, 0, 1, 1], [], []>} : vector<128x1024xbf16>, vector<1024x512xbf16>, vector<128x512xf32> -> vector<128x512xf32>
    %c0_3 = arith.constant 0 : index
    %c0_4 = arith.constant 0 : index
    %4 = vector.load %arg3[%c0_3, %c0_4] : memref<1x512xf32, #tpu.memory_space<vmem>>, vector<1x512xf32>
    %5 = vector.broadcast %4 : vector<1x512xf32> to vector<128x512xf32>
    %6 = arith.addf %3, %5 : vector<128x512xf32>
    %cst_5 = arith.constant 0.000000e+00 : f32
    %7 = vector.broadcast %cst_5 : f32 to vector<128x512xf32>
    %8 = arith.maximumf %6, %7 : vector<128x512xf32>
    %c0_6 = arith.constant 0 : index
    %c0_7 = arith.constant 0 : index
    %9 = vector.load %arg4[%c0_6, %c0_7] : memref<1x512xf32, #tpu.memory_space<vmem>>, vector<1x512xf32>
    %10 = vector.broadcast %9 : vector<1x512xf32> to vector<128x512xf32>
    %11 = arith.mulf %8, %10 : vector<128x512xf32>
    %cst_8 = arith.constant dense<0.000000e+00> : vector<128xf32>
    %12 = vector.multi_reduction <add>, %11, %cst_8 [1] : vector<128x512xf32> to vector<128xf32>
    %c0_9 = arith.constant 0 : index
    %13 = memref.load %arg5[%c0_9] : memref<1xf32, #tpu.memory_space<smem>>
    %14 = vector.broadcast %13 : f32 to vector<128xf32>
    %15 = arith.addf %12, %14 : vector<128xf32>
    %cst_10 = arith.constant 0.000000e+00 : f32
    %16 = vector.broadcast %cst_10 : f32 to vector<128xf32>
    %17 = arith.subf %16, %15 : vector<128xf32>
    %18 = math.exp %17 : vector<128xf32>
    %cst_11 = arith.constant 1.000000e+00 : f32
    %19 = vector.broadcast %cst_11 : f32 to vector<128xf32>
    %20 = arith.addf %19, %18 : vector<128xf32>
    %cst_12 = arith.constant 1.000000e+00 : f32
    %21 = vector.broadcast %cst_12 : f32 to vector<128xf32>
    %22 = arith.divf %21, %20 : vector<128xf32>
    %c0_13 = arith.constant 0 : index
    %c0_14 = arith.constant 0 : index
    %23 = vector.load %arg6[%c0_13, %c0_14] : memref<1x128xf32, #tpu.memory_space<vmem>>, vector<1x128xf32>
    %24 = vector.shape_cast %23 : vector<1x128xf32> to vector<128xf32>
    %25 = vector.shape_cast %22 : vector<128xf32> to vector<1x128xf32>
    tpu.vector_store %arg6[%c0_13, %c0_14], %25 {strides = array<i32>} : memref<1x128xf32, #tpu.memory_space<vmem>>, vector<1x128xf32>,
    return
  }
  func.func @transform_0(%arg0: i32) -> (i32, i32) {
    %c0_i32 = arith.constant 0 : i32
    %c0_i32_0 = arith.constant 0 : i32
    return %arg0, %c0_i32 : i32, i32
  }
  func.func @transform_1(%arg0: i32) -> (i32, i32) {
    %c0_i32 = arith.constant 0 : i32
    %c0_i32_0 = arith.constant 0 : i32
    %c0_i32_1 = arith.constant 0 : i32
    return %c0_i32, %c0_i32_0 : i32, i32
  }
  func.func @transform_2(%arg0: i32) -> (i32, i32) {
    %c0_i32 = arith.constant 0 : i32
    %c0_i32_0 = arith.constant 0 : i32
    %c0_i32_1 = arith.constant 0 : i32
    return %c0_i32, %c0_i32_0 : i32, i32
  }
  func.func @transform_3(%arg0: i32) -> (i32, i32) {
    %c0_i32 = arith.constant 0 : i32
    %c0_i32_0 = arith.constant 0 : i32
    %c0_i32_1 = arith.constant 0 : i32
    return %c0_i32, %c0_i32_0 : i32, i32
  }
  func.func @transform_4(%arg0: i32) -> i32 {
    %c0_i32 = arith.constant 0 : i32
    %c0_i32_0 = arith.constant 0 : i32
    return %c0_i32 : i32
  }
  func.func @transform_5(%arg0: i32) -> (i32, i32) {
    %c0_i32 = arith.constant 0 : i32
    %c0_i32_0 = arith.constant 0 : i32
    return %c0_i32, %arg0 : i32, i32
  }
}

</mosaic_0001>

<llo_original>
// kernel: reward_model_forward.1
$region0: #{reward_model_forward.1}
  #allocation0 [shape = 'u32[]', space=smem, size = 0x4, offset = 0x4, fixed_abs, tag = 'smem constant byte address 0x4 - core index']
  #allocation1 [shape = 'u32[144,128]{1,0:T(1,128)}', space=vmem, size = 0x12000, scoped, tag = 'internal scratch']
  #allocation2 [shape = 'f32[1]{0:T(128)S(6)}', space=smem, size = 0x200, scoped, tag = 'scoped memory for reward_model_forward.1']
  %s0 = inlined_call_operand.hbm [shape: f32[2,1024], index: 0, kind: input, shape index: {}]
  %s1 = inlined_call_operand.hbm [shape: bf16[1024,512], index: 1, kind: input, shape index: {}]
  %s2 = inlined_call_operand.vmem [shape: f32[1,512], index: 2, kind: input, shape index: {}]
  %s3 = inlined_call_operand.vmem [shape: f32[1,512], index: 3, kind: input, shape index: {}]
  %s4 = inlined_call_operand.<no memory space> [shape: f32[1], index: 4, kind: input, shape index: {}]
  %s5 = inlined_call_operand.vmem [shape: f32[1,128], index: 5, kind: output, shape index: {}]
  %s6 = sld [smem:[#allocation0]]
  $region38: #{reward_model_forward.1} parent=0
    _
  %s8 = ssub.s32 1, %s6
  %s9 = scalar_select 0, %s8, %s6
  %10 = sst [smem:[#allocation2]] %s4
  $region1: #{reward_model_forward.1} parent=0
    #allocation3 [shape = 'u8[524288]{0}', space=vmem, size = 0x80000, scoped, tag = 'input window, operand 0, single buffered']
    #allocation4 [shape = 's32[1]{0}', space=sflag, size = 0x4, scoped, tag = 'scoped memory for reward_model_forward.1']
    #allocation5 [shape = 'u8[1048576]{0}', space=vmem, size = 0x100000, scoped, tag = 'input window, operand 1, single buffered']
    #allocation6 [shape = 's32[1]{0}', space=sflag, size = 0x4, scoped, tag = 'scoped memory for reward_model_forward.1']
    %11 = vsyncpa [#allocation4], 0
    %12 = vsyncpa [#allocation6], 0
    // Predicated region
    $region2: #{reward_model_forward.1} parent=1 // pred_check
      _
    $region3: #{reward_model_forward.1} parent=1 // pred_check_branch
      %14 = sbr.rel (0) target = $region5
    $region4: #{reward_model_forward.1} parent=1 // pred_region
      %s16 = ssub.s32 16384, 256
      %17 = vsyncadd [#allocation4], %s16
      %s18 = sshll.u32 [#allocation3], 4
      %s19 = int_to_ptr.vmem [resolvable:$true] %s18
      %24 = dma.hbm_to_vmem [thread:$0]  %s0, 256, %s19, [#allocation4], 256, 256, 16
    $region5: #{reward_model_forward.1} parent=1 // pred_fallthru
      _
    // Predicated region
    $region6: #{reward_model_forward.1} parent=1 // pred_check
      _
    $region7: #{reward_model_forward.1} parent=1 // pred_check_branch
      %26 = sbr.rel (0) target = $region9
    $region8: #{reward_model_forward.1} parent=1 // pred_region
      %s28 = ssub.s32 32768, 32768
      %29 = vsyncadd [#allocation6], %s28
      %s30 = sshll.u32 [#allocation5], 4
      %s31 = int_to_ptr.vmem [resolvable:$true] %s30
      %36 = dma.hbm_to_vmem [thread:$0]  %s1, 32768, %s31, [#allocation6], 256, 256, 16
    $region9: #{reward_model_forward.1} parent=1 // pred_fallthru
      _
    // Predicated region
    $region10: #{reward_model_forward.1} parent=1 // pred_check
      _
    $region11: #{reward_model_forward.1} parent=1 // pred_check_branch
      %38 = sbr.rel (0) target = $region13
    $region12: #{reward_model_forward.1} parent=1 // pred_region
      _
    $region13: #{reward_model_forward.1} parent=1 // pred_fallthru
      _
    // Predicated region
    $region14: #{reward_model_forward.1} parent=1 // pred_check
      _
    $region15: #{reward_model_forward.1} parent=1 // pred_check_branch
      %40 = sbr.rel (0) target = $region17
    $region16: #{reward_model_forward.1} parent=1 // pred_region
      _
    $region17: #{reward_model_forward.1} parent=1 // pred_fallthru
      _
    // Predicated region
    $region18: #{reward_model_forward.1} parent=1 // pred_check
      _
    $region19: #{reward_model_forward.1} parent=1 // pred_check_branch
      %42 = sbr.rel (0) target = $region21
    $region20: #{reward_model_forward.1} parent=1 // pred_region
      _
    $region21: #{reward_model_forward.1} parent=1 // pred_fallthru
      _
    // Predicated region
    $region22: #{reward_model_forward.1} parent=1 // pred_check
      _
    $region23: #{reward_model_forward.1} parent=1 // pred_check_branch
      %44 = sbr.rel (0) target = $region25
    $region24: #{reward_model_forward.1} parent=1 // pred_region
      %45 = dma.done [#allocation4], 16384
    $region25: #{reward_model_forward.1} parent=1 // pred_fallthru
      _
    // Predicated region
    $region26: #{reward_model_forward.1} parent=1 // pred_check
      _
    $region27: #{reward_model_forward.1} parent=1 // pred_check_branch
      %47 = sbr.rel (0) target = $region29
    $region28: #{reward_model_forward.1} parent=1 // pred_region
      %48 = dma.done [#allocation6], 32768
    $region29: #{reward_model_forward.1} parent=1 // pred_fallthru
      _
    %v49 = vld [vmem:[#allocation3] sm:$0xff]
    %v50 = vld [vmem:[#allocation3 + $0x8] sm:$0xff]
    %v51 = vld [vmem:[#allocation3 + $0x10] sm:$0xff]
    %v52 = vld [vmem:[#allocation3 + $0x18] sm:$0xff]
    %v53 = vld [vmem:[#allocation3 + $0x20] sm:$0xff]
    %v54 = vld [vmem:[#allocation3 + $0x28] sm:$0xff]
    %v55 = vld [vmem:[#allocation3 + $0x30] sm:$0xff]
    %v56 = vld [vmem:[#allocation3 + $0x38] sm:$0xff]
    %v57 = vld [vmem:[#allocation3 + $0x40] sm:$0xff]
    %v58 = vld [vmem:[#allocation3 + $0x48] sm:$0xff]
    %v59 = vld [vmem:[#allocation3 + $0x50] sm:$0xff]
    %v60 = vld [vmem:[#allocation3 + $0x58] sm:$0xff]
    %v61 = vld [vmem:[#allocation3 + $0x60] sm:$0xff]
    %v62 = vld [vmem:[#allocation3 + $0x68] sm:$0xff]
    %v63 = vld [vmem:[#allocation3 + $0x70] sm:$0xff]
    %v64 = vld [vmem:[#allocation3 + $0x78] sm:$0xff]
    %v65 = vld [vmem:[#allocation3 + $0x80] sm:$0xff]
    %v66 = vld [vmem:[#allocation3 + $0x88] sm:$0xff]
    %v67 = vld [vmem:[#allocation3 + $0x90] sm:$0xff]
    %v68 = vld [vmem:[#allocation3 + $0x98] sm:$0xff]
    %v69 = vld [vmem:[#allocation3 + $0xa0] sm:$0xff]
    %v70 = vld [vmem:[#allocation3 + $0xa8] sm:$0xff]
    %v71 = vld [vmem:[#allocation3 + $0xb0] sm:$0xff]
    %v72 = vld [vmem:[#allocation3 + $0xb8] sm:$0xff]
    %v73 = vld [vmem:[#allocation3 + $0xc0] sm:$0xff]
    %v74 = vld [vmem:[#allocation3 + $0xc8] sm:$0xff]
    %v75 = vld [vmem:[#allocation3 + $0xd0] sm:$0xff]
    %v76 = vld [vmem:[#allocation3 + $0xd8] sm:$0xff]
    %v77 = vld [vmem:[#allocation3 + $0xe0] sm:$0xff]
    %v78 = vld [vmem:[#allocation3 + $0xe8] sm:$0xff]
    %v79 = vld [vmem:[#allocation3 + $0xf0] sm:$0xff]
    %v80 = vld [vmem:[#allocation3 + $0xf8] sm:$0xff]
    %v81 = vld [vmem:[#allocation3 + $0x100] sm:$0xff]
    %v82 = vld [vmem:[#allocation3 + $0x108] sm:$0xff]
    %v83 = vld [vmem:[#allocation3 + $0x110] sm:$0xff]
    %v84 = vld [vmem:[#allocation3 + $0x118] sm:$0xff]
    %v85 = vld [vmem:[#allocation3 + $0x120] sm:$0xff]
    %v86 = vld [vmem:[#allocation3 + $0x128] sm:$0xff]
    %v87 = vld [vmem:[#allocation3 + $0x130] sm:$0xff]
    %v88 = vld [vmem:[#allocation3 + $0x138] sm:$0xff]
    %v89 = vld [vmem:[#allocation3 + $0x140] sm:$0xff]
    %v90 = vld [vmem:[#allocation3 + $0x148] sm:$0xff]
    %v91 = vld [vmem:[#allocation3 + $0x150] sm:$0xff]
    %v92 = vld [vmem:[#allocation3 + $0x158] sm:$0xff]
    %v93 = vld [vmem:[#allocation3 + $0x160] sm:$0xff]
    %v94 = vld [vmem:[#allocation3 + $0x168] sm:$0xff]
    %v95 = vld [vmem:[#allocation3 + $0x170] sm:$0xff]
    %v96 = vld [vmem:[#allocation3 + $0x178] sm:$0xff]
    %v97 = vld [vmem:[#allocation3 + $0x180] sm:$0xff]
    %v98 = vld [vmem:[#allocation3 + $0x188] sm:$0xff]
    %v99 = vld [vmem:[#allocation3 + $0x190] sm:$0xff]
    %v100 = vld [vmem:[#allocation3 + $0x198] sm:$0xff]
    %v101 = vld [vmem:[#allocation3 + $0x1a0] sm:$0xff]
    %v102 = vld [vmem:[#allocation3 + $0x1a8] sm:$0xff]
    %v103 = vld [vmem:[#allocation3 + $0x1b0] sm:$0xff]
    %v104 = vld [vmem:[#allocation3 + $0x1b8] sm:$0xff]
    %v105 = vld [vmem:[#allocation3 + $0x1c0] sm:$0xff]
    %v106 = vld [vmem:[#allocation3 + $0x1c8] sm:$0xff]
    %v107 = vld [vmem:[#allocation3 + $0x1d0] sm:$0xff]
    %v108 = vld [vmem:[#allocation3 + $0x1d8] sm:$0xff]
    %v109 = vld [vmem:[#allocation3 + $0x1e0] sm:$0xff]
    %v110 = vld [vmem:[#allocation3 + $0x1e8] sm:$0xff]
    %v111 = vld [vmem:[#allocation3 + $0x1f0] sm:$0xff]
    %v112 = vld [vmem:[#allocation3 + $0x1f8] sm:$0xff]
    %v113 = vld [vmem:[#allocation3 + $0x200] sm:$0xff]
    %v114 = vld [vmem:[#allocation3 + $0x208] sm:$0xff]
    %v115 = vld [vmem:[#allocation3 + $0x210] sm:$0xff]
    %v116 = vld [vmem:[#allocation3 + $0x218] sm:$0xff]
    %v117 = vld [vmem:[#allocation3 + $0x220] sm:$0xff]
    %v118 = vld [vmem:[#allocation3 + $0x228] sm:$0xff]
    %v119 = vld [vmem:[#allocation3 + $0x230] sm:$0xff]
    %v120 = vld [vmem:[#allocation3 + $0x238] sm:$0xff]
    %v121 = vld [vmem:[#allocation3 + $0x240] sm:$0xff]
    %v122 = vld [vmem:[#allocation3 + $0x248] sm:$0xff]
    %v123 = vld [vmem:[#allocation3 + $0x250] sm:$0xff]
    %v124 = vld [vmem:[#allocation3 + $0x258] sm:$0xff]
    %v125 = vld [vmem:[#allocation3 + $0x260] sm:$0xff]
    %v126 = vld [vmem:[#allocation3 + $0x268] sm:$0xff]
    %v127 = vld [vmem:[#allocation3 + $0x270] sm:$0xff]
    %v128 = vld [vmem:[#allocation3 + $0x278] sm:$0xff]
    %v129 = vld [vmem:[#allocation3 + $0x280] sm:$0xff]
    %v130 = vld [vmem:[#allocation3 + $0x288] sm:$0xff]
    %v131 = vld [vmem:[#allocation3 + $0x290] sm:$0xff]
    %v132 = vld [vmem:[#allocation3 + $0x298] sm:$0xff]
    %v133 = vld [vmem:[#allocation3 + $0x2a0] sm:$0xff]
    %v134 = vld [vmem:[#allocation3 + $0x2a8] sm:$0xff]
    %v135 = vld [vmem:[#allocation3 + $0x2b0] sm:$0xff]
    %v136 = vld [vmem:[#allocation3 + $0x2b8] sm:$0xff]
    %v137 = vld [vmem:[#allocation3 + $0x2c0] sm:$0xff]
    %v138 = vld [vmem:[#allocation3 + $0x2c8] sm:$0xff]
    %v139 = vld [vmem:[#allocation3 + $0x2d0] sm:$0xff]
    %v140 = vld [vmem:[#allocation3 + $0x2d8] sm:$0xff]
    %v141 = vld [vmem:[#allocation3 + $0x2e0] sm:$0xff]
    %v142 = vld [vmem:[#allocation3 + $0x2e8] sm:$0xff]
    %v143 = vld [vmem:[#allocation3 + $0x2f0] sm:$0xff]
    %v144 = vld [vmem:[#allocation3 + $0x2f8] sm:$0xff]
    %v145 = vld [vmem:[#allocation3 + $0x300] sm:$0xff]
    %v146 = vld [vmem:[#allocation3 + $0x308] sm:$0xff]
    %v147 = vld [vmem:[#allocation3 + $0x310] sm:$0xff]
    %v148 = vld [vmem:[#allocation3 + $0x318] sm:$0xff]
    %v149 = vld [vmem:[#allocation3 + $0x320] sm:$0xff]
    %v150 = vld [vmem:[#allocation3 + $0x328] sm:$0xff]
    %v151 = vld [vmem:[#allocation3 + $0x330] sm:$0xff]
    %v152 = vld [vmem:[#allocation3 + $0x338] sm:$0xff]
    %v153 = vld [vmem:[#allocation3 + $0x340] sm:$0xff]
    %v154 = vld [vmem:[#allocation3 + $0x348] sm:$0xff]
    %v155 = vld [vmem:[#allocation3 + $0x350] sm:$0xff]
    %v156 = vld [vmem:[#allocation3 + $0x358] sm:$0xff]
    %v157 = vld [vmem:[#allocation3 + $0x360] sm:$0xff]
    %v158 = vld [vmem:[#allocation3 + $0x368] sm:$0xff]
    %v159 = vld [vmem:[#allocation3 + $0x370] sm:$0xff]
    %v160 = vld [vmem:[#allocation3 + $0x378] sm:$0xff]
    %v161 = vld [vmem:[#allocation3 + $0x380] sm:$0xff]
    %v162 = vld [vmem:[#allocation3 + $0x388] sm:$0xff]
    %v163 = vld [vmem:[#allocation3 + $0x390] sm:$0xff]
    %v164 = vld [vmem:[#allocation3 + $0x398] sm:$0xff]
    %v165 = vld [vmem:[#allocation3 + $0x3a0] sm:$0xff]
    %v166 = vld [vmem:[#allocation3 + $0x3a8] sm:$0xff]
    %v167 = vld [vmem:[#allocation3 + $0x3b0] sm:$0xff]
    %v168 = vld [vmem:[#allocation3 + $0x3b8] sm:$0xff]
    %v169 = vld [vmem:[#allocation3 + $0x3c0] sm:$0xff]
    %v170 = vld [vmem:[#allocation3 + $0x3c8] sm:$0xff]
    %v171 = vld [vmem:[#allocation3 + $0x3d0] sm:$0xff]
    %v172 = vld [vmem:[#allocation3 + $0x3d8] sm:$0xff]
    %v173 = vld [vmem:[#allocation3 + $0x3e0] sm:$0xff]
    %v174 = vld [vmem:[#allocation3 + $0x3e8] sm:$0xff]
    %v175 = vld [vmem:[#allocation3 + $0x3f0] sm:$0xff]
    %v176 = vld [vmem:[#allocation3 + $0x3f8] sm:$0xff]
    %v305 = vcombine.low %v49, %v51
    %v306 = vcombine.high %v49, %v51
    %v307 = vcombine.low %v53, %v55
    %v308 = vcombine.high %v53, %v55
    %v310 = vunpack.c.l.s4 1983009808
    %v311 = vunpack.c.0.s8 %v310
    %v312 = vlaneseq
    %v313 = vshrl.u32 %v312, 7
    %v314 = vsub.s32 %v311, %v313
    %v315 = vrot.slane %v305, %v314
    %v317 = vunpack.c.l.s4 1983009808
    %v318 = vunpack.c.0.s8 %v317
    %v319 = vlaneseq
    %v320 = vshrl.u32 %v319, 7
    %v321 = vsub.s32 %v318, %v320
    %v322 = vrot.slane %v306, %v321
    %v324 = vunpack.c.l.s4 1983009808
    %v325 = vunpack.c.0.s8 %v324
    %v326 = vlaneseq
    %v327 = vshrl.u32 %v326, 7
    %v328 = vsub.s32 %v325, %v327
    %v329 = vrot.slane %v307, %v328
    %v331 = vunpack.c.l.s4 1983009808
    %v332 = vunpack.c.0.s8 %v331
    %v333 = vlaneseq
    %v334 = vshrl.u32 %v333, 7
    %v335 = vsub.s32 %v332, %v334
    %v336 = vrot.slane %v308, %v335
    %v337 = vcombine.low %v315, %v329
    %v338 = vcombine.high %v315, %v329
    %v339 = vcombine.low %v322, %v336
    %v340 = vcombine.high %v322, %v336
    %v341 = vcombine.low %v50, %v52
    %v342 = vcombine.high %v50, %v52
    %v343 = vcombine.low %v54, %v56
    %v344 = vcombine.high %v54, %v56
    %v346 = vunpack.c.l.s4 1983009808
    %v347 = vunpack.c.0.s8 %v346
    %v348 = vlaneseq
    %v349 = vshrl.u32 %v348, 7
    %v350 = vsub.s32 %v347, %v349
    %v351 = vrot.slane %v341, %v350
    %v353 = vunpack.c.l.s4 1983009808
    %v354 = vunpack.c.0.s8 %v353
    %v355 = vlaneseq
    %v356 = vshrl.u32 %v355, 7
    %v357 = vsub.s32 %v354, %v356
    %v358 = vrot.slane %v342, %v357
    %v360 = vunpack.c.l.s4 1983009808
    %v361 = vunpack.c.0.s8 %v360
    %v362 = vlaneseq
    %v363 = vshrl.u32 %v362, 7
    %v364 = vsub.s32 %v361, %v363
    %v365 = vrot.slane %v343, %v364
    %v367 = vunpack.c.l.s4 1983009808
    %v368 = vunpack.c.0.s8 %v367
    %v369 = vlaneseq
    %v370 = vshrl.u32 %v369, 7
    %v371 = vsub.s32 %v368, %v370
    %v372 = vrot.slane %v344, %v371
    %v373 = vcombine.low %v351, %v365
    %v374 = vcombine.high %v351, %v365
    %v375 = vcombine.low %v358, %v372
    %v376 = vcombine.high %v358, %v372
    %v377 = vcombine.low %v57, %v59
    %v378 = vcombine.high %v57, %v59
    %v379 = vcombine.low %v61, %v63
    %v380 = vcombine.high %v61, %v63
    %v382 = vunpack.c.l.s4 1983009808
    %v383 = vunpack.c.0.s8 %v382
    %v384 = vlaneseq
    %v385 = vshrl.u32 %v384, 7
    %v386 = vsub.s32 %v383, %v385
    %v387 = vrot.slane %v377, %v386
    %v389 = vunpack.c.l.s4 1983009808
    %v390 = vunpack.c.0.s8 %v389
    %v391 = vlaneseq
    %v392 = vshrl.u32 %v391, 7
    %v393 = vsub.s32 %v390, %v392
    %v394 = vrot.slane %v378, %v393
    %v396 = vunpack.c.l.s4 1983009808
    %v397 = vunpack.c.0.s8 %v396
    %v398 = vlaneseq
    %v399 = vshrl.u32 %v398, 7
    %v400 = vsub.s32 %v397, %v399
    %v401 = vrot.slane %v379, %v400
    %v403 = vunpack.c.l.s4 1983009808
    %v404 = vunpack.c.0.s8 %v403
    %v405 = vlaneseq
    %v406 = vshrl.u32 %v405, 7
    %v407 = vsub.s32 %v404, %v406
    %v408 = vrot.slane %v380, %v407
    %v409 = vcombine.low %v387, %v401
    %v410 = vcombine.high %v387, %v401
    %v411 = vcombine.low %v394, %v408
    %v412 = vcombine.high %v394, %v408
    %v413 = vcombine.low %v58, %v60
    %v414 = vcombine.high %v58, %v60
    %v415 = vcombine.low %v62, %v64
    %v416 = vcombine.high %v62, %v64
    %v418 = vunpack.c.l.s4 1983009808
    %v419 = vunpack.c.0.s8 %v418
    %v420 = vlaneseq
    %v421 = vshrl.u32 %v420, 7
    %v422 = vsub.s32 %v419, %v421
    %v423 = vrot.slane %v413, %v422
    %v425 = vunpack.c.l.s4 1983009808
    %v426 = vunpack.c.0.s8 %v425
    %v427 = vlaneseq
    %v428 = vshrl.u32 %v427, 7
    %v429 = vsub.s32 %v426, %v428
    %v430 = vrot.slane %v414, %v429
    %v432 = vunpack.c.l.s4 1983009808
    %v433 = vunpack.c.0.s8 %v432
    %v434 = vlaneseq
    %v435 = vshrl.u32 %v434, 7
    %v436 = vsub.s32 %v433, %v435
    %v437 = vrot.slane %v415, %v436
    %v439 = vunpack.c.l.s4 1983009808
    %v440 = vunpack.c.0.s8 %v439
    %v441 = vlaneseq
    %v442 = vshrl.u32 %v441, 7
    %v443 = vsub.s32 %v440, %v442
    %v444 = vrot.slane %v416, %v443
    %v445 = vcombine.low %v423, %v437
    %v446 = vcombine.high %v423, %v437
    %v447 = vcombine.low %v430, %v444
    %v448 = vcombine.high %v430, %v444
    %v449 = vcombine.low %v65, %v67
    %v450 = vcombine.high %v65, %v67
    %v451 = vcombine.low %v69, %v71
    %v452 = vcombine.high %v69, %v71
    %v454 = vunpack.c.l.s4 1983009808
    %v455 = vunpack.c.0.s8 %v454
    %v456 = vlaneseq
    %v457 = vshrl.u32 %v456, 7
    %v458 = vsub.s32 %v455, %v457
    %v459 = vrot.slane %v449, %v458
    %v461 = vunpack.c.l.s4 1983009808
    %v462 = vunpack.c.0.s8 %v461
    %v463 = vlaneseq
    %v464 = vshrl.u32 %v463, 7
    %v465 = vsub.s32 %v462, %v464
    %v466 = vrot.slane %v450, %v465
    %v468 = vunpack.c.l.s4 1983009808
    %v469 = vunpack.c.0.s8 %v468
    %v470 = vlaneseq
    %v471 = vshrl.u32 %v470, 7
    %v472 = vsub.s32 %v469, %v471
    %v473 = vrot.slane %v451, %v472
    %v475 = vunpack.c.l.s4 1983009808
    %v476 = vunpack.c.0.s8 %v475
    %v477 = vlaneseq
    %v478 = vshrl.u32 %v477, 7
    %v479 = vsub.s32 %v476, %v478
    %v480 = vrot.slane %v452, %v479
    %v481 = vcombine.low %v459, %v473
    %v482 = vcombine.high %v459, %v473
    %v483 = vcombine.low %v466, %v480
    %v484 = vcombine.high %v466, %v480
    %v485 = vcombine.low %v66, %v68
    %v486 = vcombine.high %v66, %v68
    %v487 = vcombine.low %v70, %v72
    %v488 = vcombine.high %v70, %v72
    %v490 = vunpack.c.l.s4 1983009808
    %v491 = vunpack.c.0.s8 %v490
    %v492 = vlaneseq
    %v493 = vshrl.u32 %v492, 7
    %v494 = vsub.s32 %v491, %v493
    %v495 = vrot.slane %v485, %v494
    %v497 = vunpack.c.l.s4 1983009808
    %v498 = vunpack.c.0.s8 %v497
    %v499 = vlaneseq
    %v500 = vshrl.u32 %v499, 7
    %v501 = vsub.s32 %v498, %v500
    %v502 = vrot.slane %v486, %v501
    %v504 = vunpack.c.l.s4 1983009808
    %v505 = vunpack.c.0.s8 %v504
    %v506 = vlaneseq
    %v507 = vshrl.u32 %v506, 7
    %v508 = vsub.s32 %v505, %v507
    %v509 = vrot.slane %v487, %v508
    %v511 = vunpack.c.l.s4 1983009808
    %v512 = vunpack.c.0.s8 %v511
    %v513 = vlaneseq
    %v514 = vshrl.u32 %v513, 7
    %v515 = vsub.s32 %v512, %v514
    %v516 = vrot.slane %v488, %v515
    %v517 = vcombine.low %v495, %v509
    %v518 = vcombine.high %v495, %v509
    %v519 = vcombine.low %v502, %v516
    %v520 = vcombine.high %v502, %v516
    %v521 = vcombine.low %v73, %v75
    %v522 = vcombine.high %v73, %v75
    %v523 = vcombine.low %v77, %v79
    %v524 = vcombine.high %v77, %v79
    %v526 = vunpack.c.l.s4 1983009808
    %v527 = vunpack.c.0.s8 %v526
    %v528 = vlaneseq
    %v529 = vshrl.u32 %v528, 7
    %v530 = vsub.s32 %v527, %v529
    %v531 = vrot.slane %v521, %v530
    %v533 = vunpack.c.l.s4 1983009808
    %v534 = vunpack.c.0.s8 %v533
    %v535 = vlaneseq
    %v536 = vshrl.u32 %v535, 7
    %v537 = vsub.s32 %v534, %v536
    %v538 = vrot.slane %v522, %v537
    %v540 = vunpack.c.l.s4 1983009808
    %v541 = vunpack.c.0.s8 %v540
    %v542 = vlaneseq
    %v543 = vshrl.u32 %v542, 7
    %v544 = vsub.s32 %v541, %v543
    %v545 = vrot.slane %v523, %v544
    %v547 = vunpack.c.l.s4 1983009808
    %v548 = vunpack.c.0.s8 %v547
    %v549 = vlaneseq
    %v550 = vshrl.u32 %v549, 7
    %v551 = vsub.s32 %v548, %v550
    %v552 = vrot.slane %v524, %v551
    %v553 = vcombine.low %v531, %v545
    %v554 = vcombine.high %v531, %v545
    %v555 = vcombine.low %v538, %v552
    %v556 = vcombine.high %v538, %v552
    %v557 = vcombine.low %v74, %v76
    %v558 = vcombine.high %v74, %v76
    %v559 = vcombine.low %v78, %v80
    %v560 = vcombine.high %v78, %v80
    %v562 = vunpack.c.l.s4 1983009808
    %v563 = vunpack.c.0.s8 %v562
    %v564 = vlaneseq
    %v565 = vshrl.u32 %v564, 7
    %v566 = vsub.s32 %v563, %v565
    %v567 = vrot.slane %v557, %v566
    %v569 = vunpack.c.l.s4 1983009808
    %v570 = vunpack.c.0.s8 %v569
    %v571 = vlaneseq
    %v572 = vshrl.u32 %v571, 7
    %v573 = vsub.s32 %v570, %v572
    %v574 = vrot.slane %v558, %v573
    %v576 = vunpack.c.l.s4 1983009808
    %v577 = vunpack.c.0.s8 %v576
    %v578 = vlaneseq
    %v579 = vshrl.u32 %v578, 7
    %v580 = vsub.s32 %v577, %v579
    %v581 = vrot.slane %v559, %v580
    %v583 = vunpack.c.l.s4 1983009808
    %v584 = vunpack.c.0.s8 %v583
    %v585 = vlaneseq
    %v586 = vshrl.u32 %v585, 7
    %v587 = vsub.s32 %v584, %v586
    %v588 = vrot.slane %v560, %v587
    %v589 = vcombine.low %v567, %v581
    %v590 = vcombine.high %v567, %v581
    %v591 = vcombine.low %v574, %v588
    %v592 = vcombine.high %v574, %v588
    %v593 = vcombine.low %v81, %v83
    %v594 = vcombine.high %v81, %v83
    %v595 = vcombine.low %v85, %v87
    %v596 = vcombine.high %v85, %v87
    %v598 = vunpack.c.l.s4 1983009808
    %v599 = vunpack.c.0.s8 %v598
    %v600 = vlaneseq
    %v601 = vshrl.u32 %v600, 7
    %v602 = vsub.s32 %v599, %v601
    %v603 = vrot.slane %v593, %v602
    %v605 = vunpack.c.l.s4 1983009808
    %v606 = vunpack.c.0.s8 %v605
    %v607 = vlaneseq
    %v608 = vshrl.u32 %v607, 7
    %v609 = vsub.s32 %v606, %v608
    %v610 = vrot.slane %v594, %v609
    %v612 = vunpack.c.l.s4 1983009808
    %v613 = vunpack.c.0.s8 %v612
    %v614 = vlaneseq
    %v615 = vshrl.u32 %v614, 7
    %v616 = vsub.s32 %v613, %v615
    %v617 = vrot.slane %v595, %v616
    %v619 = vunpack.c.l.s4 1983009808
    %v620 = vunpack.c.0.s8 %v619
    %v621 = vlaneseq
    %v622 = vshrl.u32 %v621, 7
    %v623 = vsub.s32 %v620, %v622
    %v624 = vrot.slane %v596, %v623
    %v625 = vcombine.low %v603, %v617
    %v626 = vcombine.high %v603, %v617
    %v627 = vcombine.low %v610, %v624
    %v628 = vcombine.high %v610, %v624
    %v629 = vcombine.low %v82, %v84
    %v630 = vcombine.high %v82, %v84
    %v631 = vcombine.low %v86, %v88
    %v632 = vcombine.high %v86, %v88
    %v634 = vunpack.c.l.s4 1983009808
    %v635 = vunpack.c.0.s8 %v634
    %v636 = vlaneseq
    %v637 = vshrl.u32 %v636, 7
    %v638 = vsub.s32 %v635, %v637
    %v639 = vrot.slane %v629, %v638
    %v641 = vunpack.c.l.s4 1983009808
    %v642 = vunpack.c.0.s8 %v641
    %v643 = vlaneseq
    %v644 = vshrl.u32 %v643, 7
    %v645 = vsub.s32 %v642, %v644
    %v646 = vrot.slane %v630, %v645
    %v648 = vunpack.c.l.s4 1983009808
    %v649 = vunpack.c.0.s8 %v648
    %v650 = vlaneseq
    %v651 = vshrl.u32 %v650, 7
    %v652 = vsub.s32 %v649, %v651
    %v653 = vrot.slane %v631, %v652
    %v655 = vunpack.c.l.s4 1983009808
    %v656 = vunpack.c.0.s8 %v655
    %v657 = vlaneseq
    %v658 = vshrl.u32 %v657, 7
    %v659 = vsub.s32 %v656, %v658
    %v660 = vrot.slane %v632, %v659
    %v661 = vcombine.low %v639, %v653
    %v662 = vcombine.high %v639, %v653
    %v663 = vcombine.low %v646, %v660
    %v664 = vcombine.high %v646, %v660
    %v665 = vcombine.low %v89, %v91
    %v666 = vcombine.high %v89, %v91
    %v667 = vcombine.low %v93, %v95
    %v668 = vcombine.high %v93, %v95
    %v670 = vunpack.c.l.s4 1983009808
    %v671 = vunpack.c.0.s8 %v670
    %v672 = vlaneseq
    %v673 = vshrl.u32 %v672, 7
    %v674 = vsub.s32 %v671, %v673
    %v675 = vrot.slane %v665, %v674
    %v677 = vunpack.c.l.s4 1983009808
    %v678 = vunpack.c.0.s8 %v677
    %v679 = vlaneseq
    %v680 = vshrl.u32 %v679, 7
    %v681 = vsub.s32 %v678, %v680
    %v682 = vrot.slane %v666, %v681
    %v684 = vunpack.c.l.s4 1983009808
    %v685 = vunpack.c.0.s8 %v684
    %v686 = vlaneseq
    %v687 = vshrl.u32 %v686, 7
    %v688 = vsub.s32 %v685, %v687
    %v689 = vrot.slane %v667, %v688
    %v691 = vunpack.c.l.s4 1983009808
    %v692 = vunpack.c.0.s8 %v691
    %v693 = vlaneseq
    %v694 = vshrl.u32 %v693, 7
    %v695 = vsub.s32 %v692, %v694
    %v696 = vrot.slane %v668, %v695
    %v697 = vcombine.low %v675, %v689
    %v698 = vcombine.high %v675, %v689
    %v699 = vcombine.low %v682, %v696
    %v700 = vcombine.high %v682, %v696
    %v701 = vcombine.low %v90, %v92
    %v702 = vcombine.high %v90, %v92
    %v703 = vcombine.low %v94, %v96
    %v704 = vcombine.high %v94, %v96
    %v706 = vunpack.c.l.s4 1983009808
    %v707 = vunpack.c.0.s8 %v706
    %v708 = vlaneseq
    %v709 = vshrl.u32 %v708, 7
    %v710 = vsub.s32 %v707, %v709
    %v711 = vrot.slane %v701, %v710
    %v713 = vunpack.c.l.s4 1983009808
    %v714 = vunpack.c.0.s8 %v713
    %v715 = vlaneseq
    %v716 = vshrl.u32 %v715, 7
    %v717 = vsub.s32 %v714, %v716
    %v718 = vrot.slane %v702, %v717
    %v720 = vunpack.c.l.s4 1983009808
    %v721 = vunpack.c.0.s8 %v720
    %v722 = vlaneseq
    %v723 = vshrl.u32 %v722, 7
    %v724 = vsub.s32 %v721, %v723
    %v725 = vrot.slane %v703, %v724
    %v727 = vunpack.c.l.s4 1983009808
    %v728 = vunpack.c.0.s8 %v727
    %v729 = vlaneseq
    %v730 = vshrl.u32 %v729, 7
    %v731 = vsub.s32 %v728, %v730
    %v732 = vrot.slane %v704, %v731
    %v733 = vcombine.low %v711, %v725
    %v734 = vcombine.high %v711, %v725
    %v735 = vcombine.low %v718, %v732
    %v736 = vcombine.high %v718, %v732
    %v737 = vcombine.low %v97, %v99
    %v738 = vcombine.high %v97, %v99
    %v739 = vcombine.low %v101, %v103
    %v740 = vcombine.high %v101, %v103
    %v742 = vunpack.c.l.s4 1983009808
    %v743 = vunpack.c.0.s8 %v742
    %v744 = vlaneseq
    %v745 = vshrl.u32 %v744, 7
    %v746 = vsub.s32 %v743, %v745
    %v747 = vrot.slane %v737, %v746
    %v749 = vunpack.c.l.s4 1983009808
    %v750 = vunpack.c.0.s8 %v749
    %v751 = vlaneseq
    %v752 = vshrl.u32 %v751, 7
    %v753 = vsub.s32 %v750, %v752
    %v754 = vrot.slane %v738, %v753
    %v756 = vunpack.c.l.s4 1983009808
    %v757 = vunpack.c.0.s8 %v756
    %v758 = vlaneseq
    %v759 = vshrl.u32 %v758, 7
    %v760 = vsub.s32 %v757, %v759
    %v761 = vrot.slane %v739, %v760
    %v763 = vunpack.c.l.s4 1983009808
    %v764 = vunpack.c.0.s8 %v763
    %v765 = vlaneseq
    %v766 = vshrl.u32 %v765, 7
    %v767 = vsub.s32 %v764, %v766
    %v768 = vrot.slane %v740, %v767
    %v769 = vcombine.low %v747, %v761
    %v770 = vcombine.high %v747, %v761
    %v771 = vcombine.low %v754, %v768
    %v772 = vcombine.high %v754, %v768
    %v773 = vcombine.low %v98, %v100
    %v774 = vcombine.high %v98, %v100
    %v775 = vcombine.low %v102, %v104
    %v776 = vcombine.high %v102, %v104
    %v778 = vunpack.c.l.s4 1983009808
    %v779 = vunpack.c.0.s8 %v778
    %v780 = vlaneseq
    %v781 = vshrl.u32 %v780, 7
    %v782 = vsub.s32 %v779, %v781
    %v783 = vrot.slane %v773, %v782
    %v785 = vunpack.c.l.s4 1983009808
    %v786 = vunpack.c.0.s8 %v785
    %v787 = vlaneseq
    %v788 = vshrl.u32 %v787, 7
    %v789 = vsub.s32 %v786, %v788
    %v790 = vrot.slane %v774, %v789
    %v792 = vunpack.c.l.s4 1983009808
    %v793 = vunpack.c.0.s8 %v792
    %v794 = vlaneseq
    %v795 = vshrl.u32 %v794, 7
    %v796 = vsub.s32 %v793, %v795
    %v797 = vrot.slane %v775, %v796
    %v799 = vunpack.c.l.s4 1983009808
    %v800 = vunpack.c.0.s8 %v799
    %v801 = vlaneseq
    %v802 = vshrl.u32 %v801, 7
    %v803 = vsub.s32 %v800, %v802
    %v804 = vrot.slane %v776, %v803
    %v805 = vcombine.low %v783, %v797
    %v806 = vcombine.high %v783, %v797
    %v807 = vcombine.low %v790, %v804
    %v808 = vcombine.high %v790, %v804
    %v809 = vcombine.low %v105, %v107
    %v810 = vcombine.high %v105, %v107
    %v811 = vcombine.low %v109, %v111
    %v812 = vcombine.high %v109, %v111
    %v814 = vunpack.c.l.s4 1983009808
    %v815 = vunpack.c.0.s8 %v814
    %v816 = vlaneseq
    %v817 = vshrl.u32 %v816, 7
    %v818 = vsub.s32 %v815, %v817
    %v819 = vrot.slane %v809, %v818
    %v821 = vunpack.c.l.s4 1983009808
    %v822 = vunpack.c.0.s8 %v821
    %v823 = vlaneseq
    %v824 = vshrl.u32 %v823, 7
    %v825 = vsub.s32 %v822, %v824
    %v826 = vrot.slane %v810, %v825
    %v828 = vunpack.c.l.s4 1983009808
    %v829 = vunpack.c.0.s8 %v828
    %v830 = vlaneseq
    %v831 = vshrl.u32 %v830, 7
    %v832 = vsub.s32 %v829, %v831
    %v833 = vrot.slane %v811, %v832
    %v835 = vunpack.c.l.s4 1983009808
    %v836 = vunpack.c.0.s8 %v835
    %v837 = vlaneseq
    %v838 = vshrl.u32 %v837, 7
    %v839 = vsub.s32 %v836, %v838
    %v840 = vrot.slane %v812, %v839
    %v841 = vcombine.low %v819, %v833
    %v842 = vcombine.high %v819, %v833
    %v843 = vcombine.low %v826, %v840
    %v844 = vcombine.high %v826, %v840
    %v845 = vcombine.low %v106, %v108
    %v846 = vcombine.high %v106, %v108
    %v847 = vcombine.low %v110, %v112
    %v848 = vcombine.high %v110, %v112
    %v850 = vunpack.c.l.s4 1983009808
    %v851 = vunpack.c.0.s8 %v850
    %v852 = vlaneseq
    %v853 = vshrl.u32 %v852, 7
    %v854 = vsub.s32 %v851, %v853
    %v855 = vrot.slane %v845, %v854
    %v857 = vunpack.c.l.s4 1983009808
    %v858 = vunpack.c.0.s8 %v857
    %v859 = vlaneseq
    %v860 = vshrl.u32 %v859, 7
    %v861 = vsub.s32 %v858, %v860
    %v862 = vrot.slane %v846, %v861
    %v864 = vunpack.c.l.s4 1983009808
    %v865 = vunpack.c.0.s8 %v864
    %v866 = vlaneseq
    %v867 = vshrl.u32 %v866, 7
    %v868 = vsub.s32 %v865, %v867
    %v869 = vrot.slane %v847, %v868
    %v871 = vunpack.c.l.s4 1983009808
    %v872 = vunpack.c.0.s8 %v871
    %v873 = vlaneseq
    %v874 = vshrl.u32 %v873, 7
    %v875 = vsub.s32 %v872, %v874
    %v876 = vrot.slane %v848, %v875
    %v877 = vcombine.low %v855, %v869
    %v878 = vcombine.high %v855, %v869
    %v879 = vcombine.low %v862, %v876
    %v880 = vcombine.high %v862, %v876
    %v881 = vcombine.low %v113, %v115
    %v882 = vcombine.high %v113, %v115
    %v883 = vcombine.low %v117, %v119
    %v884 = vcombine.high %v117, %v119
    %v886 = vunpack.c.l.s4 1983009808
    %v887 = vunpack.c.0.s8 %v886
    %v888 = vlaneseq
    %v889 = vshrl.u32 %v888, 7
    %v890 = vsub.s32 %v887, %v889
    %v891 = vrot.slane %v881, %v890
    %v893 = vunpack.c.l.s4 1983009808
    %v894 = vunpack.c.0.s8 %v893
    %v895 = vlaneseq
    %v896 = vshrl.u32 %v895, 7
    %v897 = vsub.s32 %v894, %v896
    %v898 = vrot.slane %v882, %v897
    %v900 = vunpack.c.l.s4 1983009808
    %v901 = vunpack.c.0.s8 %v900
    %v902 = vlaneseq
    %v903 = vshrl.u32 %v902, 7
    %v904 = vsub.s32 %v901, %v903
    %v905 = vrot.slane %v883, %v904
    %v907 = vunpack.c.l.s4 1983009808
    %v908 = vunpack.c.0.s8 %v907
    %v909 = vlaneseq
    %v910 = vshrl.u32 %v909, 7
    %v911 = vsub.s32 %v908, %v910
    %v912 = vrot.slane %v884, %v911
    %v913 = vcombine.low %v891, %v905
    %v914 = vcombine.high %v891, %v905
    %v915 = vcombine.low %v898, %v912
    %v916 = vcombine.high %v898, %v912
    %v917 = vcombine.low %v114, %v116
    %v918 = vcombine.high %v114, %v116
    %v919 = vcombine.low %v118, %v120
    %v920 = vcombine.high %v118, %v120
    %v922 = vunpack.c.l.s4 1983009808
    %v923 = vunpack.c.0.s8 %v922
    %v924 = vlaneseq
    %v925 = vshrl.u32 %v924, 7
    %v926 = vsub.s32 %v923, %v925
    %v927 = vrot.slane %v917, %v926
    %v929 = vunpack.c.l.s4 1983009808
    %v930 = vunpack.c.0.s8 %v929
    %v931 = vlaneseq
    %v932 = vshrl.u32 %v931, 7
    %v933 = vsub.s32 %v930, %v932
    %v934 = vrot.slane %v918, %v933
    %v936 = vunpack.c.l.s4 1983009808
    %v937 = vunpack.c.0.s8 %v936
    %v938 = vlaneseq
    %v939 = vshrl.u32 %v938, 7
    %v940 = vsub.s32 %v937, %v939
    %v941 = vrot.slane %v919, %v940
    %v943 = vunpack.c.l.s4 1983009808
    %v944 = vunpack.c.0.s8 %v943
    %v945 = vlaneseq
    %v946 = vshrl.u32 %v945, 7
    %v947 = vsub.s32 %v944, %v946
    %v948 = vrot.slane %v920, %v947
    %v949 = vcombine.low %v927, %v941
    %v950 = vcombine.high %v927, %v941
    %v951 = vcombine.low %v934, %v948
    %v952 = vcombine.high %v934, %v948
    %v953 = vcombine.low %v121, %v123
    %v954 = vcombine.high %v121, %v123
    %v955 = vcombine.low %v125, %v127
    %v956 = vcombine.high %v125, %v127
    %v958 = vunpack.c.l.s4 1983009808
    %v959 = vunpack.c.0.s8 %v958
    %v960 = vlaneseq
    %v961 = vshrl.u32 %v960, 7
    %v962 = vsub.s32 %v959, %v961
    %v963 = vrot.slane %v953, %v962
    %v965 = vunpack.c.l.s4 1983009808
    %v966 = vunpack.c.0.s8 %v965
    %v967 = vlaneseq
    %v968 = vshrl.u32 %v967, 7
    %v969 = vsub.s32 %v966, %v968
    %v970 = vrot.slane %v954, %v969
    %v972 = vunpack.c.l.s4 1983009808
    %v973 = vunpack.c.0.s8 %v972
    %v974 = vlaneseq
    %v975 = vshrl.u32 %v974, 7
    %v976 = vsub.s32 %v973, %v975
    %v977 = vrot.slane %v955, %v976
    %v979 = vunpack.c.l.s4 1983009808
    %v980 = vunpack.c.0.s8 %v979
    %v981 = vlaneseq
    %v982 = vshrl.u32 %v981, 7
    %v983 = vsub.s32 %v980, %v982
    %v984 = vrot.slane %v956, %v983
    %v985 = vcombine.low %v963, %v977
    %v986 = vcombine.high %v963, %v977
    %v987 = vcombine.low %v970, %v984
    %v988 = vcombine.high %v970, %v984
    %v989 = vcombine.low %v122, %v124
    %v990 = vcombine.high %v122, %v124
    %v991 = vcombine.low %v126, %v128
    %v992 = vcombine.high %v126, %v128
    %v994 = vunpack.c.l.s4 1983009808
    %v995 = vunpack.c.0.s8 %v994
    %v996 = vlaneseq
    %v997 = vshrl.u32 %v996, 7
    %v998 = vsub.s32 %v995, %v997
    %v999 = vrot.slane %v989, %v998
    %v1001 = vunpack.c.l.s4 1983009808
    %v1002 = vunpack.c.0.s8 %v1001
    %v1003 = vlaneseq
    %v1004 = vshrl.u32 %v1003, 7
    %v1005 = vsub.s32 %v1002, %v1004
    %v1006 = vrot.slane %v990, %v1005
    %v1008 = vunpack.c.l.s4 1983009808
    %v1009 = vunpack.c.0.s8 %v1008
    %v1010 = vlaneseq
    %v1011 = vshrl.u32 %v1010, 7
    %v1012 = vsub.s32 %v1009, %v1011
    %v1013 = vrot.slane %v991, %v1012
    %v1015 = vunpack.c.l.s4 1983009808
    %v1016 = vunpack.c.0.s8 %v1015
    %v1017 = vlaneseq
    %v1018 = vshrl.u32 %v1017, 7
    %v1019 = vsub.s32 %v1016, %v1018
    %v1020 = vrot.slane %v992, %v1019
    %v1021 = vcombine.low %v999, %v1013
    %v1022 = vcombine.high %v999, %v1013
    %v1023 = vcombine.low %v1006, %v1020
    %v1024 = vcombine.high %v1006, %v1020
    %v1025 = vcombine.low %v129, %v131
    %v1026 = vcombine.high %v129, %v131
    %v1027 = vcombine.low %v133, %v135
    %v1028 = vcombine.high %v133, %v135
    %v1030 = vunpack.c.l.s4 1983009808
    %v1031 = vunpack.c.0.s8 %v1030
    %v1032 = vlaneseq
    %v1033 = vshrl.u32 %v1032, 7
    %v1034 = vsub.s32 %v1031, %v1033
    %v1035 = vrot.slane %v1025, %v1034
    %v1037 = vunpack.c.l.s4 1983009808
    %v1038 = vunpack.c.0.s8 %v1037
    %v1039 = vlaneseq
    %v1040 = vshrl.u32 %v1039, 7
    %v1041 = vsub.s32 %v1038, %v1040
    %v1042 = vrot.slane %v1026, %v1041
    %v1044 = vunpack.c.l.s4 1983009808
    %v1045 = vunpack.c.0.s8 %v1044
    %v1046 = vlaneseq
    %v1047 = vshrl.u32 %v1046, 7
    %v1048 = vsub.s32 %v1045, %v1047
    %v1049 = vrot.slane %v1027, %v1048
    %v1051 = vunpack.c.l.s4 1983009808
    %v1052 = vunpack.c.0.s8 %v1051
    %v1053 = vlaneseq
    %v1054 = vshrl.u32 %v1053, 7
    %v1055 = vsub.s32 %v1052, %v1054
    %v1056 = vrot.slane %v1028, %v1055
    %v1057 = vcombine.low %v1035, %v1049
    %v1058 = vcombine.high %v1035, %v1049
    %v1059 = vcombine.low %v1042, %v1056
    %v1060 = vcombine.high %v1042, %v1056
    %v1061 = vcombine.low %v130, %v132
    %v1062 = vcombine.high %v130, %v132
    %v1063 = vcombine.low %v134, %v136
    %v1064 = vcombine.high %v134, %v136
    %v1066 = vunpack.c.l.s4 1983009808
    %v1067 = vunpack.c.0.s8 %v1066
    %v1068 = vlaneseq
    %v1069 = vshrl.u32 %v1068, 7
    %v1070 = vsub.s32 %v1067, %v1069
    %v1071 = vrot.slane %v1061, %v1070
    %v1073 = vunpack.c.l.s4 1983009808
    %v1074 = vunpack.c.0.s8 %v1073
    %v1075 = vlaneseq
    %v1076 = vshrl.u32 %v1075, 7
    %v1077 = vsub.s32 %v1074, %v1076
    %v1078 = vrot.slane %v1062, %v1077
    %v1080 = vunpack.c.l.s4 1983009808
    %v1081 = vunpack.c.0.s8 %v1080
    %v1082 = vlaneseq
    %v1083 = vshrl.u32 %v1082, 7
    %v1084 = vsub.s32 %v1081, %v1083
    %v1085 = vrot.slane %v1063, %v1084
    %v1087 = vunpack.c.l.s4 1983009808
    %v1088 = vunpack.c.0.s8 %v1087
    %v1089 = vlaneseq
    %v1090 = vshrl.u32 %v1089, 7
    %v1091 = vsub.s32 %v1088, %v1090
    %v1092 = vrot.slane %v1064, %v1091
    %v1093 = vcombine.low %v1071, %v1085
    %v1094 = vcombine.high %v1071, %v1085
    %v1095 = vcombine.low %v1078, %v1092
    %v1096 = vcombine.high %v1078, %v1092
    %v1097 = vcombine.low %v137, %v139
    %v1098 = vcombine.high %v137, %v139
    %v1099 = vcombine.low %v141, %v143
    %v1100 = vcombine.high %v141, %v143
    %v1102 = vunpack.c.l.s4 1983009808
    %v1103 = vunpack.c.0.s8 %v1102
    %v1104 = vlaneseq
    %v1105 = vshrl.u32 %v1104, 7
    %v1106 = vsub.s32 %v1103, %v1105
    %v1107 = vrot.slane %v1097, %v1106
    %v1109 = vunpack.c.l.s4 1983009808
    %v1110 = vunpack.c.0.s8 %v1109
    %v1111 = vlaneseq
    %v1112 = vshrl.u32 %v1111, 7
    %v1113 = vsub.s32 %v1110, %v1112
    %v1114 = vrot.slane %v1098, %v1113
    %v1116 = vunpack.c.l.s4 1983009808
    %v1117 = vunpack.c.0.s8 %v1116
    %v1118 = vlaneseq
    %v1119 = vshrl.u32 %v1118, 7
    %v1120 = vsub.s32 %v1117, %v1119
    %v1121 = vrot.slane %v1099, %v1120
    %v1123 = vunpack.c.l.s4 1983009808
    %v1124 = vunpack.c.0.s8 %v1123
    %v1125 = vlaneseq
    %v1126 = vshrl.u32 %v1125, 7
    %v1127 = vsub.s32 %v1124, %v1126
    %v1128 = vrot.slane %v1100, %v1127
    %v1129 = vcombine.low %v1107, %v1121
    %v1130 = vcombine.high %v1107, %v1121
    %v1131 = vcombine.low %v1114, %v1128
    %v1132 = vcombine.high %v1114, %v1128
    %v1133 = vcombine.low %v138, %v140
    %v1134 = vcombine.high %v138, %v140
    %v1135 = vcombine.low %v142, %v144
    %v1136 = vcombine.high %v142, %v144
    %v1138 = vunpack.c.l.s4 1983009808
    %v1139 = vunpack.c.0.s8 %v1138
    %v1140 = vlaneseq
    %v1141 = vshrl.u32 %v1140, 7
    %v1142 = vsub.s32 %v1139, %v1141
    %v1143 = vrot.slane %v1133, %v1142
    %v1145 = vunpack.c.l.s4 1983009808
    %v1146 = vunpack.c.0.s8 %v1145
    %v1147 = vlaneseq
    %v1148 = vshrl.u32 %v1147, 7
    %v1149 = vsub.s32 %v1146, %v1148
    %v1150 = vrot.slane %v1134, %v1149
    %v1152 = vunpack.c.l.s4 1983009808
    %v1153 = vunpack.c.0.s8 %v1152
    %v1154 = vlaneseq
    %v1155 = vshrl.u32 %v1154, 7
    %v1156 = vsub.s32 %v1153, %v1155
    %v1157 = vrot.slane %v1135, %v1156
    %v1159 = vunpack.c.l.s4 1983009808
    %v1160 = vunpack.c.0.s8 %v1159
    %v1161 = vlaneseq
    %v1162 = vshrl.u32 %v1161, 7
    %v1163 = vsub.s32 %v1160, %v1162
    %v1164 = vrot.slane %v1136, %v1163
    %v1165 = vcombine.low %v1143, %v1157
    %v1166 = vcombine.high %v1143, %v1157
    %v1167 = vcombine.low %v1150, %v1164
    %v1168 = vcombine.high %v1150, %v1164
    %v1169 = vcombine.low %v145, %v147
    %v1170 = vcombine.high %v145, %v147
    %v1171 = vcombine.low %v149, %v151
    %v1172 = vcombine.high %v149, %v151
    %v1174 = vunpack.c.l.s4 1983009808
    %v1175 = vunpack.c.0.s8 %v1174
    %v1176 = vlaneseq
    %v1177 = vshrl.u32 %v1176, 7
    %v1178 = vsub.s32 %v1175, %v1177
    %v1179 = vrot.slane %v1169, %v1178
    %v1181 = vunpack.c.l.s4 1983009808
    %v1182 = vunpack.c.0.s8 %v1181
    %v1183 = vlaneseq
    %v1184 = vshrl.u32 %v1183, 7
    %v1185 = vsub.s32 %v1182, %v1184
    %v1186 = vrot.slane %v1170, %v1185
    %v1188 = vunpack.c.l.s4 1983009808
    %v1189 = vunpack.c.0.s8 %v1188
    %v1190 = vlaneseq
    %v1191 = vshrl.u32 %v1190, 7
    %v1192 = vsub.s32 %v1189, %v1191
    %v1193 = vrot.slane %v1171, %v1192
    %v1195 = vunpack.c.l.s4 1983009808
    %v1196 = vunpack.c.0.s8 %v1195
    %v1197 = vlaneseq
    %v1198 = vshrl.u32 %v1197, 7
    %v1199 = vsub.s32 %v1196, %v1198
    %v1200 = vrot.slane %v1172, %v1199
    %v1201 = vcombine.low %v1179, %v1193
    %v1202 = vcombine.high %v1179, %v1193
    %v1203 = vcombine.low %v1186, %v1200
    %v1204 = vcombine.high %v1186, %v1200
    %v1205 = vcombine.low %v146, %v148
    %v1206 = vcombine.high %v146, %v148
    %v1207 = vcombine.low %v150, %v152
    %v1208 = vcombine.high %v150, %v152
    %v1210 = vunpack.c.l.s4 1983009808
    %v1211 = vunpack.c.0.s8 %v1210
    %v1212 = vlaneseq
    %v1213 = vshrl.u32 %v1212, 7
    %v1214 = vsub.s32 %v1211, %v1213
    %v1215 = vrot.slane %v1205, %v1214
    %v1217 = vunpack.c.l.s4 1983009808
    %v1218 = vunpack.c.0.s8 %v1217
    %v1219 = vlaneseq
    %v1220 = vshrl.u32 %v1219, 7
    %v1221 = vsub.s32 %v1218, %v1220
    %v1222 = vrot.slane %v1206, %v1221
    %v1224 = vunpack.c.l.s4 1983009808
    %v1225 = vunpack.c.0.s8 %v1224
    %v1226 = vlaneseq
    %v1227 = vshrl.u32 %v1226, 7
    %v1228 = vsub.s32 %v1225, %v1227
    %v1229 = vrot.slane %v1207, %v1228
    %v1231 = vunpack.c.l.s4 1983009808
    %v1232 = vunpack.c.0.s8 %v1231
    %v1233 = vlaneseq
    %v1234 = vshrl.u32 %v1233, 7
    %v1235 = vsub.s32 %v1232, %v1234
    %v1236 = vrot.slane %v1208, %v1235
    %v1237 = vcombine.low %v1215, %v1229
    %v1238 = vcombine.high %v1215, %v1229
    %v1239 = vcombine.low %v1222, %v1236
    %v1240 = vcombine.high %v1222, %v1236
    %v1241 = vcombine.low %v153, %v155
    %v1242 = vcombine.high %v153, %v155
    %v1243 = vcombine.low %v157, %v159
    %v1244 = vcombine.high %v157, %v159
    %v1246 = vunpack.c.l.s4 1983009808
    %v1247 = vunpack.c.0.s8 %v1246
    %v1248 = vlaneseq
    %v1249 = vshrl.u32 %v1248, 7
    %v1250 = vsub.s32 %v1247, %v1249
    %v1251 = vrot.slane %v1241, %v1250
    %v1253 = vunpack.c.l.s4 1983009808
    %v1254 = vunpack.c.0.s8 %v1253
    %v1255 = vlaneseq
    %v1256 = vshrl.u32 %v1255, 7
    %v1257 = vsub.s32 %v1254, %v1256
    %v1258 = vrot.slane %v1242, %v1257
    %v1260 = vunpack.c.l.s4 1983009808
    %v1261 = vunpack.c.0.s8 %v1260
    %v1262 = vlaneseq
    %v1263 = vshrl.u32 %v1262, 7
    %v1264 = vsub.s32 %v1261, %v1263
    %v1265 = vrot.slane %v1243, %v1264
    %v1267 = vunpack.c.l.s4 1983009808
    %v1268 = vunpack.c.0.s8 %v1267
    %v1269 = vlaneseq
    %v1270 = vshrl.u32 %v1269, 7
    %v1271 = vsub.s32 %v1268, %v1270
    %v1272 = vrot.slane %v1244, %v1271
    %v1273 = vcombine.low %v1251, %v1265
    %v1274 = vcombine.high %v1251, %v1265
    %v1275 = vcombine.low %v1258, %v1272
    %v1276 = vcombine.high %v1258, %v1272
    %v1277 = vcombine.low %v154, %v156
    %v1278 = vcombine.high %v154, %v156
    %v1279 = vcombine.low %v158, %v160
    %v1280 = vcombine.high %v158, %v160
    %v1282 = vunpack.c.l.s4 1983009808
    %v1283 = vunpack.c.0.s8 %v1282
    %v1284 = vlaneseq
    %v1285 = vshrl.u32 %v1284, 7
    %v1286 = vsub.s32 %v1283, %v1285
    %v1287 = vrot.slane %v1277, %v1286
    %v1289 = vunpack.c.l.s4 1983009808
    %v1290 = vunpack.c.0.s8 %v1289
    %v1291 = vlaneseq
    %v1292 = vshrl.u32 %v1291, 7
    %v1293 = vsub.s32 %v1290, %v1292
    %v1294 = vrot.slane %v1278, %v1293
    %v1296 = vunpack.c.l.s4 1983009808
    %v1297 = vunpack.c.0.s8 %v1296
    %v1298 = vlaneseq
    %v1299 = vshrl.u32 %v1298, 7
    %v1300 = vsub.s32 %v1297, %v1299
    %v1301 = vrot.slane %v1279, %v1300
    %v1303 = vunpack.c.l.s4 1983009808
    %v1304 = vunpack.c.0.s8 %v1303
    %v1305 = vlaneseq
    %v1306 = vshrl.u32 %v1305, 7
    %v1307 = vsub.s32 %v1304, %v1306
    %v1308 = vrot.slane %v1280, %v1307
    %v1309 = vcombine.low %v1287, %v1301
    %v1310 = vcombine.high %v1287, %v1301
    %v1311 = vcombine.low %v1294, %v1308
    %v1312 = vcombine.high %v1294, %v1308
    %v1313 = vcombine.low %v161, %v163
    %v1314 = vcombine.high %v161, %v163
    %v1315 = vcombine.low %v165, %v167
    %v1316 = vcombine.high %v165, %v167
    %v1318 = vunpack.c.l.s4 1983009808
    %v1319 = vunpack.c.0.s8 %v1318
    %v1320 = vlaneseq
    %v1321 = vshrl.u32 %v1320, 7
    %v1322 = vsub.s32 %v1319, %v1321
    %v1323 = vrot.slane %v1313, %v1322
    %v1325 = vunpack.c.l.s4 1983009808
    %v1326 = vunpack.c.0.s8 %v1325
    %v1327 = vlaneseq
    %v1328 = vshrl.u32 %v1327, 7
    %v1329 = vsub.s32 %v1326, %v1328
    %v1330 = vrot.slane %v1314, %v1329
    %v1332 = vunpack.c.l.s4 1983009808
    %v1333 = vunpack.c.0.s8 %v1332
    %v1334 = vlaneseq
    %v1335 = vshrl.u32 %v1334, 7
    %v1336 = vsub.s32 %v1333, %v1335
    %v1337 = vrot.slane %v1315, %v1336
    %v1339 = vunpack.c.l.s4 1983009808
    %v1340 = vunpack.c.0.s8 %v1339
    %v1341 = vlaneseq
    %v1342 = vshrl.u32 %v1341, 7
    %v1343 = vsub.s32 %v1340, %v1342
    %v1344 = vrot.slane %v1316, %v1343
    %v1345 = vcombine.low %v1323, %v1337
    %v1346 = vcombine.high %v1323, %v1337
    %v1347 = vcombine.low %v1330, %v1344
    %v1348 = vcombine.high %v1330, %v1344
    %v1349 = vcombine.low %v162, %v164
    %v1350 = vcombine.high %v162, %v164
    %v1351 = vcombine.low %v166, %v168
    %v1352 = vcombine.high %v166, %v168
    %v1354 = vunpack.c.l.s4 1983009808
    %v1355 = vunpack.c.0.s8 %v1354
    %v1356 = vlaneseq
    %v1357 = vshrl.u32 %v1356, 7
    %v1358 = vsub.s32 %v1355, %v1357
    %v1359 = vrot.slane %v1349, %v1358
    %v1361 = vunpack.c.l.s4 1983009808
    %v1362 = vunpack.c.0.s8 %v1361
    %v1363 = vlaneseq
    %v1364 = vshrl.u32 %v1363, 7
    %v1365 = vsub.s32 %v1362, %v1364
    %v1366 = vrot.slane %v1350, %v1365
    %v1368 = vunpack.c.l.s4 1983009808
    %v1369 = vunpack.c.0.s8 %v1368
    %v1370 = vlaneseq
    %v1371 = vshrl.u32 %v1370, 7
    %v1372 = vsub.s32 %v1369, %v1371
    %v1373 = vrot.slane %v1351, %v1372
    %v1375 = vunpack.c.l.s4 1983009808
    %v1376 = vunpack.c.0.s8 %v1375
    %v1377 = vlaneseq
    %v1378 = vshrl.u32 %v1377, 7
    %v1379 = vsub.s32 %v1376, %v1378
    %v1380 = vrot.slane %v1352, %v1379
    %v1381 = vcombine.low %v1359, %v1373
    %v1382 = vcombine.high %v1359, %v1373
    %v1383 = vcombine.low %v1366, %v1380
    %v1384 = vcombine.high %v1366, %v1380
    %v1385 = vcombine.low %v169, %v171
    %v1386 = vcombine.high %v169, %v171
    %v1387 = vcombine.low %v173, %v175
    %v1388 = vcombine.high %v173, %v175
    %v1390 = vunpack.c.l.s4 1983009808
    %v1391 = vunpack.c.0.s8 %v1390
    %v1392 = vlaneseq
    %v1393 = vshrl.u32 %v1392, 7
    %v1394 = vsub.s32 %v1391, %v1393
    %v1395 = vrot.slane %v1385, %v1394
    %v1397 = vunpack.c.l.s4 1983009808
    %v1398 = vunpack.c.0.s8 %v1397
    %v1399 = vlaneseq
    %v1400 = vshrl.u32 %v1399, 7
    %v1401 = vsub.s32 %v1398, %v1400
    %v1402 = vrot.slane %v1386, %v1401
    %v1404 = vunpack.c.l.s4 1983009808
    %v1405 = vunpack.c.0.s8 %v1404
    %v1406 = vlaneseq
    %v1407 = vshrl.u32 %v1406, 7
    %v1408 = vsub.s32 %v1405, %v1407
    %v1409 = vrot.slane %v1387, %v1408
    %v1411 = vunpack.c.l.s4 1983009808
    %v1412 = vunpack.c.0.s8 %v1411
    %v1413 = vlaneseq
    %v1414 = vshrl.u32 %v1413, 7
    %v1415 = vsub.s32 %v1412, %v1414
    %v1416 = vrot.slane %v1388, %v1415
    %v1417 = vcombine.low %v1395, %v1409
    %v1418 = vcombine.high %v1395, %v1409
    %v1419 = vcombine.low %v1402, %v1416
    %v1420 = vcombine.high %v1402, %v1416
    %v1421 = vcombine.low %v170, %v172
    %v1422 = vcombine.high %v170, %v172
    %v1423 = vcombine.low %v174, %v176
    %v1424 = vcombine.high %v174, %v176
    %v1426 = vunpack.c.l.s4 1983009808
    %v1427 = vunpack.c.0.s8 %v1426
    %v1428 = vlaneseq
    %v1429 = vshrl.u32 %v1428, 7
    %v1430 = vsub.s32 %v1427, %v1429
    %v1431 = vrot.slane %v1421, %v1430
    %v1433 = vunpack.c.l.s4 1983009808
    %v1434 = vunpack.c.0.s8 %v1433
    %v1435 = vlaneseq
    %v1436 = vshrl.u32 %v1435, 7
    %v1437 = vsub.s32 %v1434, %v1436
    %v1438 = vrot.slane %v1422, %v1437
    %v1440 = vunpack.c.l.s4 1983009808
    %v1441 = vunpack.c.0.s8 %v1440
    %v1442 = vlaneseq
    %v1443 = vshrl.u32 %v1442, 7
    %v1444 = vsub.s32 %v1441, %v1443
    %v1445 = vrot.slane %v1423, %v1444
    %v1447 = vunpack.c.l.s4 1983009808
    %v1448 = vunpack.c.0.s8 %v1447
    %v1449 = vlaneseq
    %v1450 = vshrl.u32 %v1449, 7
    %v1451 = vsub.s32 %v1448, %v1450
    %v1452 = vrot.slane %v1424, %v1451
    %v1453 = vcombine.low %v1431, %v1445
    %v1454 = vcombine.high %v1431, %v1445
    %v1455 = vcombine.low %v1438, %v1452
    %v1456 = vcombine.high %v1438, %v1452
    %v1585 = vpack.c.bf16 %v409, %v337
    %v1586 = vpack.c.bf16 %v410, %v338
    %v1587 = vpack.c.bf16 %v411, %v339
    %v1588 = vpack.c.bf16 %v412, %v340
    %v1589 = vpack.c.bf16 %v445, %v373
    %v1590 = vpack.c.bf16 %v446, %v374
    %v1591 = vpack.c.bf16 %v447, %v375
    %v1592 = vpack.c.bf16 %v448, %v376
    %v1593 = vpack.c.bf16 %v553, %v481
    %v1594 = vpack.c.bf16 %v554, %v482
    %v1595 = vpack.c.bf16 %v555, %v483
    %v1596 = vpack.c.bf16 %v556, %v484
    %v1597 = vpack.c.bf16 %v589, %v517
    %v1598 = vpack.c.bf16 %v590, %v518
    %v1599 = vpack.c.bf16 %v591, %v519
    %v1600 = vpack.c.bf16 %v592, %v520
    %v1601 = vpack.c.bf16 %v697, %v625
    %v1602 = vpack.c.bf16 %v698, %v626
    %v1603 = vpack.c.bf16 %v699, %v627
    %v1604 = vpack.c.bf16 %v700, %v628
    %v1605 = vpack.c.bf16 %v733, %v661
    %v1606 = vpack.c.bf16 %v734, %v662
    %v1607 = vpack.c.bf16 %v735, %v663
    %v1608 = vpack.c.bf16 %v736, %v664
    %v1609 = vpack.c.bf16 %v841, %v769
    %v1610 = vpack.c.bf16 %v842, %v770
    %v1611 = vpack.c.bf16 %v843, %v771
    %v1612 = vpack.c.bf16 %v844, %v772
    %v1613 = vpack.c.bf16 %v877, %v805
    %v1614 = vpack.c.bf16 %v878, %v806
    %v1615 = vpack.c.bf16 %v879, %v807
    %v1616 = vpack.c.bf16 %v880, %v808
    %v1617 = vpack.c.bf16 %v985, %v913
    %v1618 = vpack.c.bf16 %v986, %v914
    %v1619 = vpack.c.bf16 %v987, %v915
    %v1620 = vpack.c.bf16 %v988, %v916
    %v1621 = vpack.c.bf16 %v1021, %v949
    %v1622 = vpack.c.bf16 %v1022, %v950
    %v1623 = vpack.c.bf16 %v1023, %v951
    %v1624 = vpack.c.bf16 %v1024, %v952
    %v1625 = vpack.c.bf16 %v1129, %v1057
    %v1626 = vpack.c.bf16 %v1130, %v1058
    %v1627 = vpack.c.bf16 %v1131, %v1059
    %v1628 = vpack.c.bf16 %v1132, %v1060
    %v1629 = vpack.c.bf16 %v1165, %v1093
    %v1630 = vpack.c.bf16 %v1166, %v1094
    %v1631 = vpack.c.bf16 %v1167, %v1095
    %v1632 = vpack.c.bf16 %v1168, %v1096
    %v1633 = vpack.c.bf16 %v1273, %v1201
    %v1634 = vpack.c.bf16 %v1274, %v1202
    %v1635 = vpack.c.bf16 %v1275, %v1203
    %v1636 = vpack.c.bf16 %v1276, %v1204
    %v1637 = vpack.c.bf16 %v1309, %v1237
    %v1638 = vpack.c.bf16 %v1310, %v1238
    %v1639 = vpack.c.bf16 %v1311, %v1239
    %v1640 = vpack.c.bf16 %v1312, %v1240
    %v1641 = vpack.c.bf16 %v1417, %v1345
    %v1642 = vpack.c.bf16 %v1418, %v1346
    %v1643 = vpack.c.bf16 %v1419, %v1347
    %v1644 = vpack.c.bf16 %v1420, %v1348
    %v1645 = vpack.c.bf16 %v1453, %v1381
    %v1646 = vpack.c.bf16 %v1454, %v1382
    %v1647 = vpack.c.bf16 %v1455, %v1383
    %v1648 = vpack.c.bf16 %v1456, %v1384
    %v1649 = vld [vmem:[#allocation5] sm:$0xff]
    %v1650 = vld [vmem:[#allocation5 + $0x8] sm:$0xff]
    %v1651 = vld [vmem:[#allocation5 + $0x10] sm:$0xff]
    %v1652 = vld [vmem:[#allocation5 + $0x18] sm:$0xff]
    %v1653 = vld [vmem:[#allocation5 + $0x20] sm:$0xff]
    %v1654 = vld [vmem:[#allocation5 + $0x28] sm:$0xff]
    %v1655 = vld [vmem:[#allocation5 + $0x30] sm:$0xff]
    %v1656 = vld [vmem:[#allocation5 + $0x38] sm:$0xff]
    %v1657 = vld [vmem:[#allocation5 + $0x40] sm:$0xff]
    %v1658 = vld [vmem:[#allocation5 + $0x48] sm:$0xff]
    %v1659 = vld [vmem:[#allocation5 + $0x50] sm:$0xff]
    %v1660 = vld [vmem:[#allocation5 + $0x58] sm:$0xff]
    %v1661 = vld [vmem:[#allocation5 + $0x60] sm:$0xff]
    %v1662 = vld [vmem:[#allocation5 + $0x68] sm:$0xff]
    %v1663 = vld [vmem:[#allocation5 + $0x70] sm:$0xff]
    %v1664 = vld [vmem:[#allocation5 + $0x78] sm:$0xff]
    %v1665 = vld [vmem:[#allocation5 + $0x80] sm:$0xff]
    %v1666 = vld [vmem:[#allocation5 + $0x88] sm:$0xff]
    %v1667 = vld [vmem:[#allocation5 + $0x90] sm:$0xff]
    %v1668 = vld [vmem:[#allocation5 + $0x98] sm:$0xff]
    %v1669 = vld [vmem:[#allocation5 + $0xa0] sm:$0xff]
    %v1670 = vld [vmem:[#allocation5 + $0xa8] sm:$0xff]
    %v1671 = vld [vmem:[#allocation5 + $0xb0] sm:$0xff]
    %v1672 = vld [vmem:[#allocation5 + $0xb8] sm:$0xff]
    %v1673 = vld [vmem:[#allocation5 + $0xc0] sm:$0xff]
    %v1674 = vld [vmem:[#allocation5 + $0xc8] sm:$0xff]
    %v1675 = vld [vmem:[#allocation5 + $0xd0] sm:$0xff]
    %v1676 = vld [vmem:[#allocation5 + $0xd8] sm:$0xff]
    %v1677 = vld [vmem:[#allocation5 + $0xe0] sm:$0xff]
    %v1678 = vld [vmem:[#allocation5 + $0xe8] sm:$0xff]
    %v1679 = vld [vmem:[#allocation5 + $0xf0] sm:$0xff]
    %v1680 = vld [vmem:[#allocation5 + $0xf8] sm:$0xff]
    %v1681 = vld [vmem:[#allocation5 + $0x100] sm:$0xff]
    %v1682 = vld [vmem:[#allocation5 + $0x108] sm:$0xff]
    %v1683 = vld [vmem:[#allocation5 + $0x110] sm:$0xff]
    %v1684 = vld [vmem:[#allocation5 + $0x118] sm:$0xff]
    %v1685 = vld [vmem:[#allocation5 + $0x120] sm:$0xff]
    %v1686 = vld [vmem:[#allocation5 + $0x128] sm:$0xff]
    %v1687 = vld [vmem:[#allocation5 + $0x130] sm:$0xff]
    %v1688 = vld [vmem:[#allocation5 + $0x138] sm:$0xff]
    %v1689 = vld [vmem:[#allocation5 + $0x140] sm:$0xff]
    %v1690 = vld [vmem:[#allocation5 + $0x148] sm:$0xff]
    %v1691 = vld [vmem:[#allocation5 + $0x150] sm:$0xff]
    %v1692 = vld [vmem:[#allocation5 + $0x158] sm:$0xff]
    %v1693 = vld [vmem:[#allocation5 + $0x160] sm:$0xff]
    %v1694 = vld [vmem:[#allocation5 + $0x168] sm:$0xff]
    %v1695 = vld [vmem:[#allocation5 + $0x170] sm:$0xff]
    %v1696 = vld [vmem:[#allocation5 + $0x178] sm:$0xff]
    %v1697 = vld [vmem:[#allocation5 + $0x180] sm:$0xff]
    %v1698 = vld [vmem:[#allocation5 + $0x188] sm:$0xff]
    %v1699 = vld [vmem:[#allocation5 + $0x190] sm:$0xff]
    %v1700 = vld [vmem:[#allocation5 + $0x198] sm:$0xff]
    %v1701 = vld [vmem:[#allocation5 + $0x1a0] sm:$0xff]
    %v1702 = vld [vmem:[#allocation5 + $0x1a8] sm:$0xff]
    %v1703 = vld [vmem:[#allocation5 + $0x1b0] sm:$0xff]
    %v1704 = vld [vmem:[#allocation5 + $0x1b8] sm:$0xff]
    %v1705 = vld [vmem:[#allocation5 + $0x1c0] sm:$0xff]
    %v1706 = vld [vmem:[#allocation5 + $0x1c8] sm:$0xff]
    %v1707 = vld [vmem:[#allocation5 + $0x1d0] sm:$0xff]
    %v1708 = vld [vmem:[#allocation5 + $0x1d8] sm:$0xff]
    %v1709 = vld [vmem:[#allocation5 + $0x1e0] sm:$0xff]
    %v1710 = vld [vmem:[#allocation5 + $0x1e8] sm:$0xff]
    %v1711 = vld [vmem:[#allocation5 + $0x1f0] sm:$0xff]
    %v1712 = vld [vmem:[#allocation5 + $0x1f8] sm:$0xff]
    %v1713 = vld [vmem:[#allocation5 + $0x200] sm:$0xff]
    %v1714 = vld [vmem:[#allocation5 + $0x208] sm:$0xff]
    %v1715 = vld [vmem:[#allocation5 + $0x210] sm:$0xff]
    %v1716 = vld [vmem:[#allocation5 + $0x218] sm:$0xff]
    %v1717 = vld [vmem:[#allocation5 + $0x220] sm:$0xff]
    %v1718 = vld [vmem:[#allocation5 + $0x228] sm:$0xff]
    %v1719 = vld [vmem:[#allocation5 + $0x230] sm:$0xff]
    %v1720 = vld [vmem:[#allocation5 + $0x238] sm:$0xff]
    %v1721 = vld [vmem:[#allocation5 + $0x240] sm:$0xff]
    %v1722 = vld [vmem:[#allocation5 + $0x248] sm:$0xff]
    %v1723 = vld [vmem:[#allocation5 + $0x250] sm:$0xff]
    %v1724 = vld [vmem:[#allocation5 + $0x258] sm:$0xff]
    %v1725 = vld [vmem:[#allocation5 + $0x260] sm:$0xff]
    %v1726 = vld [vmem:[#allocation5 + $0x268] sm:$0xff]
    %v1727 = vld [vmem:[#allocation5 + $0x270] sm:$0xff]
    %v1728 = vld [vmem:[#allocation5 + $0x278] sm:$0xff]
    %v1729 = vld [vmem:[#allocation5 + $0x280] sm:$0xff]
    %v1730 = vld [vmem:[#allocation5 + $0x288] sm:$0xff]
    %v1731 = vld [vmem:[#allocation5 + $0x290] sm:$0xff]
    %v1732 = vld [vmem:[#allocation5 + $0x298] sm:$0xff]
    %v1733 = vld [vmem:[#allocation5 + $0x2a0] sm:$0xff]
    %v1734 = vld [vmem:[#allocation5 + $0x2a8] sm:$0xff]
    %v1735 = vld [vmem:[#allocation5 + $0x2b0] sm:$0xff]
    %v1736 = vld [vmem:[#allocation5 + $0x2b8] sm:$0xff]
    %v1737 = vld [vmem:[#allocation5 + $0x2c0] sm:$0xff]
    %v1738 = vld [vmem:[#allocation5 + $0x2c8] sm:$0xff]
    %v1739 = vld [vmem:[#allocation5 + $0x2d0] sm:$0xff]
    %v1740 = vld [vmem:[#allocation5 + $0x2d8] sm:$0xff]
    %v1741 = vld [vmem:[#allocation5 + $0x2e0] sm:$0xff]
    %v1742 = vld [vmem:[#allocation5 + $0x2e8] sm:$0xff]
    %v1743 = vld [vmem:[#allocation5 + $0x2f0] sm:$0xff]
    %v1744 = vld [vmem:[#allocation5 + $0x2f8] sm:$0xff]
    %v1745 = vld [vmem:[#allocation5 + $0x300] sm:$0xff]
    %v1746 = vld [vmem:[#allocation5 + $0x308] sm:$0xff]
    %v1747 = vld [vmem:[#allocation5 + $0x310] sm:$0xff]
    %v1748 = vld [vmem:[#allocation5 + $0x318] sm:$0xff]
    %v1749 = vld [vmem:[#allocation5 + $0x320] sm:$0xff]
    %v1750 = vld [vmem:[#allocation5 + $0x328] sm:$0xff]
    %v1751 = vld [vmem:[#allocation5 + $0x330] sm:$0xff]
    %v1752 = vld [vmem:[#allocation5 + $0x338] sm:$0xff]
    %v1753 = vld [vmem:[#allocation5 + $0x340] sm:$0xff]
    %v1754 = vld [vmem:[#allocation5 + $0x348] sm:$0xff]
    %v1755 = vld [vmem:[#allocation5 + $0x350] sm:$0xff]
    %v1756 = vld [vmem:[#allocation5 + $0x358] sm:$0xff]
    %v1757 = vld [vmem:[#allocation5 + $0x360] sm:$0xff]
    %v1758 = vld [vmem:[#allocation5 + $0x368] sm:$0xff]
    %v1759 = vld [vmem:[#allocation5 + $0x370] sm:$0xff]
    %v1760 = vld [vmem:[#allocation5 + $0x378] sm:$0xff]
    %v1761 = vld [vmem:[#allocation5 + $0x380] sm:$0xff]
    %v1762 = vld [vmem:[#allocation5 + $0x388] sm:$0xff]
    %v1763 = vld [vmem:[#allocation5 + $0x390] sm:$0xff]
    %v1764 = vld [vmem:[#allocation5 + $0x398] sm:$0xff]
    %v1765 = vld [vmem:[#allocation5 + $0x3a0] sm:$0xff]
    %v1766 = vld [vmem:[#allocation5 + $0x3a8] sm:$0xff]
    %v1767 = vld [vmem:[#allocation5 + $0x3b0] sm:$0xff]
    %v1768 = vld [vmem:[#allocation5 + $0x3b8] sm:$0xff]
    %v1769 = vld [vmem:[#allocation5 + $0x3c0] sm:$0xff]
    %v1770 = vld [vmem:[#allocation5 + $0x3c8] sm:$0xff]
    %v1771 = vld [vmem:[#allocation5 + $0x3d0] sm:$0xff]
    %v1772 = vld [vmem:[#allocation5 + $0x3d8] sm:$0xff]
    %v1773 = vld [vmem:[#allocation5 + $0x3e0] sm:$0xff]
    %v1774 = vld [vmem:[#allocation5 + $0x3e8] sm:$0xff]
    %v1775 = vld [vmem:[#allocation5 + $0x3f0] sm:$0xff]
    %v1776 = vld [vmem:[#allocation5 + $0x3f8] sm:$0xff]
    %v1777 = vld [vmem:[#allocation5 + $0x400] sm:$0xff]
    %v1778 = vld [vmem:[#allocation5 + $0x408] sm:$0xff]
    %v1779 = vld [vmem:[#allocation5 + $0x410] sm:$0xff]
    %v1780 = vld [vmem:[#allocation5 + $0x418] sm:$0xff]
    %v1781 = vld [vmem:[#allocation5 + $0x420] sm:$0xff]
    %v1782 = vld [vmem:[#allocation5 + $0x428] sm:$0xff]
    %v1783 = vld [vmem:[#allocation5 + $0x430] sm:$0xff]
    %v1784 = vld [vmem:[#allocation5 + $0x438] sm:$0xff]
    %v1785 = vld [vmem:[#allocation5 + $0x440] sm:$0xff]
    %v1786 = vld [vmem:[#allocation5 + $0x448] sm:$0xff]
    %v1787 = vld [vmem:[#allocation5 + $0x450] sm:$0xff]
    %v1788 = vld [vmem:[#allocation5 + $0x458] sm:$0xff]
    %v1789 = vld [vmem:[#allocation5 + $0x460] sm:$0xff]
    %v1790 = vld [vmem:[#allocation5 + $0x468] sm:$0xff]
    %v1791 = vld [vmem:[#allocation5 + $0x470] sm:$0xff]
    %v1792 = vld [vmem:[#allocation5 + $0x478] sm:$0xff]
    %v1793 = vld [vmem:[#allocation5 + $0x480] sm:$0xff]
    %v1794 = vld [vmem:[#allocation5 + $0x488] sm:$0xff]
    %v1795 = vld [vmem:[#allocation5 + $0x490] sm:$0xff]
    %v1796 = vld [vmem:[#allocation5 + $0x498] sm:$0xff]
    %v1797 = vld [vmem:[#allocation5 + $0x4a0] sm:$0xff]
    %v1798 = vld [vmem:[#allocation5 + $0x4a8] sm:$0xff]
    %v1799 = vld [vmem:[#allocation5 + $0x4b0] sm:$0xff]
    %v1800 = vld [vmem:[#allocation5 + $0x4b8] sm:$0xff]
    %v1801 = vld [vmem:[#allocation5 + $0x4c0] sm:$0xff]
    %v1802 = vld [vmem:[#allocation5 + $0x4c8] sm:$0xff]
    %v1803 = vld [vmem:[#allocation5 + $0x4d0] sm:$0xff]
    %v1804 = vld [vmem:[#allocation5 + $0x4d8] sm:$0xff]
    %v1805 = vld [vmem:[#allocation5 + $0x4e0] sm:$0xff]
    %v1806 = vld [vmem:[#allocation5 + $0x4e8] sm:$0xff]
    %v1807 = vld [vmem:[#allocation5 + $0x4f0] sm:$0xff]
    %v1808 = vld [vmem:[#allocation5 + $0x4f8] sm:$0xff]
    %v1809 = vld [vmem:[#allocation5 + $0x500] sm:$0xff]
    %v1810 = vld [vmem:[#allocation5 + $0x508] sm:$0xff]
    %v1811 = vld [vmem:[#allocation5 + $0x510] sm:$0xff]
    %v1812 = vld [vmem:[#allocation5 + $0x518] sm:$0xff]
    %v1813 = vld [vmem:[#allocation5 + $0x520] sm:$0xff]
    %v1814 = vld [vmem:[#allocation5 + $0x528] sm:$0xff]
    %v1815 = vld [vmem:[#allocation5 + $0x530] sm:$0xff]
    %v1816 = vld [vmem:[#allocation5 + $0x538] sm:$0xff]
    %v1817 = vld [vmem:[#allocation5 + $0x540] sm:$0xff]
    %v1818 = vld [vmem:[#allocation5 + $0x548] sm:$0xff]
    %v1819 = vld [vmem:[#allocation5 + $0x550] sm:$0xff]
    %v1820 = vld [vmem:[#allocation5 + $0x558] sm:$0xff]
    %v1821 = vld [vmem:[#allocation5 + $0x560] sm:$0xff]
    %v1822 = vld [vmem:[#allocation5 + $0x568] sm:$0xff]
    %v1823 = vld [vmem:[#allocation5 + $0x570] sm:$0xff]
    %v1824 = vld [vmem:[#allocation5 + $0x578] sm:$0xff]
    %v1825 = vld [vmem:[#allocation5 + $0x580] sm:$0xff]
    %v1826 = vld [vmem:[#allocation5 + $0x588] sm:$0xff]
    %v1827 = vld [vmem:[#allocation5 + $0x590] sm:$0xff]
    %v1828 = vld [vmem:[#allocation5 + $0x598] sm:$0xff]
    %v1829 = vld [vmem:[#allocation5 + $0x5a0] sm:$0xff]
    %v1830 = vld [vmem:[#allocation5 + $0x5a8] sm:$0xff]
    %v1831 = vld [vmem:[#allocation5 + $0x5b0] sm:$0xff]
    %v1832 = vld [vmem:[#allocation5 + $0x5b8] sm:$0xff]
    %v1833 = vld [vmem:[#allocation5 + $0x5c0] sm:$0xff]
    %v1834 = vld [vmem:[#allocation5 + $0x5c8] sm:$0xff]
    %v1835 = vld [vmem:[#allocation5 + $0x5d0] sm:$0xff]
    %v1836 = vld [vmem:[#allocation5 + $0x5d8] sm:$0xff]
    %v1837 = vld [vmem:[#allocation5 + $0x5e0] sm:$0xff]
    %v1838 = vld [vmem:[#allocation5 + $0x5e8] sm:$0xff]
    %v1839 = vld [vmem:[#allocation5 + $0x5f0] sm:$0xff]
    %v1840 = vld [vmem:[#allocation5 + $0x5f8] sm:$0xff]
    %v1841 = vld [vmem:[#allocation5 + $0x600] sm:$0xff]
    %v1842 = vld [vmem:[#allocation5 + $0x608] sm:$0xff]
    %v1843 = vld [vmem:[#allocation5 + $0x610] sm:$0xff]
    %v1844 = vld [vmem:[#allocation5 + $0x618] sm:$0xff]
    %v1845 = vld [vmem:[#allocation5 + $0x620] sm:$0xff]
    %v1846 = vld [vmem:[#allocation5 + $0x628] sm:$0xff]
    %v1847 = vld [vmem:[#allocation5 + $0x630] sm:$0xff]
    %v1848 = vld [vmem:[#allocation5 + $0x638] sm:$0xff]
    %v1849 = vld [vmem:[#allocation5 + $0x640] sm:$0xff]
    %v1850 = vld [vmem:[#allocation5 + $0x648] sm:$0xff]
    %v1851 = vld [vmem:[#allocation5 + $0x650] sm:$0xff]
    %v1852 = vld [vmem:[#allocation5 + $0x658] sm:$0xff]
    %v1853 = vld [vmem:[#allocation5 + $0x660] sm:$0xff]
    %v1854 = vld [vmem:[#allocation5 + $0x668] sm:$0xff]
    %v1855 = vld [vmem:[#allocation5 + $0x670] sm:$0xff]
    %v1856 = vld [vmem:[#allocation5 + $0x678] sm:$0xff]
    %v1857 = vld [vmem:[#allocation5 + $0x680] sm:$0xff]
    %v1858 = vld [vmem:[#allocation5 + $0x688] sm:$0xff]
    %v1859 = vld [vmem:[#allocation5 + $0x690] sm:$0xff]
    %v1860 = vld [vmem:[#allocation5 + $0x698] sm:$0xff]
    %v1861 = vld [vmem:[#allocation5 + $0x6a0] sm:$0xff]
    %v1862 = vld [vmem:[#allocation5 + $0x6a8] sm:$0xff]
    %v1863 = vld [vmem:[#allocation5 + $0x6b0] sm:$0xff]
    %v1864 = vld [vmem:[#allocation5 + $0x6b8] sm:$0xff]
    %v1865 = vld [vmem:[#allocation5 + $0x6c0] sm:$0xff]
    %v1866 = vld [vmem:[#allocation5 + $0x6c8] sm:$0xff]
    %v1867 = vld [vmem:[#allocation5 + $0x6d0] sm:$0xff]
    %v1868 = vld [vmem:[#allocation5 + $0x6d8] sm:$0xff]
    %v1869 = vld [vmem:[#allocation5 + $0x6e0] sm:$0xff]
    %v1870 = vld [vmem:[#allocation5 + $0x6e8] sm:$0xff]
    %v1871 = vld [vmem:[#allocation5 + $0x6f0] sm:$0xff]
    %v1872 = vld [vmem:[#allocation5 + $0x6f8] sm:$0xff]
    %v1873 = vld [vmem:[#allocation5 + $0x700] sm:$0xff]
    %v1874 = vld [vmem:[#allocation5 + $0x708] sm:$0xff]
    %v1875 = vld [vmem:[#allocation5 + $0x710] sm:$0xff]
    %v1876 = vld [vmem:[#allocation5 + $0x718] sm:$0xff]
    %v1877 = vld [vmem:[#allocation5 + $0x720] sm:$0xff]
    %v1878 = vld [vmem:[#allocation5 + $0x728] sm:$0xff]
    %v1879 = vld [vmem:[#allocation5 + $0x730] sm:$0xff]
    %v1880 = vld [vmem:[#allocation5 + $0x738] sm:$0xff]
    %v1881 = vld [vmem:[#allocation5 + $0x740] sm:$0xff]
    %v1882 = vld [vmem:[#allocation5 + $0x748] sm:$0xff]
    %v1883 = vld [vmem:[#allocation5 + $0x750] sm:$0xff]
    %v1884 = vld [vmem:[#allocation5 + $0x758] sm:$0xff]
    %v1885 = vld [vmem:[#allocation5 + $0x760] sm:$0xff]
    %v1886 = vld [vmem:[#allocation5 + $0x768] sm:$0xff]
    %v1887 = vld [vmem:[#allocation5 + $0x770] sm:$0xff]
    %v1888 = vld [vmem:[#allocation5 + $0x778] sm:$0xff]
    %v1889 = vld [vmem:[#allocation5 + $0x780] sm:$0xff]
    %v1890 = vld [vmem:[#allocation5 + $0x788] sm:$0xff]
    %v1891 = vld [vmem:[#allocation5 + $0x790] sm:$0xff]
    %v1892 = vld [vmem:[#allocation5 + $0x798] sm:$0xff]
    %v1893 = vld [vmem:[#allocation5 + $0x7a0] sm:$0xff]
    %v1894 = vld [vmem:[#allocation5 + $0x7a8] sm:$0xff]
    %v1895 = vld [vmem:[#allocation5 + $0x7b0] sm:$0xff]
    %v1896 = vld [vmem:[#allocation5 + $0x7b8] sm:$0xff]
    %v1897 = vld [vmem:[#allocation5 + $0x7c0] sm:$0xff]
    %v1898 = vld [vmem:[#allocation5 + $0x7c8] sm:$0xff]
    %v1899 = vld [vmem:[#allocation5 + $0x7d0] sm:$0xff]
    %v1900 = vld [vmem:[#allocation5 + $0x7d8] sm:$0xff]
    %v1901 = vld [vmem:[#allocation5 + $0x7e0] sm:$0xff]
    %v1902 = vld [vmem:[#allocation5 + $0x7e8] sm:$0xff]
    %v1903 = vld [vmem:[#allocation5 + $0x7f0] sm:$0xff]
    %v1904 = vld [vmem:[#allocation5 + $0x7f8] sm:$0xff]
    %v1905 = vld [vmem:[%s2] sm:$0xf]
    %v1907 = vlaneseq
    %v1908 = vshrl.u32 %v1907, 7
    %v1909 = vsub.s32 0, %v1908
    %v1910 = vrot.slane %v1905, %v1909
    %v1911 = vlaneseq
    %v1912 = vshrl.u32 %v1911, 7
    %v1913 = vsub.s32 1, %v1912
    %v1914 = vrot.slane %v1905, %v1913
    %v1915 = vlaneseq
    %v1916 = vshrl.u32 %v1915, 7
    %v1917 = vsub.s32 2, %v1916
    %v1918 = vrot.slane %v1905, %v1917
    %v1919 = vlaneseq
    %v1920 = vshrl.u32 %v1919, 7
    %v1921 = vsub.s32 3, %v1920
    %v1922 = vrot.slane %v1905, %v1921
    %v2183 = vunpack.c.l.b16 %v1649
    %v2184 = vunpack.c.h.b16 %v1649
    %v2185 = vunpack.c.l.b16 %v1650
    %v2186 = vunpack.c.h.b16 %v1650
    %v2187 = vunpack.c.l.b16 %v1651
    %v2188 = vunpack.c.h.b16 %v1651
    %v2189 = vunpack.c.l.b16 %v1652
    %v2190 = vunpack.c.h.b16 %v1652
    %v2191 = vunpack.c.l.b16 %v1653
    %v2192 = vunpack.c.h.b16 %v1653
    %v2193 = vunpack.c.l.b16 %v1654
    %v2194 = vunpack.c.h.b16 %v1654
    %v2195 = vunpack.c.l.b16 %v1655
    %v2196 = vunpack.c.h.b16 %v1655
    %v2197 = vunpack.c.l.b16 %v1656
    %v2198 = vunpack.c.h.b16 %v1656
    %v2199 = vunpack.c.l.b16 %v1657
    %v2200 = vunpack.c.h.b16 %v1657
    %v2201 = vunpack.c.l.b16 %v1658
    %v2202 = vunpack.c.h.b16 %v1658
    %v2203 = vunpack.c.l.b16 %v1659
    %v2204 = vunpack.c.h.b16 %v1659
    %v2205 = vunpack.c.l.b16 %v1660
    %v2206 = vunpack.c.h.b16 %v1660
    %v2207 = vunpack.c.l.b16 %v1661
    %v2208 = vunpack.c.h.b16 %v1661
    %v2209 = vunpack.c.l.b16 %v1662
    %v2210 = vunpack.c.h.b16 %v1662
    %v2211 = vunpack.c.l.b16 %v1663
    %v2212 = vunpack.c.h.b16 %v1663
    %v2213 = vunpack.c.l.b16 %v1664
    %v2214 = vunpack.c.h.b16 %v1664
    %v2215 = vunpack.c.l.b16 %v1665
    %v2216 = vunpack.c.h.b16 %v1665
    %v2217 = vunpack.c.l.b16 %v1666
    %v2218 = vunpack.c.h.b16 %v1666
    %v2219 = vunpack.c.l.b16 %v1667
    %v2220 = vunpack.c.h.b16 %v1667
    %v2221 = vunpack.c.l.b16 %v1668
    %v2222 = vunpack.c.h.b16 %v1668
    %v2223 = vunpack.c.l.b16 %v1669
    %v2224 = vunpack.c.h.b16 %v1669
    %v2225 = vunpack.c.l.b16 %v1670
    %v2226 = vunpack.c.h.b16 %v1670
    %v2227 = vunpack.c.l.b16 %v1671
    %v2228 = vunpack.c.h.b16 %v1671
    %v2229 = vunpack.c.l.b16 %v1672
    %v2230 = vunpack.c.h.b16 %v1672
    %v2231 = vunpack.c.l.b16 %v1673
    %v2232 = vunpack.c.h.b16 %v1673
    %v2233 = vunpack.c.l.b16 %v1674
    %v2234 = vunpack.c.h.b16 %v1674
    %v2235 = vunpack.c.l.b16 %v1675
    %v2236 = vunpack.c.h.b16 %v1675
    %v2237 = vunpack.c.l.b16 %v1676
    %v2238 = vunpack.c.h.b16 %v1676
    %v2239 = vunpack.c.l.b16 %v1677
    %v2240 = vunpack.c.h.b16 %v1677
    %v2241 = vunpack.c.l.b16 %v1678
    %v2242 = vunpack.c.h.b16 %v1678
    %v2243 = vunpack.c.l.b16 %v1679
    %v2244 = vunpack.c.h.b16 %v1679
    %v2245 = vunpack.c.l.b16 %v1680
    %v2246 = vunpack.c.h.b16 %v1680
    %v2247 = vunpack.c.l.b16 %v1681
    %v2248 = vunpack.c.h.b16 %v1681
    %v2249 = vunpack.c.l.b16 %v1682
    %v2250 = vunpack.c.h.b16 %v1682
    %v2251 = vunpack.c.l.b16 %v1683
    %v2252 = vunpack.c.h.b16 %v1683
    %v2253 = vunpack.c.l.b16 %v1684
    %v2254 = vunpack.c.h.b16 %v1684
    %v2255 = vunpack.c.l.b16 %v1685
    %v2256 = vunpack.c.h.b16 %v1685
    %v2257 = vunpack.c.l.b16 %v1686
    %v2258 = vunpack.c.h.b16 %v1686
    %v2259 = vunpack.c.l.b16 %v1687
    %v2260 = vunpack.c.h.b16 %v1687
    %v2261 = vunpack.c.l.b16 %v1688
    %v2262 = vunpack.c.h.b16 %v1688
    %v2263 = vunpack.c.l.b16 %v1689
    %v2264 = vunpack.c.h.b16 %v1689
    %v2265 = vunpack.c.l.b16 %v1690
    %v2266 = vunpack.c.h.b16 %v1690
    %v2267 = vunpack.c.l.b16 %v1691
    %v2268 = vunpack.c.h.b16 %v1691
    %v2269 = vunpack.c.l.b16 %v1692
    %v2270 = vunpack.c.h.b16 %v1692
    %v2271 = vunpack.c.l.b16 %v1693
    %v2272 = vunpack.c.h.b16 %v1693
    %v2273 = vunpack.c.l.b16 %v1694
    %v2274 = vunpack.c.h.b16 %v1694
    %v2275 = vunpack.c.l.b16 %v1695
    %v2276 = vunpack.c.h.b16 %v1695
    %v2277 = vunpack.c.l.b16 %v1696
    %v2278 = vunpack.c.h.b16 %v1696
    %v2279 = vunpack.c.l.b16 %v1697
    %v2280 = vunpack.c.h.b16 %v1697
    %v2281 = vunpack.c.l.b16 %v1698
    %v2282 = vunpack.c.h.b16 %v1698
    %v2283 = vunpack.c.l.b16 %v1699
    %v2284 = vunpack.c.h.b16 %v1699
    %v2285 = vunpack.c.l.b16 %v1700
    %v2286 = vunpack.c.h.b16 %v1700
    %v2287 = vunpack.c.l.b16 %v1701
    %v2288 = vunpack.c.h.b16 %v1701
    %v2289 = vunpack.c.l.b16 %v1702
    %v2290 = vunpack.c.h.b16 %v1702
    %v2291 = vunpack.c.l.b16 %v1703
    %v2292 = vunpack.c.h.b16 %v1703
    %v2293 = vunpack.c.l.b16 %v1704
    %v2294 = vunpack.c.h.b16 %v1704
    %v2295 = vunpack.c.l.b16 %v1705
    %v2296 = vunpack.c.h.b16 %v1705
    %v2297 = vunpack.c.l.b16 %v1706
    %v2298 = vunpack.c.h.b16 %v1706
    %v2299 = vunpack.c.l.b16 %v1707
    %v2300 = vunpack.c.h.b16 %v1707
    %v2301 = vunpack.c.l.b16 %v1708
    %v2302 = vunpack.c.h.b16 %v1708
    %v2303 = vunpack.c.l.b16 %v1709
    %v2304 = vunpack.c.h.b16 %v1709
    %v2305 = vunpack.c.l.b16 %v1710
    %v2306 = vunpack.c.h.b16 %v1710
    %v2307 = vunpack.c.l.b16 %v1711
    %v2308 = vunpack.c.h.b16 %v1711
    %v2309 = vunpack.c.l.b16 %v1712
    %v2310 = vunpack.c.h.b16 %v1712
    %v2311 = vunpack.c.l.b16 %v1713
    %v2312 = vunpack.c.h.b16 %v1713
    %v2313 = vunpack.c.l.b16 %v1714
    %v2314 = vunpack.c.h.b16 %v1714
    %v2315 = vunpack.c.l.b16 %v1715
    %v2316 = vunpack.c.h.b16 %v1715
    %v2317 = vunpack.c.l.b16 %v1716
    %v2318 = vunpack.c.h.b16 %v1716
    %v2319 = vunpack.c.l.b16 %v1717
    %v2320 = vunpack.c.h.b16 %v1717
    %v2321 = vunpack.c.l.b16 %v1718
    %v2322 = vunpack.c.h.b16 %v1718
    %v2323 = vunpack.c.l.b16 %v1719
    %v2324 = vunpack.c.h.b16 %v1719
    %v2325 = vunpack.c.l.b16 %v1720
    %v2326 = vunpack.c.h.b16 %v1720
    %v2327 = vunpack.c.l.b16 %v1721
    %v2328 = vunpack.c.h.b16 %v1721
    %v2329 = vunpack.c.l.b16 %v1722
    %v2330 = vunpack.c.h.b16 %v1722
    %v2331 = vunpack.c.l.b16 %v1723
    %v2332 = vunpack.c.h.b16 %v1723
    %v2333 = vunpack.c.l.b16 %v1724
    %v2334 = vunpack.c.h.b16 %v1724
    %v2335 = vunpack.c.l.b16 %v1725
    %v2336 = vunpack.c.h.b16 %v1725
    %v2337 = vunpack.c.l.b16 %v1726
    %v2338 = vunpack.c.h.b16 %v1726
    %v2339 = vunpack.c.l.b16 %v1727
    %v2340 = vunpack.c.h.b16 %v1727
    %v2341 = vunpack.c.l.b16 %v1728
    %v2342 = vunpack.c.h.b16 %v1728
    %v2343 = vunpack.c.l.b16 %v1729
    %v2344 = vunpack.c.h.b16 %v1729
    %v2345 = vunpack.c.l.b16 %v1730
    %v2346 = vunpack.c.h.b16 %v1730
    %v2347 = vunpack.c.l.b16 %v1731
    %v2348 = vunpack.c.h.b16 %v1731
    %v2349 = vunpack.c.l.b16 %v1732
    %v2350 = vunpack.c.h.b16 %v1732
    %v2351 = vunpack.c.l.b16 %v1733
    %v2352 = vunpack.c.h.b16 %v1733
    %v2353 = vunpack.c.l.b16 %v1734
    %v2354 = vunpack.c.h.b16 %v1734
    %v2355 = vunpack.c.l.b16 %v1735
    %v2356 = vunpack.c.h.b16 %v1735
    %v2357 = vunpack.c.l.b16 %v1736
    %v2358 = vunpack.c.h.b16 %v1736
    %v2359 = vunpack.c.l.b16 %v1737
    %v2360 = vunpack.c.h.b16 %v1737
    %v2361 = vunpack.c.l.b16 %v1738
    %v2362 = vunpack.c.h.b16 %v1738
    %v2363 = vunpack.c.l.b16 %v1739
    %v2364 = vunpack.c.h.b16 %v1739
    %v2365 = vunpack.c.l.b16 %v1740
    %v2366 = vunpack.c.h.b16 %v1740
    %v2367 = vunpack.c.l.b16 %v1741
    %v2368 = vunpack.c.h.b16 %v1741
    %v2369 = vunpack.c.l.b16 %v1742
    %v2370 = vunpack.c.h.b16 %v1742
    %v2371 = vunpack.c.l.b16 %v1743
    %v2372 = vunpack.c.h.b16 %v1743
    %v2373 = vunpack.c.l.b16 %v1744
    %v2374 = vunpack.c.h.b16 %v1744
    %v2375 = vunpack.c.l.b16 %v1745
    %v2376 = vunpack.c.h.b16 %v1745
    %v2377 = vunpack.c.l.b16 %v1746
    %v2378 = vunpack.c.h.b16 %v1746
    %v2379 = vunpack.c.l.b16 %v1747
    %v2380 = vunpack.c.h.b16 %v1747
    %v2381 = vunpack.c.l.b16 %v1748
    %v2382 = vunpack.c.h.b16 %v1748
    %v2383 = vunpack.c.l.b16 %v1749
    %v2384 = vunpack.c.h.b16 %v1749
    %v2385 = vunpack.c.l.b16 %v1750
    %v2386 = vunpack.c.h.b16 %v1750
    %v2387 = vunpack.c.l.b16 %v1751
    %v2388 = vunpack.c.h.b16 %v1751
    %v2389 = vunpack.c.l.b16 %v1752
    %v2390 = vunpack.c.h.b16 %v1752
    %v2391 = vunpack.c.l.b16 %v1753
    %v2392 = vunpack.c.h.b16 %v1753
    %v2393 = vunpack.c.l.b16 %v1754
    %v2394 = vunpack.c.h.b16 %v1754
    %v2395 = vunpack.c.l.b16 %v1755
    %v2396 = vunpack.c.h.b16 %v1755
    %v2397 = vunpack.c.l.b16 %v1756
    %v2398 = vunpack.c.h.b16 %v1756
    %v2399 = vunpack.c.l.b16 %v1757
    %v2400 = vunpack.c.h.b16 %v1757
    %v2401 = vunpack.c.l.b16 %v1758
    %v2402 = vunpack.c.h.b16 %v1758
    %v2403 = vunpack.c.l.b16 %v1759
    %v2404 = vunpack.c.h.b16 %v1759
    %v2405 = vunpack.c.l.b16 %v1760
    %v2406 = vunpack.c.h.b16 %v1760
    %v2407 = vunpack.c.l.b16 %v1761
    %v2408 = vunpack.c.h.b16 %v1761
    %v2409 = vunpack.c.l.b16 %v1762
    %v2410 = vunpack.c.h.b16 %v1762
    %v2411 = vunpack.c.l.b16 %v1763
    %v2412 = vunpack.c.h.b16 %v1763
    %v2413 = vunpack.c.l.b16 %v1764
    %v2414 = vunpack.c.h.b16 %v1764
    %v2415 = vunpack.c.l.b16 %v1765
    %v2416 = vunpack.c.h.b16 %v1765
    %v2417 = vunpack.c.l.b16 %v1766
    %v2418 = vunpack.c.h.b16 %v1766
    %v2419 = vunpack.c.l.b16 %v1767
    %v2420 = vunpack.c.h.b16 %v1767
    %v2421 = vunpack.c.l.b16 %v1768
    %v2422 = vunpack.c.h.b16 %v1768
    %v2423 = vunpack.c.l.b16 %v1769
    %v2424 = vunpack.c.h.b16 %v1769
    %v2425 = vunpack.c.l.b16 %v1770
    %v2426 = vunpack.c.h.b16 %v1770
    %v2427 = vunpack.c.l.b16 %v1771
    %v2428 = vunpack.c.h.b16 %v1771
    %v2429 = vunpack.c.l.b16 %v1772
    %v2430 = vunpack.c.h.b16 %v1772
    %v2431 = vunpack.c.l.b16 %v1773
    %v2432 = vunpack.c.h.b16 %v1773
    %v2433 = vunpack.c.l.b16 %v1774
    %v2434 = vunpack.c.h.b16 %v1774
    %v2435 = vunpack.c.l.b16 %v1775
    %v2436 = vunpack.c.h.b16 %v1775
    %v2437 = vunpack.c.l.b16 %v1776
    %v2438 = vunpack.c.h.b16 %v1776
    %v2439 = vunpack.c.l.b16 %v1777
    %v2440 = vunpack.c.h.b16 %v1777
    %v2441 = vunpack.c.l.b16 %v1778
    %v2442 = vunpack.c.h.b16 %v1778
    %v2443 = vunpack.c.l.b16 %v1779
    %v2444 = vunpack.c.h.b16 %v1779
    %v2445 = vunpack.c.l.b16 %v1780
    %v2446 = vunpack.c.h.b16 %v1780
    %v2447 = vunpack.c.l.b16 %v1781
    %v2448 = vunpack.c.h.b16 %v1781
    %v2449 = vunpack.c.l.b16 %v1782
    %v2450 = vunpack.c.h.b16 %v1782
    %v2451 = vunpack.c.l.b16 %v1783
    %v2452 = vunpack.c.h.b16 %v1783
    %v2453 = vunpack.c.l.b16 %v1784
    %v2454 = vunpack.c.h.b16 %v1784
    %v2455 = vunpack.c.l.b16 %v1785
    %v2456 = vunpack.c.h.b16 %v1785
    %v2457 = vunpack.c.l.b16 %v1786
    %v2458 = vunpack.c.h.b16 %v1786
    %v2459 = vunpack.c.l.b16 %v1787
    %v2460 = vunpack.c.h.b16 %v1787
    %v2461 = vunpack.c.l.b16 %v1788
    %v2462 = vunpack.c.h.b16 %v1788
    %v2463 = vunpack.c.l.b16 %v1789
    %v2464 = vunpack.c.h.b16 %v1789
    %v2465 = vunpack.c.l.b16 %v1790
    %v2466 = vunpack.c.h.b16 %v1790
    %v2467 = vunpack.c.l.b16 %v1791
    %v2468 = vunpack.c.h.b16 %v1791
    %v2469 = vunpack.c.l.b16 %v1792
    %v2470 = vunpack.c.h.b16 %v1792
    %v2471 = vunpack.c.l.b16 %v1793
    %v2472 = vunpack.c.h.b16 %v1793
    %v2473 = vunpack.c.l.b16 %v1794
    %v2474 = vunpack.c.h.b16 %v1794
    %v2475 = vunpack.c.l.b16 %v1795
    %v2476 = vunpack.c.h.b16 %v1795
    %v2477 = vunpack.c.l.b16 %v1796
    %v2478 = vunpack.c.h.b16 %v1796
    %v2479 = vunpack.c.l.b16 %v1797
    %v2480 = vunpack.c.h.b16 %v1797
    %v2481 = vunpack.c.l.b16 %v1798
    %v2482 = vunpack.c.h.b16 %v1798
    %v2483 = vunpack.c.l.b16 %v1799
    %v2484 = vunpack.c.h.b16 %v1799
    %v2485 = vunpack.c.l.b16 %v1800
    %v2486 = vunpack.c.h.b16 %v1800
    %v2487 = vunpack.c.l.b16 %v1801
    %v2488 = vunpack.c.h.b16 %v1801
    %v2489 = vunpack.c.l.b16 %v1802
    %v2490 = vunpack.c.h.b16 %v1802
    %v2491 = vunpack.c.l.b16 %v1803
    %v2492 = vunpack.c.h.b16 %v1803
    %v2493 = vunpack.c.l.b16 %v1804
    %v2494 = vunpack.c.h.b16 %v1804
    %v2495 = vunpack.c.l.b16 %v1805
    %v2496 = vunpack.c.h.b16 %v1805
    %v2497 = vunpack.c.l.b16 %v1806
    %v2498 = vunpack.c.h.b16 %v1806
    %v2499 = vunpack.c.l.b16 %v1807
    %v2500 = vunpack.c.h.b16 %v1807
    %v2501 = vunpack.c.l.b16 %v1808
    %v2502 = vunpack.c.h.b16 %v1808
    %v2503 = vunpack.c.l.b16 %v1809
    %v2504 = vunpack.c.h.b16 %v1809
    %v2505 = vunpack.c.l.b16 %v1810
    %v2506 = vunpack.c.h.b16 %v1810
    %v2507 = vunpack.c.l.b16 %v1811
    %v2508 = vunpack.c.h.b16 %v1811
    %v2509 = vunpack.c.l.b16 %v1812
    %v2510 = vunpack.c.h.b16 %v1812
    %v2511 = vunpack.c.l.b16 %v1813
    %v2512 = vunpack.c.h.b16 %v1813
    %v2513 = vunpack.c.l.b16 %v1814
    %v2514 = vunpack.c.h.b16 %v1814
    %v2515 = vunpack.c.l.b16 %v1815
    %v2516 = vunpack.c.h.b16 %v1815
    %v2517 = vunpack.c.l.b16 %v1816
    %v2518 = vunpack.c.h.b16 %v1816
    %v2519 = vunpack.c.l.b16 %v1817
    %v2520 = vunpack.c.h.b16 %v1817
    %v2521 = vunpack.c.l.b16 %v1818
    %v2522 = vunpack.c.h.b16 %v1818
    %v2523 = vunpack.c.l.b16 %v1819
    %v2524 = vunpack.c.h.b16 %v1819
    %v2525 = vunpack.c.l.b16 %v1820
    %v2526 = vunpack.c.h.b16 %v1820
    %v2527 = vunpack.c.l.b16 %v1821
    %v2528 = vunpack.c.h.b16 %v1821
    %v2529 = vunpack.c.l.b16 %v1822
    %v2530 = vunpack.c.h.b16 %v1822
    %v2531 = vunpack.c.l.b16 %v1823
    %v2532 = vunpack.c.h.b16 %v1823
    %v2533 = vunpack.c.l.b16 %v1824
    %v2534 = vunpack.c.h.b16 %v1824
    %v2535 = vunpack.c.l.b16 %v1825
    %v2536 = vunpack.c.h.b16 %v1825
    %v2537 = vunpack.c.l.b16 %v1826
    %v2538 = vunpack.c.h.b16 %v1826
    %v2539 = vunpack.c.l.b16 %v1827
    %v2540 = vunpack.c.h.b16 %v1827
    %v2541 = vunpack.c.l.b16 %v1828
    %v2542 = vunpack.c.h.b16 %v1828
    %v2543 = vunpack.c.l.b16 %v1829
    %v2544 = vunpack.c.h.b16 %v1829
    %v2545 = vunpack.c.l.b16 %v1830
    %v2546 = vunpack.c.h.b16 %v1830
    %v2547 = vunpack.c.l.b16 %v1831
    %v2548 = vunpack.c.h.b16 %v1831
    %v2549 = vunpack.c.l.b16 %v1832
    %v2550 = vunpack.c.h.b16 %v1832
    %v2551 = vunpack.c.l.b16 %v1833
    %v2552 = vunpack.c.h.b16 %v1833
    %v2553 = vunpack.c.l.b16 %v1834
    %v2554 = vunpack.c.h.b16 %v1834
    %v2555 = vunpack.c.l.b16 %v1835
    %v2556 = vunpack.c.h.b16 %v1835
    %v2557 = vunpack.c.l.b16 %v1836
    %v2558 = vunpack.c.h.b16 %v1836
    %v2559 = vunpack.c.l.b16 %v1837
    %v2560 = vunpack.c.h.b16 %v1837
    %v2561 = vunpack.c.l.b16 %v1838
    %v2562 = vunpack.c.h.b16 %v1838
    %v2563 = vunpack.c.l.b16 %v1839
    %v2564 = vunpack.c.h.b16 %v1839
    %v2565 = vunpack.c.l.b16 %v1840
    %v2566 = vunpack.c.h.b16 %v1840
    %v2567 = vunpack.c.l.b16 %v1841
    %v2568 = vunpack.c.h.b16 %v1841
    %v2569 = vunpack.c.l.b16 %v1842
    %v2570 = vunpack.c.h.b16 %v1842
    %v2571 = vunpack.c.l.b16 %v1843
    %v2572 = vunpack.c.h.b16 %v1843
    %v2573 = vunpack.c.l.b16 %v1844
    %v2574 = vunpack.c.h.b16 %v1844
    %v2575 = vunpack.c.l.b16 %v1845
    %v2576 = vunpack.c.h.b16 %v1845
    %v2577 = vunpack.c.l.b16 %v1846
    %v2578 = vunpack.c.h.b16 %v1846
    %v2579 = vunpack.c.l.b16 %v1847
    %v2580 = vunpack.c.h.b16 %v1847
    %v2581 = vunpack.c.l.b16 %v1848
    %v2582 = vunpack.c.h.b16 %v1848
    %v2583 = vunpack.c.l.b16 %v1849
    %v2584 = vunpack.c.h.b16 %v1849
    %v2585 = vunpack.c.l.b16 %v1850
    %v2586 = vunpack.c.h.b16 %v1850
    %v2587 = vunpack.c.l.b16 %v1851
    %v2588 = vunpack.c.h.b16 %v1851
    %v2589 = vunpack.c.l.b16 %v1852
    %v2590 = vunpack.c.h.b16 %v1852
    %v2591 = vunpack.c.l.b16 %v1853
    %v2592 = vunpack.c.h.b16 %v1853
    %v2593 = vunpack.c.l.b16 %v1854
    %v2594 = vunpack.c.h.b16 %v1854
    %v2595 = vunpack.c.l.b16 %v1855
    %v2596 = vunpack.c.h.b16 %v1855
    %v2597 = vunpack.c.l.b16 %v1856
    %v2598 = vunpack.c.h.b16 %v1856
    %v2599 = vunpack.c.l.b16 %v1857
    %v2600 = vunpack.c.h.b16 %v1857
    %v2601 = vunpack.c.l.b16 %v1858
    %v2602 = vunpack.c.h.b16 %v1858
    %v2603 = vunpack.c.l.b16 %v1859
    %v2604 = vunpack.c.h.b16 %v1859
    %v2605 = vunpack.c.l.b16 %v1860
    %v2606 = vunpack.c.h.b16 %v1860
    %v2607 = vunpack.c.l.b16 %v1861
    %v2608 = vunpack.c.h.b16 %v1861
    %v2609 = vunpack.c.l.b16 %v1862
    %v2610 = vunpack.c.h.b16 %v1862
    %v2611 = vunpack.c.l.b16 %v1863
    %v2612 = vunpack.c.h.b16 %v1863
    %v2613 = vunpack.c.l.b16 %v1864
    %v2614 = vunpack.c.h.b16 %v1864
    %v2615 = vunpack.c.l.b16 %v1865
    %v2616 = vunpack.c.h.b16 %v1865
    %v2617 = vunpack.c.l.b16 %v1866
    %v2618 = vunpack.c.h.b16 %v1866
    %v2619 = vunpack.c.l.b16 %v1867
    %v2620 = vunpack.c.h.b16 %v1867
    %v2621 = vunpack.c.l.b16 %v1868
    %v2622 = vunpack.c.h.b16 %v1868
    %v2623 = vunpack.c.l.b16 %v1869
    %v2624 = vunpack.c.h.b16 %v1869
    %v2625 = vunpack.c.l.b16 %v1870
    %v2626 = vunpack.c.h.b16 %v1870
    %v2627 = vunpack.c.l.b16 %v1871
    %v2628 = vunpack.c.h.b16 %v1871
    %v2629 = vunpack.c.l.b16 %v1872
    %v2630 = vunpack.c.h.b16 %v1872
    %v2631 = vunpack.c.l.b16 %v1873
    %v2632 = vunpack.c.h.b16 %v1873
    %v2633 = vunpack.c.l.b16 %v1874
    %v2634 = vunpack.c.h.b16 %v1874
    %v2635 = vunpack.c.l.b16 %v1875
    %v2636 = vunpack.c.h.b16 %v1875
    %v2637 = vunpack.c.l.b16 %v1876
    %v2638 = vunpack.c.h.b16 %v1876
    %v2639 = vunpack.c.l.b16 %v1877
    %v2640 = vunpack.c.h.b16 %v1877
    %v2641 = vunpack.c.l.b16 %v1878
    %v2642 = vunpack.c.h.b16 %v1878
    %v2643 = vunpack.c.l.b16 %v1879
    %v2644 = vunpack.c.h.b16 %v1879
    %v2645 = vunpack.c.l.b16 %v1880
    %v2646 = vunpack.c.h.b16 %v1880
    %v2647 = vunpack.c.l.b16 %v1881
    %v2648 = vunpack.c.h.b16 %v1881
    %v2649 = vunpack.c.l.b16 %v1882
    %v2650 = vunpack.c.h.b16 %v1882
    %v2651 = vunpack.c.l.b16 %v1883
    %v2652 = vunpack.c.h.b16 %v1883
    %v2653 = vunpack.c.l.b16 %v1884
    %v2654 = vunpack.c.h.b16 %v1884
    %v2655 = vunpack.c.l.b16 %v1885
    %v2656 = vunpack.c.h.b16 %v1885
    %v2657 = vunpack.c.l.b16 %v1886
    %v2658 = vunpack.c.h.b16 %v1886
    %v2659 = vunpack.c.l.b16 %v1887
    %v2660 = vunpack.c.h.b16 %v1887
    %v2661 = vunpack.c.l.b16 %v1888
    %v2662 = vunpack.c.h.b16 %v1888
    %v2663 = vunpack.c.l.b16 %v1889
    %v2664 = vunpack.c.h.b16 %v1889
    %v2665 = vunpack.c.l.b16 %v1890
    %v2666 = vunpack.c.h.b16 %v1890
    %v2667 = vunpack.c.l.b16 %v1891
    %v2668 = vunpack.c.h.b16 %v1891
    %v2669 = vunpack.c.l.b16 %v1892
    %v2670 = vunpack.c.h.b16 %v1892
    %v2671 = vunpack.c.l.b16 %v1893
    %v2672 = vunpack.c.h.b16 %v1893
    %v2673 = vunpack.c.l.b16 %v1894
    %v2674 = vunpack.c.h.b16 %v1894
    %v2675 = vunpack.c.l.b16 %v1895
    %v2676 = vunpack.c.h.b16 %v1895
    %v2677 = vunpack.c.l.b16 %v1896
    %v2678 = vunpack.c.h.b16 %v1896
    %v2679 = vunpack.c.l.b16 %v1897
    %v2680 = vunpack.c.h.b16 %v1897
    %v2681 = vunpack.c.l.b16 %v1898
    %v2682 = vunpack.c.h.b16 %v1898
    %v2683 = vunpack.c.l.b16 %v1899
    %v2684 = vunpack.c.h.b16 %v1899
    %v2685 = vunpack.c.l.b16 %v1900
    %v2686 = vunpack.c.h.b16 %v1900
    %v2687 = vunpack.c.l.b16 %v1901
    %v2688 = vunpack.c.h.b16 %v1901
    %v2689 = vunpack.c.l.b16 %v1902
    %v2690 = vunpack.c.h.b16 %v1902
    %v2691 = vunpack.c.l.b16 %v1903
    %v2692 = vunpack.c.h.b16 %v1903
    %v2693 = vunpack.c.l.b16 %v1904
    %v2694 = vunpack.c.h.b16 %v1904
    %v2695 = vpack.c.b16 %v2187, %v2183
    %v2696 = vpack.c.b16 %v2188, %v2184
    %v2697 = vpack.c.b16 %v2189, %v2185
    %v2698 = vpack.c.b16 %v2190, %v2186
    %v2699 = vpack.c.b16 %v2195, %v2191
    %v2700 = vpack.c.b16 %v2196, %v2192
    %v2701 = vpack.c.b16 %v2197, %v2193
    %v2702 = vpack.c.b16 %v2198, %v2194
    %v2703 = vpack.c.b16 %v2203, %v2199
    %v2704 = vpack.c.b16 %v2204, %v2200
    %v2705 = vpack.c.b16 %v2205, %v2201
    %v2706 = vpack.c.b16 %v2206, %v2202
    %v2707 = vpack.c.b16 %v2211, %v2207
    %v2708 = vpack.c.b16 %v2212, %v2208
    %v2709 = vpack.c.b16 %v2213, %v2209
    %v2710 = vpack.c.b16 %v2214, %v2210
    %v2711 = vpack.c.b16 %v2219, %v2215
    %v2712 = vpack.c.b16 %v2220, %v2216
    %v2713 = vpack.c.b16 %v2221, %v2217
    %v2714 = vpack.c.b16 %v2222, %v2218
    %v2715 = vpack.c.b16 %v2227, %v2223
    %v2716 = vpack.c.b16 %v2228, %v2224
    %v2717 = vpack.c.b16 %v2229, %v2225
    %v2718 = vpack.c.b16 %v2230, %v2226
    %v2719 = vpack.c.b16 %v2235, %v2231
    %v2720 = vpack.c.b16 %v2236, %v2232
    %v2721 = vpack.c.b16 %v2237, %v2233
    %v2722 = vpack.c.b16 %v2238, %v2234
    %v2723 = vpack.c.b16 %v2243, %v2239
    %v2724 = vpack.c.b16 %v2244, %v2240
    %v2725 = vpack.c.b16 %v2245, %v2241
    %v2726 = vpack.c.b16 %v2246, %v2242
    %v2727 = vpack.c.b16 %v2251, %v2247
    %v2728 = vpack.c.b16 %v2252, %v2248
    %v2729 = vpack.c.b16 %v2253, %v2249
    %v2730 = vpack.c.b16 %v2254, %v2250
    %v2731 = vpack.c.b16 %v2259, %v2255
    %v2732 = vpack.c.b16 %v2260, %v2256
    %v2733 = vpack.c.b16 %v2261, %v2257
    %v2734 = vpack.c.b16 %v2262, %v2258
    %v2735 = vpack.c.b16 %v2267, %v2263
    %v2736 = vpack.c.b16 %v2268, %v2264
    %v2737 = vpack.c.b16 %v2269, %v2265
    %v2738 = vpack.c.b16 %v2270, %v2266
    %v2739 = vpack.c.b16 %v2275, %v2271
    %v2740 = vpack.c.b16 %v2276, %v2272
    %v2741 = vpack.c.b16 %v2277, %v2273
    %v2742 = vpack.c.b16 %v2278, %v2274
    %v2743 = vpack.c.b16 %v2283, %v2279
    %v2744 = vpack.c.b16 %v2284, %v2280
    %v2745 = vpack.c.b16 %v2285, %v2281
    %v2746 = vpack.c.b16 %v2286, %v2282
    %v2747 = vpack.c.b16 %v2291, %v2287
    %v2748 = vpack.c.b16 %v2292, %v2288
    %v2749 = vpack.c.b16 %v2293, %v2289
    %v2750 = vpack.c.b16 %v2294, %v2290
    %v2751 = vpack.c.b16 %v2299, %v2295
    %v2752 = vpack.c.b16 %v2300, %v2296
    %v2753 = vpack.c.b16 %v2301, %v2297
    %v2754 = vpack.c.b16 %v2302, %v2298
    %v2755 = vpack.c.b16 %v2307, %v2303
    %v2756 = vpack.c.b16 %v2308, %v2304
    %v2757 = vpack.c.b16 %v2309, %v2305
    %v2758 = vpack.c.b16 %v2310, %v2306
    %v2759 = vpack.c.b16 %v2315, %v2311
    %v2760 = vpack.c.b16 %v2316, %v2312
    %v2761 = vpack.c.b16 %v2317, %v2313
    %v2762 = vpack.c.b16 %v2318, %v2314
    %v2763 = vpack.c.b16 %v2323, %v2319
    %v2764 = vpack.c.b16 %v2324, %v2320
    %v2765 = vpack.c.b16 %v2325, %v2321
    %v2766 = vpack.c.b16 %v2326, %v2322
    %v2767 = vpack.c.b16 %v2331, %v2327
    %v2768 = vpack.c.b16 %v2332, %v2328
    %v2769 = vpack.c.b16 %v2333, %v2329
    %v2770 = vpack.c.b16 %v2334, %v2330
    %v2771 = vpack.c.b16 %v2339, %v2335
    %v2772 = vpack.c.b16 %v2340, %v2336
    %v2773 = vpack.c.b16 %v2341, %v2337
    %v2774 = vpack.c.b16 %v2342, %v2338
    %v2775 = vpack.c.b16 %v2347, %v2343
    %v2776 = vpack.c.b16 %v2348, %v2344
    %v2777 = vpack.c.b16 %v2349, %v2345
    %v2778 = vpack.c.b16 %v2350, %v2346
    %v2779 = vpack.c.b16 %v2355, %v2351
    %v2780 = vpack.c.b16 %v2356, %v2352
    %v2781 = vpack.c.b16 %v2357, %v2353
    %v2782 = vpack.c.b16 %v2358, %v2354
    %v2783 = vpack.c.b16 %v2363, %v2359
    %v2784 = vpack.c.b16 %v2364, %v2360
    %v2785 = vpack.c.b16 %v2365, %v2361
    %v2786 = vpack.c.b16 %v2366, %v2362
    %v2787 = vpack.c.b16 %v2371, %v2367
    %v2788 = vpack.c.b16 %v2372, %v2368
    %v2789 = vpack.c.b16 %v2373, %v2369
    %v2790 = vpack.c.b16 %v2374, %v2370
    %v2791 = vpack.c.b16 %v2379, %v2375
    %v2792 = vpack.c.b16 %v2380, %v2376
    %v2793 = vpack.c.b16 %v2381, %v2377
    %v2794 = vpack.c.b16 %v2382, %v2378
    %v2795 = vpack.c.b16 %v2387, %v2383
    %v2796 = vpack.c.b16 %v2388, %v2384
    %v2797 = vpack.c.b16 %v2389, %v2385
    %v2798 = vpack.c.b16 %v2390, %v2386
    %v2799 = vpack.c.b16 %v2395, %v2391
    %v2800 = vpack.c.b16 %v2396, %v2392
    %v2801 = vpack.c.b16 %v2397, %v2393
    %v2802 = vpack.c.b16 %v2398, %v2394
    %v2803 = vpack.c.b16 %v2403, %v2399
    %v2804 = vpack.c.b16 %v2404, %v2400
    %v2805 = vpack.c.b16 %v2405, %v2401
    %v2806 = vpack.c.b16 %v2406, %v2402
    %v2807 = vpack.c.b16 %v2411, %v2407
    %v2808 = vpack.c.b16 %v2412, %v2408
    %v2809 = vpack.c.b16 %v2413, %v2409
    %v2810 = vpack.c.b16 %v2414, %v2410
    %v2811 = vpack.c.b16 %v2419, %v2415
    %v2812 = vpack.c.b16 %v2420, %v2416
    %v2813 = vpack.c.b16 %v2421, %v2417
    %v2814 = vpack.c.b16 %v2422, %v2418
    %v2815 = vpack.c.b16 %v2427, %v2423
    %v2816 = vpack.c.b16 %v2428, %v2424
    %v2817 = vpack.c.b16 %v2429, %v2425
    %v2818 = vpack.c.b16 %v2430, %v2426
    %v2819 = vpack.c.b16 %v2435, %v2431
    %v2820 = vpack.c.b16 %v2436, %v2432
    %v2821 = vpack.c.b16 %v2437, %v2433
    %v2822 = vpack.c.b16 %v2438, %v2434
    %v2823 = vpack.c.b16 %v2443, %v2439
    %v2824 = vpack.c.b16 %v2444, %v2440
    %v2825 = vpack.c.b16 %v2445, %v2441
    %v2826 = vpack.c.b16 %v2446, %v2442
    %v2827 = vpack.c.b16 %v2451, %v2447
    %v2828 = vpack.c.b16 %v2452, %v2448
    %v2829 = vpack.c.b16 %v2453, %v2449
    %v2830 = vpack.c.b16 %v2454, %v2450
    %v2831 = vpack.c.b16 %v2459, %v2455
    %v2832 = vpack.c.b16 %v2460, %v2456
    %v2833 = vpack.c.b16 %v2461, %v2457
    %v2834 = vpack.c.b16 %v2462, %v2458
    %v2835 = vpack.c.b16 %v2467, %v2463
    %v2836 = vpack.c.b16 %v2468, %v2464
    %v2837 = vpack.c.b16 %v2469, %v2465
    %v2838 = vpack.c.b16 %v2470, %v2466
    %v2839 = vpack.c.b16 %v2475, %v2471
    %v2840 = vpack.c.b16 %v2476, %v2472
    %v2841 = vpack.c.b16 %v2477, %v2473
    %v2842 = vpack.c.b16 %v2478, %v2474
    %v2843 = vpack.c.b16 %v2483, %v2479
    %v2844 = vpack.c.b16 %v2484, %v2480
    %v2845 = vpack.c.b16 %v2485, %v2481
    %v2846 = vpack.c.b16 %v2486, %v2482
    %v2847 = vpack.c.b16 %v2491, %v2487
    %v2848 = vpack.c.b16 %v2492, %v2488
    %v2849 = vpack.c.b16 %v2493, %v2489
    %v2850 = vpack.c.b16 %v2494, %v2490
    %v2851 = vpack.c.b16 %v2499, %v2495
    %v2852 = vpack.c.b16 %v2500, %v2496
    %v2853 = vpack.c.b16 %v2501, %v2497
    %v2854 = vpack.c.b16 %v2502, %v2498
    %v2855 = vpack.c.b16 %v2507, %v2503
    %v2856 = vpack.c.b16 %v2508, %v2504
    %v2857 = vpack.c.b16 %v2509, %v2505
    %v2858 = vpack.c.b16 %v2510, %v2506
    %v2859 = vpack.c.b16 %v2515, %v2511
    %v2860 = vpack.c.b16 %v2516, %v2512
    %v2861 = vpack.c.b16 %v2517, %v2513
    %v2862 = vpack.c.b16 %v2518, %v2514
    %v2863 = vpack.c.b16 %v2523, %v2519
    %v2864 = vpack.c.b16 %v2524, %v2520
    %v2865 = vpack.c.b16 %v2525, %v2521
    %v2866 = vpack.c.b16 %v2526, %v2522
    %v2867 = vpack.c.b16 %v2531, %v2527
    %v2868 = vpack.c.b16 %v2532, %v2528
    %v2869 = vpack.c.b16 %v2533, %v2529
    %v2870 = vpack.c.b16 %v2534, %v2530
    %v2871 = vpack.c.b16 %v2539, %v2535
    %v2872 = vpack.c.b16 %v2540, %v2536
    %v2873 = vpack.c.b16 %v2541, %v2537
    %v2874 = vpack.c.b16 %v2542, %v2538
    %v2875 = vpack.c.b16 %v2547, %v2543
    %v2876 = vpack.c.b16 %v2548, %v2544
    %v2877 = vpack.c.b16 %v2549, %v2545
    %v2878 = vpack.c.b16 %v2550, %v2546
    %v2879 = vpack.c.b16 %v2555, %v2551
    %v2880 = vpack.c.b16 %v2556, %v2552
    %v2881 = vpack.c.b16 %v2557, %v2553
    %v2882 = vpack.c.b16 %v2558, %v2554
    %v2883 = vpack.c.b16 %v2563, %v2559
    %v2884 = vpack.c.b16 %v2564, %v2560
    %v2885 = vpack.c.b16 %v2565, %v2561
    %v2886 = vpack.c.b16 %v2566, %v2562
    %v2887 = vpack.c.b16 %v2571, %v2567
    %v2888 = vpack.c.b16 %v2572, %v2568
    %v2889 = vpack.c.b16 %v2573, %v2569
    %v2890 = vpack.c.b16 %v2574, %v2570
    %v2891 = vpack.c.b16 %v2579, %v2575
    %v2892 = vpack.c.b16 %v2580, %v2576
    %v2893 = vpack.c.b16 %v2581, %v2577
    %v2894 = vpack.c.b16 %v2582, %v2578
    %v2895 = vpack.c.b16 %v2587, %v2583
    %v2896 = vpack.c.b16 %v2588, %v2584
    %v2897 = vpack.c.b16 %v2589, %v2585
    %v2898 = vpack.c.b16 %v2590, %v2586
    %v2899 = vpack.c.b16 %v2595, %v2591
    %v2900 = vpack.c.b16 %v2596, %v2592
    %v2901 = vpack.c.b16 %v2597, %v2593
    %v2902 = vpack.c.b16 %v2598, %v2594
    %v2903 = vpack.c.b16 %v2603, %v2599
    %v2904 = vpack.c.b16 %v2604, %v2600
    %v2905 = vpack.c.b16 %v2605, %v2601
    %v2906 = vpack.c.b16 %v2606, %v2602
    %v2907 = vpack.c.b16 %v2611, %v2607
    %v2908 = vpack.c.b16 %v2612, %v2608
    %v2909 = vpack.c.b16 %v2613, %v2609
    %v2910 = vpack.c.b16 %v2614, %v2610
    %v2911 = vpack.c.b16 %v2619, %v2615
    %v2912 = vpack.c.b16 %v2620, %v2616
    %v2913 = vpack.c.b16 %v2621, %v2617
    %v2914 = vpack.c.b16 %v2622, %v2618
    %v2915 = vpack.c.b16 %v2627, %v2623
    %v2916 = vpack.c.b16 %v2628, %v2624
    %v2917 = vpack.c.b16 %v2629, %v2625
    %v2918 = vpack.c.b16 %v2630, %v2626
    %v2919 = vpack.c.b16 %v2635, %v2631
    %v2920 = vpack.c.b16 %v2636, %v2632
    %v2921 = vpack.c.b16 %v2637, %v2633
    %v2922 = vpack.c.b16 %v2638, %v2634
    %v2923 = vpack.c.b16 %v2643, %v2639
    %v2924 = vpack.c.b16 %v2644, %v2640
    %v2925 = vpack.c.b16 %v2645, %v2641
    %v2926 = vpack.c.b16 %v2646, %v2642
    %v2927 = vpack.c.b16 %v2651, %v2647
    %v2928 = vpack.c.b16 %v2652, %v2648
    %v2929 = vpack.c.b16 %v2653, %v2649
    %v2930 = vpack.c.b16 %v2654, %v2650
    %v2931 = vpack.c.b16 %v2659, %v2655
    %v2932 = vpack.c.b16 %v2660, %v2656
    %v2933 = vpack.c.b16 %v2661, %v2657
    %v2934 = vpack.c.b16 %v2662, %v2658
    %v2935 = vpack.c.b16 %v2667, %v2663
    %v2936 = vpack.c.b16 %v2668, %v2664
    %v2937 = vpack.c.b16 %v2669, %v2665
    %v2938 = vpack.c.b16 %v2670, %v2666
    %v2939 = vpack.c.b16 %v2675, %v2671
    %v2940 = vpack.c.b16 %v2676, %v2672
    %v2941 = vpack.c.b16 %v2677, %v2673
    %v2942 = vpack.c.b16 %v2678, %v2674
    %v2943 = vpack.c.b16 %v2683, %v2679
    %v2944 = vpack.c.b16 %v2684, %v2680
    %v2945 = vpack.c.b16 %v2685, %v2681
    %v2946 = vpack.c.b16 %v2686, %v2682
    %v2947 = vpack.c.b16 %v2691, %v2687
    %v2948 = vpack.c.b16 %v2692, %v2688
    %v2949 = vpack.c.b16 %v2693, %v2689
    %v2950 = vpack.c.b16 %v2694, %v2690
    %3207 = vmatprep.subr.bf16.mxu0 %v2696
    %3208 = vmatpush1.bf16.msra.mxu0 %v2695
    %3209 = vmatprep.subr.bf16.mxu0 %v2700
    %3210 = vmatpush1.bf16.msra.mxu0 %v2699
    %3211 = vmatprep.subr.bf16.mxu0 %v2704
    %3212 = vmatpush1.bf16.msra.mxu0 %v2703
    %3213 = vmatprep.subr.bf16.mxu0 %v2708
    %3214 = vmatpush1.bf16.msra.mxu0 %v2707
    %3215 = vmatprep.subr.bf16.mxu0 %v2712
    %3216 = vmatpush1.bf16.msra.mxu0 %v2711
    %3217 = vmatprep.subr.bf16.mxu0 %v2716
    %3218 = vmatpush1.bf16.msra.mxu0 %v2715
    %3219 = vmatprep.subr.bf16.mxu0 %v2720
    %3220 = vmatpush1.bf16.msra.mxu0 %v2719
    %3221 = vmatprep.subr.bf16.mxu0 %v2724
    %3222 = vmatpush1.bf16.msra.mxu0 %v2723
    %3223 = vmatprep.subr.bf16.mxu0 %v2728
    %3224 = vmatpush1.bf16.msra.mxu0 %v2727
    %3225 = vmatprep.subr.bf16.mxu0 %v2732
    %3226 = vmatpush1.bf16.msra.mxu0 %v2731
    %3227 = vmatprep.subr.bf16.mxu0 %v2736
    %3228 = vmatpush1.bf16.msra.mxu0 %v2735
    %3229 = vmatprep.subr.bf16.mxu0 %v2740
    %3230 = vmatpush1.bf16.msra.mxu0 %v2739
    %3231 = vmatprep.subr.bf16.mxu0 %v2744
    %3232 = vmatpush1.bf16.msra.mxu0 %v2743
    %3233 = vmatprep.subr.bf16.mxu0 %v2748
    %3234 = vmatpush1.bf16.msra.mxu0 %v2747
    %3235 = vmatprep.subr.bf16.mxu0 %v2752
    %3236 = vmatpush1.bf16.msra.mxu0 %v2751
    %3237 = vmatprep.subr.bf16.mxu0 %v2756
    %3238 = vmatpush1.bf16.msra.mxu0 %v2755
    %3239 = vmatprep.mubr.bf16.mxu0 %v1586
    %3240 = vmatmul.mubr.bf16.gmra.mrb[0].mxu0 %v1585
    %v3241 = vpop.f32.mrb[0].mxu0
    %v3242 = vadd.f32 %v1910, %v3241
    %v3243 = vpop.f32.mrb[0].mxu0
    %v3244 = vadd.f32 %v1914, %v3243
    %v3245 = vpop.f32.mrb[0].mxu0
    %v3246 = vadd.f32 %v1910, %v3245
    %v3247 = vpop.f32.mrb[0].mxu0
    %v3248 = vadd.f32 %v1914, %v3247
    %3249 = vmatprep.mubr.bf16.mxu0 %v1594
    %3250 = vmatmul.mubr.bf16.gmra.mrb[0].mxu0 %v1593
    %v3251 = vpop.f32.mrb[0].mxu0
    %v3252 = vadd.f32 %v1910, %v3251
    %v3253 = vpop.f32.mrb[0].mxu0
    %v3254 = vadd.f32 %v1914, %v3253
    %v3255 = vpop.f32.mrb[0].mxu0
    %v3256 = vadd.f32 %v1910, %v3255
    %v3257 = vpop.f32.mrb[0].mxu0
    %v3258 = vadd.f32 %v1914, %v3257
    %3259 = vmatprep.mubr.bf16.mxu0 %v1602
    %3260 = vmatmul.mubr.bf16.gmra.mrb[0].mxu0 %v1601
    %v3261 = vpop.f32.mrb[0].mxu0
    %v3262 = vadd.f32 %v1910, %v3261
    %v3263 = vpop.f32.mrb[0].mxu0
    %v3264 = vadd.f32 %v1914, %v3263
    %v3265 = vpop.f32.mrb[0].mxu0
    %v3266 = vadd.f32 %v1910, %v3265
    %v3267 = vpop.f32.mrb[0].mxu0
    %v3268 = vadd.f32 %v1914, %v3267
    %3269 = vmatprep.mubr.bf16.mxu0 %v1610
    %3270 = vmatmul.mubr.bf16.gmra.mrb[0].mxu0 %v1609
    %v3271 = vpop.f32.mrb[0].mxu0
    %v3272 = vadd.f32 %v1910, %v3271
    %v3273 = vpop.f32.mrb[0].mxu0
    %v3274 = vadd.f32 %v1914, %v3273
    %v3275 = vpop.f32.mrb[0].mxu0
    %v3276 = vadd.f32 %v1910, %v3275
    %v3277 = vpop.f32.mrb[0].mxu0
    %v3278 = vadd.f32 %v1914, %v3277
    %3279 = vmatprep.mubr.bf16.mxu0 %v1618
    %3280 = vmatmul.mubr.bf16.gmra.mrb[0].mxu0 %v1617
    %v3281 = vpop.f32.mrb[0].mxu0
    %v3282 = vadd.f32 %v1910, %v3281
    %v3283 = vpop.f32.mrb[0].mxu0
    %v3284 = vadd.f32 %v1914, %v3283
    %v3285 = vpop.f32.mrb[0].mxu0
    %v3286 = vadd.f32 %v1910, %v3285
    %v3287 = vpop.f32.mrb[0].mxu0
    %v3288 = vadd.f32 %v1914, %v3287
    %3289 = vmatprep.mubr.bf16.mxu0 %v1626
    %3290 = vmatmul.mubr.bf16.gmra.mrb[0].mxu0 %v1625
    %v3291 = vpop.f32.mrb[0].mxu0
    %v3292 = vadd.f32 %v1910, %v3291
    %v3293 = vpop.f32.mrb[0].mxu0
    %v3294 = vadd.f32 %v1914, %v3293
    %v3295 = vpop.f32.mrb[0].mxu0
    %v3296 = vadd.f32 %v1910, %v3295
    %v3297 = vpop.f32.mrb[0].mxu0
    %v3298 = vadd.f32 %v1914, %v3297
    %3299 = vmatprep.mubr.bf16.mxu0 %v1634
    %3300 = vmatmul.mubr.bf16.gmra.mrb[0].mxu0 %v1633
    %v3301 = vpop.f32.mrb[0].mxu0
    %v3302 = vadd.f32 %v1910, %v3301
    %v3303 = vpop.f32.mrb[0].mxu0
    %v3304 = vadd.f32 %v1914, %v3303
    %v3305 = vpop.f32.mrb[0].mxu0
    %v3306 = vadd.f32 %v1910, %v3305
    %v3307 = vpop.f32.mrb[0].mxu0
    %v3308 = vadd.f32 %v1914, %v3307
    %3309 = vmatprep.mubr.bf16.mxu0 %v1642
    %3310 = vmatmul.mubr.bf16.gmra.mrb[0].mxu0 %v1641
    %v3311 = vpop.f32.mrb[0].mxu0
    %v3312 = vadd.f32 %v1910, %v3311
    %v3313 = vpop.f32.mrb[0].mxu0
    %v3314 = vadd.f32 %v1914, %v3313
    %v3315 = vpop.f32.mrb[0].mxu0
    %v3316 = vadd.f32 %v1910, %v3315
    %v3317 = vpop.f32.mrb[0].mxu0
    %v3318 = vadd.f32 %v1914, %v3317
    %3319 = vdwg.mxu0
    %3320 = vmatprep.subr.bf16.mxu0 %v2760
    %3321 = vmatpush1.bf16.msra.mxu0 %v2759
    %3322 = vmatprep.subr.bf16.mxu0 %v2764
    %3323 = vmatpush1.bf16.msra.mxu0 %v2763
    %3324 = vmatprep.subr.bf16.mxu0 %v2768
    %3325 = vmatpush1.bf16.msra.mxu0 %v2767
    %3326 = vmatprep.subr.bf16.mxu0 %v2772
    %3327 = vmatpush1.bf16.msra.mxu0 %v2771
    %3328 = vmatprep.subr.bf16.mxu0 %v2776
    %3329 = vmatpush1.bf16.msra.mxu0 %v2775
    %3330 = vmatprep.subr.bf16.mxu0 %v2780
    %3331 = vmatpush1.bf16.msra.mxu0 %v2779
    %3332 = vmatprep.subr.bf16.mxu0 %v2784
    %3333 = vmatpush1.bf16.msra.mxu0 %v2783
    %3334 = vmatprep.subr.bf16.mxu0 %v2788
    %3335 = vmatpush1.bf16.msra.mxu0 %v2787
    %3336 = vmatprep.subr.bf16.mxu0 %v2792
    %3337 = vmatpush1.bf16.msra.mxu0 %v2791
    %3338 = vmatprep.subr.bf16.mxu0 %v2796
    %3339 = vmatpush1.bf16.msra.mxu0 %v2795
    %3340 = vmatprep.subr.bf16.mxu0 %v2800
    %3341 = vmatpush1.bf16.msra.mxu0 %v2799
    %3342 = vmatprep.subr.bf16.mxu0 %v2804
    %3343 = vmatpush1.bf16.msra.mxu0 %v2803
    %3344 = vmatprep.subr.bf16.mxu0 %v2808
    %3345 = vmatpush1.bf16.msra.mxu0 %v2807
    %3346 = vmatprep.subr.bf16.mxu0 %v2812
    %3347 = vmatpush1.bf16.msra.mxu0 %v2811
    %3348 = vmatprep.subr.bf16.mxu0 %v2816
    %3349 = vmatpush1.bf16.msra.mxu0 %v2815
    %3350 = vmatprep.subr.bf16.mxu0 %v2820
    %3351 = vmatpush1.bf16.msra.mxu0 %v2819
    %3352 = vmatprep.mubr.bf16.mxu0 %v1588
    %3353 = vmatmul.mubr.bf16.gmra.mrb[0].mxu0 %v1587
    %v3354 = vpop.f32.mrb[0].mxu0
    %v3355 = vadd.f32 %v3242, %v3354
    %v3356 = vpop.f32.mrb[0].mxu0
    %v3357 = vadd.f32 %v3244, %v3356
    %v3358 = vpop.f32.mrb[0].mxu0
    %v3359 = vadd.f32 %v3246, %v3358
    %v3360 = vpop.f32.mrb[0].mxu0
    %v3361 = vadd.f32 %v3248, %v3360
    %3362 = vmatprep.mubr.bf16.mxu0 %v1596
    %3363 = vmatmul.mubr.bf16.gmra.mrb[0].mxu0 %v1595
    %v3364 = vpop.f32.mrb[0].mxu0
    %v3365 = vadd.f32 %v3252, %v3364
    %v3366 = vpop.f32.mrb[0].mxu0
    %v3367 = vadd.f32 %v3254, %v3366
    %v3368 = vpop.f32.mrb[0].mxu0
    %v3369 = vadd.f32 %v3256, %v3368
    %v3370 = vpop.f32.mrb[0].mxu0
    %v3371 = vadd.f32 %v3258, %v3370
    %3372 = vmatprep.mubr.bf16.mxu0 %v1604
    %3373 = vmatmul.mubr.bf16.gmra.mrb[0].mxu0 %v1603
    %v3374 = vpop.f32.mrb[0].mxu0
    %v3375 = vadd.f32 %v3262, %v3374
    %v3376 = vpop.f32.mrb[0].mxu0
    %v3377 = vadd.f32 %v3264, %v3376
    %v3378 = vpop.f32.mrb[0].mxu0
    %v3379 = vadd.f32 %v3266, %v3378
    %v3380 = vpop.f32.mrb[0].mxu0
    %v3381 = vadd.f32 %v3268, %v3380
    %3382 = vmatprep.mubr.bf16.mxu0 %v1612
    %3383 = vmatmul.mubr.bf16.gmra.mrb[0].mxu0 %v1611
    %v3384 = vpop.f32.mrb[0].mxu0
    %v3385 = vadd.f32 %v3272, %v3384
    %v3386 = vpop.f32.mrb[0].mxu0
    %v3387 = vadd.f32 %v3274, %v3386
    %v3388 = vpop.f32.mrb[0].mxu0
    %v3389 = vadd.f32 %v3276, %v3388
    %v3390 = vpop.f32.mrb[0].mxu0
    %v3391 = vadd.f32 %v3278, %v3390
    %3392 = vmatprep.mubr.bf16.mxu0 %v1620
    %3393 = vmatmul.mubr.bf16.gmra.mrb[0].mxu0 %v1619
    %v3394 = vpop.f32.mrb[0].mxu0
    %v3395 = vadd.f32 %v3282, %v3394
    %v3396 = vpop.f32.mrb[0].mxu0
    %v3397 = vadd.f32 %v3284, %v3396
    %v3398 = vpop.f32.mrb[0].mxu0
    %v3399 = vadd.f32 %v3286, %v3398
    %v3400 = vpop.f32.mrb[0].mxu0
    %v3401 = vadd.f32 %v3288, %v3400
    %3402 = vmatprep.mubr.bf16.mxu0 %v1628
    %3403 = vmatmul.mubr.bf16.gmra.mrb[0].mxu0 %v1627
    %v3404 = vpop.f32.mrb[0].mxu0
    %v3405 = vadd.f32 %v3292, %v3404
    %v3406 = vpop.f32.mrb[0].mxu0
    %v3407 = vadd.f32 %v3294, %v3406
    %v3408 = vpop.f32.mrb[0].mxu0
    %v3409 = vadd.f32 %v3296, %v3408
    %v3410 = vpop.f32.mrb[0].mxu0
    %v3411 = vadd.f32 %v3298, %v3410
    %3412 = vmatprep.mubr.bf16.mxu0 %v1636
    %3413 = vmatmul.mubr.bf16.gmra.mrb[0].mxu0 %v1635
    %v3414 = vpop.f32.mrb[0].mxu0
    %v3415 = vadd.f32 %v3302, %v3414
    %v3416 = vpop.f32.mrb[0].mxu0
    %v3417 = vadd.f32 %v3304, %v3416
    %v3418 = vpop.f32.mrb[0].mxu0
    %v3419 = vadd.f32 %v3306, %v3418
    %v3420 = vpop.f32.mrb[0].mxu0
    %v3421 = vadd.f32 %v3308, %v3420
    %3422 = vmatprep.mubr.bf16.mxu0 %v1644
    %3423 = vmatmul.mubr.bf16.gmra.mrb[0].mxu0 %v1643
    %v3424 = vpop.f32.mrb[0].mxu0
    %v3425 = vadd.f32 %v3312, %v3424
    %v3426 = vpop.f32.mrb[0].mxu0
    %v3427 = vadd.f32 %v3314, %v3426
    %v3428 = vpop.f32.mrb[0].mxu0
    %v3429 = vadd.f32 %v3316, %v3428
    %v3430 = vpop.f32.mrb[0].mxu0
    %v3431 = vadd.f32 %v3318, %v3430
    %3432 = vdwg.mxu0
    %3433 = vmatprep.subr.bf16.mxu0 %v2824
    %3434 = vmatpush1.bf16.msra.mxu0 %v2823
    %3435 = vmatprep.subr.bf16.mxu0 %v2828
    %3436 = vmatpush1.bf16.msra.mxu0 %v2827
    %3437 = vmatprep.subr.bf16.mxu0 %v2832
    %3438 = vmatpush1.bf16.msra.mxu0 %v2831
    %3439 = vmatprep.subr.bf16.mxu0 %v2836
    %3440 = vmatpush1.bf16.msra.mxu0 %v2835
    %3441 = vmatprep.subr.bf16.mxu0 %v2840
    %3442 = vmatpush1.bf16.msra.mxu0 %v2839
    %3443 = vmatprep.subr.bf16.mxu0 %v2844
    %3444 = vmatpush1.bf16.msra.mxu0 %v2843
    %3445 = vmatprep.subr.bf16.mxu0 %v2848
    %3446 = vmatpush1.bf16.msra.mxu0 %v2847
    %3447 = vmatprep.subr.bf16.mxu0 %v2852
    %3448 = vmatpush1.bf16.msra.mxu0 %v2851
    %3449 = vmatprep.subr.bf16.mxu0 %v2856
    %3450 = vmatpush1.bf16.msra.mxu0 %v2855
    %3451 = vmatprep.subr.bf16.mxu0 %v2860
    %3452 = vmatpush1.bf16.msra.mxu0 %v2859
    %3453 = vmatprep.subr.bf16.mxu0 %v2864
    %3454 = vmatpush1.bf16.msra.mxu0 %v2863
    %3455 = vmatprep.subr.bf16.mxu0 %v2868
    %3456 = vmatpush1.bf16.msra.mxu0 %v2867
    %3457 = vmatprep.subr.bf16.mxu0 %v2872
    %3458 = vmatpush1.bf16.msra.mxu0 %v2871
    %3459 = vmatprep.subr.bf16.mxu0 %v2876
    %3460 = vmatpush1.bf16.msra.mxu0 %v2875
    %3461 = vmatprep.subr.bf16.mxu0 %v2880
    %3462 = vmatpush1.bf16.msra.mxu0 %v2879
    %3463 = vmatprep.subr.bf16.mxu0 %v2884
    %3464 = vmatpush1.bf16.msra.mxu0 %v2883
    %3465 = vmatprep.mubr.bf16.mxu0 %v1590
    %3466 = vmatmul.mubr.bf16.gmra.mrb[0].mxu0 %v1589
    %v3467 = vpop.f32.mrb[0].mxu0
    %v3468 = vadd.f32 %v3355, %v3467
    %v3469 = vpop.f32.mrb[0].mxu0
    %v3470 = vadd.f32 %v3357, %v3469
    %v3471 = vpop.f32.mrb[0].mxu0
    %v3472 = vadd.f32 %v3359, %v3471
    %v3473 = vpop.f32.mrb[0].mxu0
    %v3474 = vadd.f32 %v3361, %v3473
    %3475 = vmatprep.mubr.bf16.mxu0 %v1598
    %3476 = vmatmul.mubr.bf16.gmra.mrb[0].mxu0 %v1597
    %v3477 = vpop.f32.mrb[0].mxu0
    %v3478 = vadd.f32 %v3365, %v3477
    %v3479 = vpop.f32.mrb[0].mxu0
    %v3480 = vadd.f32 %v3367, %v3479
    %v3481 = vpop.f32.mrb[0].mxu0
    %v3482 = vadd.f32 %v3369, %v3481
    %v3483 = vpop.f32.mrb[0].mxu0
    %v3484 = vadd.f32 %v3371, %v3483
    %3485 = vmatprep.mubr.bf16.mxu0 %v1606
    %3486 = vmatmul.mubr.bf16.gmra.mrb[0].mxu0 %v1605
    %v3487 = vpop.f32.mrb[0].mxu0
    %v3488 = vadd.f32 %v3375, %v3487
    %v3489 = vpop.f32.mrb[0].mxu0
    %v3490 = vadd.f32 %v3377, %v3489
    %v3491 = vpop.f32.mrb[0].mxu0
    %v3492 = vadd.f32 %v3379, %v3491
    %v3493 = vpop.f32.mrb[0].mxu0
    %v3494 = vadd.f32 %v3381, %v3493
    %3495 = vmatprep.mubr.bf16.mxu0 %v1614
    %3496 = vmatmul.mubr.bf16.gmra.mrb[0].mxu0 %v1613
    %v3497 = vpop.f32.mrb[0].mxu0
    %v3498 = vadd.f32 %v3385, %v3497
    %v3499 = vpop.f32.mrb[0].mxu0
    %v3500 = vadd.f32 %v3387, %v3499
    %v3501 = vpop.f32.mrb[0].mxu0
    %v3502 = vadd.f32 %v3389, %v3501
    %v3503 = vpop.f32.mrb[0].mxu0
    %v3504 = vadd.f32 %v3391, %v3503
    %3505 = vmatprep.mubr.bf16.mxu0 %v1622
    %3506 = vmatmul.mubr.bf16.gmra.mrb[0].mxu0 %v1621
    %v3507 = vpop.f32.mrb[0].mxu0
    %v3508 = vadd.f32 %v3395, %v3507
    %v3509 = vpop.f32.mrb[0].mxu0
    %v3510 = vadd.f32 %v3397, %v3509
    %v3511 = vpop.f32.mrb[0].mxu0
    %v3512 = vadd.f32 %v3399, %v3511
    %v3513 = vpop.f32.mrb[0].mxu0
    %v3514 = vadd.f32 %v3401, %v3513
    %3515 = vmatprep.mubr.bf16.mxu0 %v1630
    %3516 = vmatmul.mubr.bf16.gmra.mrb[0].mxu0 %v1629
    %v3517 = vpop.f32.mrb[0].mxu0
    %v3518 = vadd.f32 %v3405, %v3517
    %v3519 = vpop.f32.mrb[0].mxu0
    %v3520 = vadd.f32 %v3407, %v3519
    %v3521 = vpop.f32.mrb[0].mxu0
    %v3522 = vadd.f32 %v3409, %v3521
    %v3523 = vpop.f32.mrb[0].mxu0
    %v3524 = vadd.f32 %v3411, %v3523
    %3525 = vmatprep.mubr.bf16.mxu0 %v1638
    %3526 = vmatmul.mubr.bf16.gmra.mrb[0].mxu0 %v1637
    %v3527 = vpop.f32.mrb[0].mxu0
    %v3528 = vadd.f32 %v3415, %v3527
    %v3529 = vpop.f32.mrb[0].mxu0
    %v3530 = vadd.f32 %v3417, %v3529
    %v3531 = vpop.f32.mrb[0].mxu0
    %v3532 = vadd.f32 %v3419, %v3531
    %v3533 = vpop.f32.mrb[0].mxu0
    %v3534 = vadd.f32 %v3421, %v3533
    %3535 = vmatprep.mubr.bf16.mxu0 %v1646
    %3536 = vmatmul.mubr.bf16.gmra.mrb[0].mxu0 %v1645
    %v3537 = vpop.f32.mrb[0].mxu0
    %v3538 = vadd.f32 %v3425, %v3537
    %v3539 = vpop.f32.mrb[0].mxu0
    %v3540 = vadd.f32 %v3427, %v3539
    %v3541 = vpop.f32.mrb[0].mxu0
    %v3542 = vadd.f32 %v3429, %v3541
    %v3543 = vpop.f32.mrb[0].mxu0
    %v3544 = vadd.f32 %v3431, %v3543
    %3545 = vdwg.mxu0
    %3546 = vmatprep.subr.bf16.mxu0 %v2888
    %3547 = vmatpush1.bf16.msra.mxu0 %v2887
    %3548 = vmatprep.subr.bf16.mxu0 %v2892
    %3549 = vmatpush1.bf16.msra.mxu0 %v2891
    %3550 = vmatprep.subr.bf16.mxu0 %v2896
    %3551 = vmatpush1.bf16.msra.mxu0 %v2895
    %3552 = vmatprep.subr.bf16.mxu0 %v2900
    %3553 = vmatpush1.bf16.msra.mxu0 %v2899
    %3554 = vmatprep.subr.bf16.mxu0 %v2904
    %3555 = vmatpush1.bf16.msra.mxu0 %v2903
    %3556 = vmatprep.subr.bf16.mxu0 %v2908
    %3557 = vmatpush1.bf16.msra.mxu0 %v2907
    %3558 = vmatprep.subr.bf16.mxu0 %v2912
    %3559 = vmatpush1.bf16.msra.mxu0 %v2911
    %3560 = vmatprep.subr.bf16.mxu0 %v2916
    %3561 = vmatpush1.bf16.msra.mxu0 %v2915
    %3562 = vmatprep.subr.bf16.mxu0 %v2920
    %3563 = vmatpush1.bf16.msra.mxu0 %v2919
    %3564 = vmatprep.subr.bf16.mxu0 %v2924
    %3565 = vmatpush1.bf16.msra.mxu0 %v2923
    %3566 = vmatprep.subr.bf16.mxu0 %v2928
    %3567 = vmatpush1.bf16.msra.mxu0 %v2927
    %3568 = vmatprep.subr.bf16.mxu0 %v2932
    %3569 = vmatpush1.bf16.msra.mxu0 %v2931
    %3570 = vmatprep.subr.bf16.mxu0 %v2936
    %3571 = vmatpush1.bf16.msra.mxu0 %v2935
    %3572 = vmatprep.subr.bf16.mxu0 %v2940
    %3573 = vmatpush1.bf16.msra.mxu0 %v2939
    %3574 = vmatprep.subr.bf16.mxu0 %v2944
    %3575 = vmatpush1.bf16.msra.mxu0 %v2943
    %3576 = vmatprep.subr.bf16.mxu0 %v2948
    %3577 = vmatpush1.bf16.msra.mxu0 %v2947
    %3578 = vmatprep.mubr.bf16.mxu0 %v1592
    %3579 = vmatmul.mubr.bf16.gmra.mrb[0].mxu0 %v1591
    %v3580 = vpop.f32.mrb[0].mxu0
    %v3581 = vadd.f32 %v3468, %v3580
    %v3582 = vpop.f32.mrb[0].mxu0
    %v3583 = vadd.f32 %v3470, %v3582
    %v3584 = vpop.f32.mrb[0].mxu0
    %v3585 = vadd.f32 %v3472, %v3584
    %v3586 = vpop.f32.mrb[0].mxu0
    %v3587 = vadd.f32 %v3474, %v3586
    %3588 = vmatprep.mubr.bf16.mxu0 %v1600
    %3589 = vmatmul.mubr.bf16.gmra.mrb[0].mxu0 %v1599
    %v3590 = vpop.f32.mrb[0].mxu0
    %v3591 = vadd.f32 %v3478, %v3590
    %v3592 = vpop.f32.mrb[0].mxu0
    %v3593 = vadd.f32 %v3480, %v3592
    %v3594 = vpop.f32.mrb[0].mxu0
    %v3595 = vadd.f32 %v3482, %v3594
    %v3596 = vpop.f32.mrb[0].mxu0
    %v3597 = vadd.f32 %v3484, %v3596
    %3598 = vmatprep.mubr.bf16.mxu0 %v1608
    %3599 = vmatmul.mubr.bf16.gmra.mrb[0].mxu0 %v1607
    %v3600 = vpop.f32.mrb[0].mxu0
    %v3601 = vadd.f32 %v3488, %v3600
    %v3602 = vpop.f32.mrb[0].mxu0
    %v3603 = vadd.f32 %v3490, %v3602
    %v3604 = vpop.f32.mrb[0].mxu0
    %v3605 = vadd.f32 %v3492, %v3604
    %v3606 = vpop.f32.mrb[0].mxu0
    %v3607 = vadd.f32 %v3494, %v3606
    %3608 = vmatprep.mubr.bf16.mxu0 %v1616
    %3609 = vmatmul.mubr.bf16.gmra.mrb[0].mxu0 %v1615
    %v3610 = vpop.f32.mrb[0].mxu0
    %v3611 = vadd.f32 %v3498, %v3610
    %v3612 = vpop.f32.mrb[0].mxu0
    %v3613 = vadd.f32 %v3500, %v3612
    %v3614 = vpop.f32.mrb[0].mxu0
    %v3615 = vadd.f32 %v3502, %v3614
    %v3616 = vpop.f32.mrb[0].mxu0
    %v3617 = vadd.f32 %v3504, %v3616
    %3618 = vmatprep.mubr.bf16.mxu0 %v1624
    %3619 = vmatmul.mubr.bf16.gmra.mrb[0].mxu0 %v1623
    %v3620 = vpop.f32.mrb[0].mxu0
    %v3621 = vadd.f32 %v3508, %v3620
    %v3622 = vpop.f32.mrb[0].mxu0
    %v3623 = vadd.f32 %v3510, %v3622
    %v3624 = vpop.f32.mrb[0].mxu0
    %v3625 = vadd.f32 %v3512, %v3624
    %v3626 = vpop.f32.mrb[0].mxu0
    %v3627 = vadd.f32 %v3514, %v3626
    %3628 = vmatprep.mubr.bf16.mxu0 %v1632
    %3629 = vmatmul.mubr.bf16.gmra.mrb[0].mxu0 %v1631
    %v3630 = vpop.f32.mrb[0].mxu0
    %v3631 = vadd.f32 %v3518, %v3630
    %v3632 = vpop.f32.mrb[0].mxu0
    %v3633 = vadd.f32 %v3520, %v3632
    %v3634 = vpop.f32.mrb[0].mxu0
    %v3635 = vadd.f32 %v3522, %v3634
    %v3636 = vpop.f32.mrb[0].mxu0
    %v3637 = vadd.f32 %v3524, %v3636
    %3638 = vmatprep.mubr.bf16.mxu0 %v1640
    %3639 = vmatmul.mubr.bf16.gmra.mrb[0].mxu0 %v1639
    %v3640 = vpop.f32.mrb[0].mxu0
    %v3641 = vadd.f32 %v3528, %v3640
    %v3642 = vpop.f32.mrb[0].mxu0
    %v3643 = vadd.f32 %v3530, %v3642
    %v3644 = vpop.f32.mrb[0].mxu0
    %v3645 = vadd.f32 %v3532, %v3644
    %v3646 = vpop.f32.mrb[0].mxu0
    %v3647 = vadd.f32 %v3534, %v3646
    %3648 = vmatprep.mubr.bf16.mxu0 %v1648
    %3649 = vmatmul.mubr.bf16.gmra.mrb[0].mxu0 %v1647
    %v3650 = vpop.f32.mrb[0].mxu0
    %v3651 = vadd.f32 %v3538, %v3650
    %v3652 = vpop.f32.mrb[0].mxu0
    %v3653 = vadd.f32 %v3540, %v3652
    %v3654 = vpop.f32.mrb[0].mxu0
    %v3655 = vadd.f32 %v3542, %v3654
    %v3656 = vpop.f32.mrb[0].mxu0
    %v3657 = vadd.f32 %v3544, %v3656
    %3658 = vdwg.mxu0
    %3659 = vmatprep.subr.bf16.mxu0 %v2698
    %3660 = vmatpush1.bf16.msra.mxu0 %v2697
    %3661 = vmatprep.subr.bf16.mxu0 %v2702
    %3662 = vmatpush1.bf16.msra.mxu0 %v2701
    %3663 = vmatprep.subr.bf16.mxu0 %v2706
    %3664 = vmatpush1.bf16.msra.mxu0 %v2705
    %3665 = vmatprep.subr.bf16.mxu0 %v2710
    %3666 = vmatpush1.bf16.msra.mxu0 %v2709
    %3667 = vmatprep.subr.bf16.mxu0 %v2714
    %3668 = vmatpush1.bf16.msra.mxu0 %v2713
    %3669 = vmatprep.subr.bf16.mxu0 %v2718
    %3670 = vmatpush1.bf16.msra.mxu0 %v2717
    %3671 = vmatprep.subr.bf16.mxu0 %v2722
    %3672 = vmatpush1.bf16.msra.mxu0 %v2721
    %3673 = vmatprep.subr.bf16.mxu0 %v2726
    %3674 = vmatpush1.bf16.msra.mxu0 %v2725
    %3675 = vmatprep.subr.bf16.mxu0 %v2730
    %3676 = vmatpush1.bf16.msra.mxu0 %v2729
    %3677 = vmatprep.subr.bf16.mxu0 %v2734
    %3678 = vmatpush1.bf16.msra.mxu0 %v2733
    %3679 = vmatprep.subr.bf16.mxu0 %v2738
    %3680 = vmatpush1.bf16.msra.mxu0 %v2737
    %3681 = vmatprep.subr.bf16.mxu0 %v2742
    %3682 = vmatpush1.bf16.msra.mxu0 %v2741
    %3683 = vmatprep.subr.bf16.mxu0 %v2746
    %3684 = vmatpush1.bf16.msra.mxu0 %v2745
    %3685 = vmatprep.subr.bf16.mxu0 %v2750
    %3686 = vmatpush1.bf16.msra.mxu0 %v2749
    %3687 = vmatprep.subr.bf16.mxu0 %v2754
    %3688 = vmatpush1.bf16.msra.mxu0 %v2753
    %3689 = vmatprep.subr.bf16.mxu0 %v2758
    %3690 = vmatpush1.bf16.msra.mxu0 %v2757
    %3691 = vmatprep.mubr.bf16.mxu0 %v1586
    %3692 = vmatmul.mubr.bf16.gmra.mrb[0].mxu0 %v1585
    %v3693 = vpop.f32.mrb[0].mxu0
    %v3694 = vadd.f32 %v1918, %v3693
    %v3695 = vpop.f32.mrb[0].mxu0
    %v3696 = vadd.f32 %v1922, %v3695
    %v3697 = vpop.f32.mrb[0].mxu0
    %v3698 = vadd.f32 %v1918, %v3697
    %v3699 = vpop.f32.mrb[0].mxu0
    %v3700 = vadd.f32 %v1922, %v3699
    %3701 = vmatprep.mubr.bf16.mxu0 %v1594
    %3702 = vmatmul.mubr.bf16.gmra.mrb[0].mxu0 %v1593
    %v3703 = vpop.f32.mrb[0].mxu0
    %v3704 = vadd.f32 %v1918, %v3703
    %v3705 = vpop.f32.mrb[0].mxu0
    %v3706 = vadd.f32 %v1922, %v3705
    %v3707 = vpop.f32.mrb[0].mxu0
    %v3708 = vadd.f32 %v1918, %v3707
    %v3709 = vpop.f32.mrb[0].mxu0
    %v3710 = vadd.f32 %v1922, %v3709
    %3711 = vmatprep.mubr.bf16.mxu0 %v1602
    %3712 = vmatmul.mubr.bf16.gmra.mrb[0].mxu0 %v1601
    %v3713 = vpop.f32.mrb[0].mxu0
    %v3714 = vadd.f32 %v1918, %v3713
    %v3715 = vpop.f32.mrb[0].mxu0
    %v3716 = vadd.f32 %v1922, %v3715
    %v3717 = vpop.f32.mrb[0].mxu0
    %v3718 = vadd.f32 %v1918, %v3717
    %v3719 = vpop.f32.mrb[0].mxu0
    %v3720 = vadd.f32 %v1922, %v3719
    %3721 = vmatprep.mubr.bf16.mxu0 %v1610
    %3722 = vmatmul.mubr.bf16.gmra.mrb[0].mxu0 %v1609
    %v3723 = vpop.f32.mrb[0].mxu0
    %v3724 = vadd.f32 %v1918, %v3723
    %v3725 = vpop.f32.mrb[0].mxu0
    %v3726 = vadd.f32 %v1922, %v3725
    %v3727 = vpop.f32.mrb[0].mxu0
    %v3728 = vadd.f32 %v1918, %v3727
    %v3729 = vpop.f32.mrb[0].mxu0
    %v3730 = vadd.f32 %v1922, %v3729
    %3731 = vmatprep.mubr.bf16.mxu0 %v1618
    %3732 = vmatmul.mubr.bf16.gmra.mrb[0].mxu0 %v1617
    %v3733 = vpop.f32.mrb[0].mxu0
    %v3734 = vadd.f32 %v1918, %v3733
    %v3735 = vpop.f32.mrb[0].mxu0
    %v3736 = vadd.f32 %v1922, %v3735
    %v3737 = vpop.f32.mrb[0].mxu0
    %v3738 = vadd.f32 %v1918, %v3737
    %v3739 = vpop.f32.mrb[0].mxu0
    %v3740 = vadd.f32 %v1922, %v3739
    %3741 = vmatprep.mubr.bf16.mxu0 %v1626
    %3742 = vmatmul.mubr.bf16.gmra.mrb[0].mxu0 %v1625
    %v3743 = vpop.f32.mrb[0].mxu0
    %v3744 = vadd.f32 %v1918, %v3743
    %v3745 = vpop.f32.mrb[0].mxu0
    %v3746 = vadd.f32 %v1922, %v3745
    %v3747 = vpop.f32.mrb[0].mxu0
    %v3748 = vadd.f32 %v1918, %v3747
    %v3749 = vpop.f32.mrb[0].mxu0
    %v3750 = vadd.f32 %v1922, %v3749
    %3751 = vmatprep.mubr.bf16.mxu0 %v1634
    %3752 = vmatmul.mubr.bf16.gmra.mrb[0].mxu0 %v1633
    %v3753 = vpop.f32.mrb[0].mxu0
    %v3754 = vadd.f32 %v1918, %v3753
    %v3755 = vpop.f32.mrb[0].mxu0
    %v3756 = vadd.f32 %v1922, %v3755
    %v3757 = vpop.f32.mrb[0].mxu0
    %v3758 = vadd.f32 %v1918, %v3757
    %v3759 = vpop.f32.mrb[0].mxu0
    %v3760 = vadd.f32 %v1922, %v3759
    %3761 = vmatprep.mubr.bf16.mxu0 %v1642
    %3762 = vmatmul.mubr.bf16.gmra.mrb[0].mxu0 %v1641
    %v3763 = vpop.f32.mrb[0].mxu0
    %v3764 = vadd.f32 %v1918, %v3763
    %v3765 = vpop.f32.mrb[0].mxu0
    %v3766 = vadd.f32 %v1922, %v3765
    %v3767 = vpop.f32.mrb[0].mxu0
    %v3768 = vadd.f32 %v1918, %v3767
    %v3769 = vpop.f32.mrb[0].mxu0
    %v3770 = vadd.f32 %v1922, %v3769
    %3771 = vdwg.mxu0
    %3772 = vmatprep.subr.bf16.mxu0 %v2762
    %3773 = vmatpush1.bf16.msra.mxu0 %v2761
    %3774 = vmatprep.subr.bf16.mxu0 %v2766
    %3775 = vmatpush1.bf16.msra.mxu0 %v2765
    %3776 = vmatprep.subr.bf16.mxu0 %v2770
    %3777 = vmatpush1.bf16.msra.mxu0 %v2769
    %3778 = vmatprep.subr.bf16.mxu0 %v2774
    %3779 = vmatpush1.bf16.msra.mxu0 %v2773
    %3780 = vmatprep.subr.bf16.mxu0 %v2778
    %3781 = vmatpush1.bf16.msra.mxu0 %v2777
    %3782 = vmatprep.subr.bf16.mxu0 %v2782
    %3783 = vmatpush1.bf16.msra.mxu0 %v2781
    %3784 = vmatprep.subr.bf16.mxu0 %v2786
    %3785 = vmatpush1.bf16.msra.mxu0 %v2785
    %3786 = vmatprep.subr.bf16.mxu0 %v2790
    %3787 = vmatpush1.bf16.msra.mxu0 %v2789
    %3788 = vmatprep.subr.bf16.mxu0 %v2794
    %3789 = vmatpush1.bf16.msra.mxu0 %v2793
    %3790 = vmatprep.subr.bf16.mxu0 %v2798
    %3791 = vmatpush1.bf16.msra.mxu0 %v2797
    %3792 = vmatprep.subr.bf16.mxu0 %v2802
    %3793 = vmatpush1.bf16.msra.mxu0 %v2801
    %3794 = vmatprep.subr.bf16.mxu0 %v2806
    %3795 = vmatpush1.bf16.msra.mxu0 %v2805
    %3796 = vmatprep.subr.bf16.mxu0 %v2810
    %3797 = vmatpush1.bf16.msra.mxu0 %v2809
    %3798 = vmatprep.subr.bf16.mxu0 %v2814
    %3799 = vmatpush1.bf16.msra.mxu0 %v2813
    %3800 = vmatprep.subr.bf16.mxu0 %v2818
    %3801 = vmatpush1.bf16.msra.mxu0 %v2817
    %3802 = vmatprep.subr.bf16.mxu0 %v2822
    %3803 = vmatpush1.bf16.msra.mxu0 %v2821
    %3804 = vmatprep.mubr.bf16.mxu0 %v1588
    %3805 = vmatmul.mubr.bf16.gmra.mrb[0].mxu0 %v1587
    %v3806 = vpop.f32.mrb[0].mxu0
    %v3807 = vadd.f32 %v3694, %v3806
    %v3808 = vpop.f32.mrb[0].mxu0
    %v3809 = vadd.f32 %v3696, %v3808
    %v3810 = vpop.f32.mrb[0].mxu0
    %v3811 = vadd.f32 %v3698, %v3810
    %v3812 = vpop.f32.mrb[0].mxu0
    %v3813 = vadd.f32 %v3700, %v3812
    %3814 = vmatprep.mubr.bf16.mxu0 %v1596
    %3815 = vmatmul.mubr.bf16.gmra.mrb[0].mxu0 %v1595
    %v3816 = vpop.f32.mrb[0].mxu0
    %v3817 = vadd.f32 %v3704, %v3816
    %v3818 = vpop.f32.mrb[0].mxu0
    %v3819 = vadd.f32 %v3706, %v3818
    %v3820 = vpop.f32.mrb[0].mxu0
    %v3821 = vadd.f32 %v3708, %v3820
    %v3822 = vpop.f32.mrb[0].mxu0
    %v3823 = vadd.f32 %v3710, %v3822
    %3824 = vmatprep.mubr.bf16.mxu0 %v1604
    %3825 = vmatmul.mubr.bf16.gmra.mrb[0].mxu0 %v1603
    %v3826 = vpop.f32.mrb[0].mxu0
    %v3827 = vadd.f32 %v3714, %v3826
    %v3828 = vpop.f32.mrb[0].mxu0
    %v3829 = vadd.f32 %v3716, %v3828
    %v3830 = vpop.f32.mrb[0].mxu0
    %v3831 = vadd.f32 %v3718, %v3830
    %v3832 = vpop.f32.mrb[0].mxu0
    %v3833 = vadd.f32 %v3720, %v3832
    %3834 = vmatprep.mubr.bf16.mxu0 %v1612
    %3835 = vmatmul.mubr.bf16.gmra.mrb[0].mxu0 %v1611
    %v3836 = vpop.f32.mrb[0].mxu0
    %v3837 = vadd.f32 %v3724, %v3836
    %v3838 = vpop.f32.mrb[0].mxu0
    %v3839 = vadd.f32 %v3726, %v3838
    %v3840 = vpop.f32.mrb[0].mxu0
    %v3841 = vadd.f32 %v3728, %v3840
    %v3842 = vpop.f32.mrb[0].mxu0
    %v3843 = vadd.f32 %v3730, %v3842
    %3844 = vmatprep.mubr.bf16.mxu0 %v1620
    %3845 = vmatmul.mubr.bf16.gmra.mrb[0].mxu0 %v1619
    %v3846 = vpop.f32.mrb[0].mxu0
    %v3847 = vadd.f32 %v3734, %v3846
    %v3848 = vpop.f32.mrb[0].mxu0
    %v3849 = vadd.f32 %v3736, %v3848
    %v3850 = vpop.f32.mrb[0].mxu0
    %v3851 = vadd.f32 %v3738, %v3850
    %v3852 = vpop.f32.mrb[0].mxu0
    %v3853 = vadd.f32 %v3740, %v3852
    %3854 = vmatprep.mubr.bf16.mxu0 %v1628
    %3855 = vmatmul.mubr.bf16.gmra.mrb[0].mxu0 %v1627
    %v3856 = vpop.f32.mrb[0].mxu0
    %v3857 = vadd.f32 %v3744, %v3856
    %v3858 = vpop.f32.mrb[0].mxu0
    %v3859 = vadd.f32 %v3746, %v3858
    %v3860 = vpop.f32.mrb[0].mxu0
    %v3861 = vadd.f32 %v3748, %v3860
    %v3862 = vpop.f32.mrb[0].mxu0
    %v3863 = vadd.f32 %v3750, %v3862
    %3864 = vmatprep.mubr.bf16.mxu0 %v1636
    %3865 = vmatmul.mubr.bf16.gmra.mrb[0].mxu0 %v1635
    %v3866 = vpop.f32.mrb[0].mxu0
    %v3867 = vadd.f32 %v3754, %v3866
    %v3868 = vpop.f32.mrb[0].mxu0
    %v3869 = vadd.f32 %v3756, %v3868
    %v3870 = vpop.f32.mrb[0].mxu0
    %v3871 = vadd.f32 %v3758, %v3870
    %v3872 = vpop.f32.mrb[0].mxu0
    %v3873 = vadd.f32 %v3760, %v3872
    %3874 = vmatprep.mubr.bf16.mxu0 %v1644
    %3875 = vmatmul.mubr.bf16.gmra.mrb[0].mxu0 %v1643
    %v3876 = vpop.f32.mrb[0].mxu0
    %v3877 = vadd.f32 %v3764, %v3876
    %v3878 = vpop.f32.mrb[0].mxu0
    %v3879 = vadd.f32 %v3766, %v3878
    %v3880 = vpop.f32.mrb[0].mxu0
    %v3881 = vadd.f32 %v3768, %v3880
    %v3882 = vpop.f32.mrb[0].mxu0
    %v3883 = vadd.f32 %v3770, %v3882
    %3884 = vdwg.mxu0
    %3885 = vmatprep.subr.bf16.mxu0 %v2826
    %3886 = vmatpush1.bf16.msra.mxu0 %v2825
    %3887 = vmatprep.subr.bf16.mxu0 %v2830
    %3888 = vmatpush1.bf16.msra.mxu0 %v2829
    %3889 = vmatprep.subr.bf16.mxu0 %v2834
    %3890 = vmatpush1.bf16.msra.mxu0 %v2833
    %3891 = vmatprep.subr.bf16.mxu0 %v2838
    %3892 = vmatpush1.bf16.msra.mxu0 %v2837
    %3893 = vmatprep.subr.bf16.mxu0 %v2842
    %3894 = vmatpush1.bf16.msra.mxu0 %v2841
    %3895 = vmatprep.subr.bf16.mxu0 %v2846
    %3896 = vmatpush1.bf16.msra.mxu0 %v2845
    %3897 = vmatprep.subr.bf16.mxu0 %v2850
    %3898 = vmatpush1.bf16.msra.mxu0 %v2849
    %3899 = vmatprep.subr.bf16.mxu0 %v2854
    %3900 = vmatpush1.bf16.msra.mxu0 %v2853
    %3901 = vmatprep.subr.bf16.mxu0 %v2858
    %3902 = vmatpush1.bf16.msra.mxu0 %v2857
    %3903 = vmatprep.subr.bf16.mxu0 %v2862
    %3904 = vmatpush1.bf16.msra.mxu0 %v2861
    %3905 = vmatprep.subr.bf16.mxu0 %v2866
    %3906 = vmatpush1.bf16.msra.mxu0 %v2865
    %3907 = vmatprep.subr.bf16.mxu0 %v2870
    %3908 = vmatpush1.bf16.msra.mxu0 %v2869
    %3909 = vmatprep.subr.bf16.mxu0 %v2874
    %3910 = vmatpush1.bf16.msra.mxu0 %v2873
    %3911 = vmatprep.subr.bf16.mxu0 %v2878
    %3912 = vmatpush1.bf16.msra.mxu0 %v2877
    %3913 = vmatprep.subr.bf16.mxu0 %v2882
    %3914 = vmatpush1.bf16.msra.mxu0 %v2881
    %3915 = vmatprep.subr.bf16.mxu0 %v2886
    %3916 = vmatpush1.bf16.msra.mxu0 %v2885
    %3917 = vmatprep.mubr.bf16.mxu0 %v1590
    %3918 = vmatmul.mubr.bf16.gmra.mrb[0].mxu0 %v1589
    %v3919 = vpop.f32.mrb[0].mxu0
    %v3920 = vadd.f32 %v3807, %v3919
    %v3921 = vpop.f32.mrb[0].mxu0
    %v3922 = vadd.f32 %v3809, %v3921
    %v3923 = vpop.f32.mrb[0].mxu0
    %v3924 = vadd.f32 %v3811, %v3923
    %v3925 = vpop.f32.mrb[0].mxu0
    %v3926 = vadd.f32 %v3813, %v3925
    %3927 = vmatprep.mubr.bf16.mxu0 %v1598
    %3928 = vmatmul.mubr.bf16.gmra.mrb[0].mxu0 %v1597
    %v3929 = vpop.f32.mrb[0].mxu0
    %v3930 = vadd.f32 %v3817, %v3929
    %v3931 = vpop.f32.mrb[0].mxu0
    %v3932 = vadd.f32 %v3819, %v3931
    %v3933 = vpop.f32.mrb[0].mxu0
    %v3934 = vadd.f32 %v3821, %v3933
    %v3935 = vpop.f32.mrb[0].mxu0
    %v3936 = vadd.f32 %v3823, %v3935
    %3937 = vmatprep.mubr.bf16.mxu0 %v1606
    %3938 = vmatmul.mubr.bf16.gmra.mrb[0].mxu0 %v1605
    %v3939 = vpop.f32.mrb[0].mxu0
    %v3940 = vadd.f32 %v3827, %v3939
    %v3941 = vpop.f32.mrb[0].mxu0
    %v3942 = vadd.f32 %v3829, %v3941
    %v3943 = vpop.f32.mrb[0].mxu0
    %v3944 = vadd.f32 %v3831, %v3943
    %v3945 = vpop.f32.mrb[0].mxu0
    %v3946 = vadd.f32 %v3833, %v3945
    %3947 = vmatprep.mubr.bf16.mxu0 %v1614
    %3948 = vmatmul.mubr.bf16.gmra.mrb[0].mxu0 %v1613
    %v3949 = vpop.f32.mrb[0].mxu0
    %v3950 = vadd.f32 %v3837, %v3949
    %v3951 = vpop.f32.mrb[0].mxu0
    %v3952 = vadd.f32 %v3839, %v3951
    %v3953 = vpop.f32.mrb[0].mxu0
    %v3954 = vadd.f32 %v3841, %v3953
    %v3955 = vpop.f32.mrb[0].mxu0
    %v3956 = vadd.f32 %v3843, %v3955
    %3957 = vmatprep.mubr.bf16.mxu0 %v1622
    %3958 = vmatmul.mubr.bf16.gmra.mrb[0].mxu0 %v1621
    %v3959 = vpop.f32.mrb[0].mxu0
    %v3960 = vadd.f32 %v3847, %v3959
    %v3961 = vpop.f32.mrb[0].mxu0
    %v3962 = vadd.f32 %v3849, %v3961
    %v3963 = vpop.f32.mrb[0].mxu0
    %v3964 = vadd.f32 %v3851, %v3963
    %v3965 = vpop.f32.mrb[0].mxu0
    %v3966 = vadd.f32 %v3853, %v3965
    %3967 = vmatprep.mubr.bf16.mxu0 %v1630
    %3968 = vmatmul.mubr.bf16.gmra.mrb[0].mxu0 %v1629
    %v3969 = vpop.f32.mrb[0].mxu0
    %v3970 = vadd.f32 %v3857, %v3969
    %v3971 = vpop.f32.mrb[0].mxu0
    %v3972 = vadd.f32 %v3859, %v3971
    %v3973 = vpop.f32.mrb[0].mxu0
    %v3974 = vadd.f32 %v3861, %v3973
    %v3975 = vpop.f32.mrb[0].mxu0
    %v3976 = vadd.f32 %v3863, %v3975
    %3977 = vmatprep.mubr.bf16.mxu0 %v1638
    %3978 = vmatmul.mubr.bf16.gmra.mrb[0].mxu0 %v1637
    %v3979 = vpop.f32.mrb[0].mxu0
    %v3980 = vadd.f32 %v3867, %v3979
    %v3981 = vpop.f32.mrb[0].mxu0
    %v3982 = vadd.f32 %v3869, %v3981
    %v3983 = vpop.f32.mrb[0].mxu0
    %v3984 = vadd.f32 %v3871, %v3983
    %v3985 = vpop.f32.mrb[0].mxu0
    %v3986 = vadd.f32 %v3873, %v3985
    %3987 = vmatprep.mubr.bf16.mxu0 %v1646
    %3988 = vmatmul.mubr.bf16.gmra.mrb[0].mxu0 %v1645
    %v3989 = vpop.f32.mrb[0].mxu0
    %v3990 = vadd.f32 %v3877, %v3989
    %v3991 = vpop.f32.mrb[0].mxu0
    %v3992 = vadd.f32 %v3879, %v3991
    %v3993 = vpop.f32.mrb[0].mxu0
    %v3994 = vadd.f32 %v3881, %v3993
    %v3995 = vpop.f32.mrb[0].mxu0
    %v3996 = vadd.f32 %v3883, %v3995
    %3997 = vdwg.mxu0
    %3998 = vmatprep.subr.bf16.mxu0 %v2890
    %3999 = vmatpush1.bf16.msra.mxu0 %v2889
    %4000 = vmatprep.subr.bf16.mxu0 %v2894
    %4001 = vmatpush1.bf16.msra.mxu0 %v2893
    %4002 = vmatprep.subr.bf16.mxu0 %v2898
    %4003 = vmatpush1.bf16.msra.mxu0 %v2897
    %4004 = vmatprep.subr.bf16.mxu0 %v2902
    %4005 = vmatpush1.bf16.msra.mxu0 %v2901
    %4006 = vmatprep.subr.bf16.mxu0 %v2906
    %4007 = vmatpush1.bf16.msra.mxu0 %v2905
    %4008 = vmatprep.subr.bf16.mxu0 %v2910
    %4009 = vmatpush1.bf16.msra.mxu0 %v2909
    %4010 = vmatprep.subr.bf16.mxu0 %v2914
    %4011 = vmatpush1.bf16.msra.mxu0 %v2913
    %4012 = vmatprep.subr.bf16.mxu0 %v2918
    %4013 = vmatpush1.bf16.msra.mxu0 %v2917
    %4014 = vmatprep.subr.bf16.mxu0 %v2922
    %4015 = vmatpush1.bf16.msra.mxu0 %v2921
    %4016 = vmatprep.subr.bf16.mxu0 %v2926
    %4017 = vmatpush1.bf16.msra.mxu0 %v2925
    %4018 = vmatprep.subr.bf16.mxu0 %v2930
    %4019 = vmatpush1.bf16.msra.mxu0 %v2929
    %4020 = vmatprep.subr.bf16.mxu0 %v2934
    %4021 = vmatpush1.bf16.msra.mxu0 %v2933
    %4022 = vmatprep.subr.bf16.mxu0 %v2938
    %4023 = vmatpush1.bf16.msra.mxu0 %v2937
    %4024 = vmatprep.subr.bf16.mxu0 %v2942
    %4025 = vmatpush1.bf16.msra.mxu0 %v2941
    %4026 = vmatprep.subr.bf16.mxu0 %v2946
    %4027 = vmatpush1.bf16.msra.mxu0 %v2945
    %4028 = vmatprep.subr.bf16.mxu0 %v2950
    %4029 = vmatpush1.bf16.msra.mxu0 %v2949
    %4030 = vmatprep.mubr.bf16.mxu0 %v1592
    %4031 = vmatmul.mubr.bf16.gmra.mrb[0].mxu0 %v1591
    %v4032 = vpop.f32.mrb[0].mxu0
    %v4033 = vadd.f32 %v3920, %v4032
    %v4034 = vpop.f32.mrb[0].mxu0
    %v4035 = vadd.f32 %v3922, %v4034
    %v4036 = vpop.f32.mrb[0].mxu0
    %v4037 = vadd.f32 %v3924, %v4036
    %v4038 = vpop.f32.mrb[0].mxu0
    %v4039 = vadd.f32 %v3926, %v4038
    %4040 = vmatprep.mubr.bf16.mxu0 %v1600
    %4041 = vmatmul.mubr.bf16.gmra.mrb[0].mxu0 %v1599
    %v4042 = vpop.f32.mrb[0].mxu0
    %v4043 = vadd.f32 %v3930, %v4042
    %v4044 = vpop.f32.mrb[0].mxu0
    %v4045 = vadd.f32 %v3932, %v4044
    %v4046 = vpop.f32.mrb[0].mxu0
    %v4047 = vadd.f32 %v3934, %v4046
    %v4048 = vpop.f32.mrb[0].mxu0
    %v4049 = vadd.f32 %v3936, %v4048
    %4050 = vmatprep.mubr.bf16.mxu0 %v1608
    %4051 = vmatmul.mubr.bf16.gmra.mrb[0].mxu0 %v1607
    %v4052 = vpop.f32.mrb[0].mxu0
    %v4053 = vadd.f32 %v3940, %v4052
    %v4054 = vpop.f32.mrb[0].mxu0
    %v4055 = vadd.f32 %v3942, %v4054
    %v4056 = vpop.f32.mrb[0].mxu0
    %v4057 = vadd.f32 %v3944, %v4056
    %v4058 = vpop.f32.mrb[0].mxu0
    %v4059 = vadd.f32 %v3946, %v4058
    %4060 = vmatprep.mubr.bf16.mxu0 %v1616
    %4061 = vmatmul.mubr.bf16.gmra.mrb[0].mxu0 %v1615
    %v4062 = vpop.f32.mrb[0].mxu0
    %v4063 = vadd.f32 %v3950, %v4062
    %v4064 = vpop.f32.mrb[0].mxu0
    %v4065 = vadd.f32 %v3952, %v4064
    %v4066 = vpop.f32.mrb[0].mxu0
    %v4067 = vadd.f32 %v3954, %v4066
    %v4068 = vpop.f32.mrb[0].mxu0
    %v4069 = vadd.f32 %v3956, %v4068
    %4070 = vmatprep.mubr.bf16.mxu0 %v1624
    %4071 = vmatmul.mubr.bf16.gmra.mrb[0].mxu0 %v1623
    %v4072 = vpop.f32.mrb[0].mxu0
    %v4073 = vadd.f32 %v3960, %v4072
    %v4074 = vpop.f32.mrb[0].mxu0
    %v4075 = vadd.f32 %v3962, %v4074
    %v4076 = vpop.f32.mrb[0].mxu0
    %v4077 = vadd.f32 %v3964, %v4076
    %v4078 = vpop.f32.mrb[0].mxu0
    %v4079 = vadd.f32 %v3966, %v4078
    %4080 = vmatprep.mubr.bf16.mxu0 %v1632
    %4081 = vmatmul.mubr.bf16.gmra.mrb[0].mxu0 %v1631
    %v4082 = vpop.f32.mrb[0].mxu0
    %v4083 = vadd.f32 %v3970, %v4082
    %v4084 = vpop.f32.mrb[0].mxu0
    %v4085 = vadd.f32 %v3972, %v4084
    %v4086 = vpop.f32.mrb[0].mxu0
    %v4087 = vadd.f32 %v3974, %v4086
    %v4088 = vpop.f32.mrb[0].mxu0
    %v4089 = vadd.f32 %v3976, %v4088
    %4090 = vmatprep.mubr.bf16.mxu0 %v1640
    %4091 = vmatmul.mubr.bf16.gmra.mrb[0].mxu0 %v1639
    %v4092 = vpop.f32.mrb[0].mxu0
    %v4093 = vadd.f32 %v3980, %v4092
    %v4094 = vpop.f32.mrb[0].mxu0
    %v4095 = vadd.f32 %v3982, %v4094
    %v4096 = vpop.f32.mrb[0].mxu0
    %v4097 = vadd.f32 %v3984, %v4096
    %v4098 = vpop.f32.mrb[0].mxu0
    %v4099 = vadd.f32 %v3986, %v4098
    %4100 = vmatprep.mubr.bf16.mxu0 %v1648
    %4101 = vmatmul.mubr.bf16.gmra.mrb[0].mxu0 %v1647
    %v4102 = vpop.f32.mrb[0].mxu0
    %v4103 = vadd.f32 %v3990, %v4102
    %v4104 = vpop.f32.mrb[0].mxu0
    %v4105 = vadd.f32 %v3992, %v4104
    %v4106 = vpop.f32.mrb[0].mxu0
    %v4107 = vadd.f32 %v3994, %v4106
    %v4108 = vpop.f32.mrb[0].mxu0
    %v4109 = vadd.f32 %v3996, %v4108
    %4110 = vdwg.mxu0
    %v4111 = vmax.f32 %v3581, 0.0
    %v4112 = vmax.f32 %v3583, 0.0
    %v4113 = vmax.f32 %v4033, 0.0
    %v4114 = vmax.f32 %v4035, 0.0
    %v4115 = vmax.f32 %v3585, 0.0
    %v4116 = vmax.f32 %v3587, 0.0
    %v4117 = vmax.f32 %v4037, 0.0
    %v4118 = vmax.f32 %v4039, 0.0
    %v4119 = vmax.f32 %v3591, 0.0
    %v4120 = vmax.f32 %v3593, 0.0
    %v4121 = vmax.f32 %v4043, 0.0
    %v4122 = vmax.f32 %v4045, 0.0
    %v4123 = vmax.f32 %v3595, 0.0
    %v4124 = vmax.f32 %v3597, 0.0
    %v4125 = vmax.f32 %v4047, 0.0
    %v4126 = vmax.f32 %v4049, 0.0
    %v4127 = vmax.f32 %v3601, 0.0
    %v4128 = vmax.f32 %v3603, 0.0
    %v4129 = vmax.f32 %v4053, 0.0
    %v4130 = vmax.f32 %v4055, 0.0
    %v4131 = vmax.f32 %v3605, 0.0
    %v4132 = vmax.f32 %v3607, 0.0
    %v4133 = vmax.f32 %v4057, 0.0
    %v4134 = vmax.f32 %v4059, 0.0
    %v4135 = vmax.f32 %v3611, 0.0
    %v4136 = vmax.f32 %v3613, 0.0
    %v4137 = vmax.f32 %v4063, 0.0
    %v4138 = vmax.f32 %v4065, 0.0
    %v4139 = vmax.f32 %v3615, 0.0
    %v4140 = vmax.f32 %v3617, 0.0
    %v4141 = vmax.f32 %v4067, 0.0
    %v4142 = vmax.f32 %v4069, 0.0
    %v4143 = vmax.f32 %v3621, 0.0
    %v4144 = vmax.f32 %v3623, 0.0
    %v4145 = vmax.f32 %v4073, 0.0
    %v4146 = vmax.f32 %v4075, 0.0
    %v4147 = vmax.f32 %v3625, 0.0
    %v4148 = vmax.f32 %v3627, 0.0
    %v4149 = vmax.f32 %v4077, 0.0
    %v4150 = vmax.f32 %v4079, 0.0
    %v4151 = vmax.f32 %v3631, 0.0
    %v4152 = vmax.f32 %v3633, 0.0
    %v4153 = vmax.f32 %v4083, 0.0
    %v4154 = vmax.f32 %v4085, 0.0
    %v4155 = vmax.f32 %v3635, 0.0
    %v4156 = vmax.f32 %v3637, 0.0
    %v4157 = vmax.f32 %v4087, 0.0
    %v4158 = vmax.f32 %v4089, 0.0
    %v4159 = vmax.f32 %v3641, 0.0
    %v4160 = vmax.f32 %v3643, 0.0
    %v4161 = vmax.f32 %v4093, 0.0
    %v4162 = vmax.f32 %v4095, 0.0
    %v4163 = vmax.f32 %v3645, 0.0
    %v4164 = vmax.f32 %v3647, 0.0
    %v4165 = vmax.f32 %v4097, 0.0
    %v4166 = vmax.f32 %v4099, 0.0
    %v4167 = vmax.f32 %v3651, 0.0
    %v4168 = vmax.f32 %v3653, 0.0
    %v4169 = vmax.f32 %v4103, 0.0
    %v4170 = vmax.f32 %v4105, 0.0
    %v4171 = vmax.f32 %v3655, 0.0
    %v4172 = vmax.f32 %v3657, 0.0
    %v4173 = vmax.f32 %v4107, 0.0
    %v4174 = vmax.f32 %v4109, 0.0
    %v4175 = vld [vmem:[%s3] sm:$0xf]
    %v4177 = vlaneseq
    %v4178 = vshrl.u32 %v4177, 7
    %v4179 = vsub.s32 0, %v4178
    %v4180 = vrot.slane %v4175, %v4179
    %v4181 = vlaneseq
    %v4182 = vshrl.u32 %v4181, 7
    %v4183 = vsub.s32 1, %v4182
    %v4184 = vrot.slane %v4175, %v4183
    %v4185 = vlaneseq
    %v4186 = vshrl.u32 %v4185, 7
    %v4187 = vsub.s32 2, %v4186
    %v4188 = vrot.slane %v4175, %v4187
    %v4189 = vlaneseq
    %v4190 = vshrl.u32 %v4189, 7
    %v4191 = vsub.s32 3, %v4190
    %v4192 = vrot.slane %v4175, %v4191
    %v4197 = vmul.f32 %v4111, %v4180
    %v4198 = vmul.f32 %v4112, %v4184
    %v4199 = vmul.f32 %v4113, %v4188
    %v4200 = vmul.f32 %v4114, %v4192
    %v4201 = vmul.f32 %v4115, %v4180
    %v4202 = vmul.f32 %v4116, %v4184
    %v4203 = vmul.f32 %v4117, %v4188
    %v4204 = vmul.f32 %v4118, %v4192
    %v4205 = vmul.f32 %v4119, %v4180
    %v4206 = vmul.f32 %v4120, %v4184
    %v4207 = vmul.f32 %v4121, %v4188
    %v4208 = vmul.f32 %v4122, %v4192
    %v4209 = vmul.f32 %v4123, %v4180
    %v4210 = vmul.f32 %v4124, %v4184
    %v4211 = vmul.f32 %v4125, %v4188
    %v4212 = vmul.f32 %v4126, %v4192
    %v4213 = vmul.f32 %v4127, %v4180
    %v4214 = vmul.f32 %v4128, %v4184
    %v4215 = vmul.f32 %v4129, %v4188
    %v4216 = vmul.f32 %v4130, %v4192
    %v4217 = vmul.f32 %v4131, %v4180
    %v4218 = vmul.f32 %v4132, %v4184
    %v4219 = vmul.f32 %v4133, %v4188
    %v4220 = vmul.f32 %v4134, %v4192
    %v4221 = vmul.f32 %v4135, %v4180
    %v4222 = vmul.f32 %v4136, %v4184
    %v4223 = vmul.f32 %v4137, %v4188
    %v4224 = vmul.f32 %v4138, %v4192
    %v4225 = vmul.f32 %v4139, %v4180
    %v4226 = vmul.f32 %v4140, %v4184
    %v4227 = vmul.f32 %v4141, %v4188
    %v4228 = vmul.f32 %v4142, %v4192
    %v4229 = vmul.f32 %v4143, %v4180
    %v4230 = vmul.f32 %v4144, %v4184
    %v4231 = vmul.f32 %v4145, %v4188
    %v4232 = vmul.f32 %v4146, %v4192
    %v4233 = vmul.f32 %v4147, %v4180
    %v4234 = vmul.f32 %v4148, %v4184
    %v4235 = vmul.f32 %v4149, %v4188
    %v4236 = vmul.f32 %v4150, %v4192
    %v4237 = vmul.f32 %v4151, %v4180
    %v4238 = vmul.f32 %v4152, %v4184
    %v4239 = vmul.f32 %v4153, %v4188
    %v4240 = vmul.f32 %v4154, %v4192
    %v4241 = vmul.f32 %v4155, %v4180
    %v4242 = vmul.f32 %v4156, %v4184
    %v4243 = vmul.f32 %v4157, %v4188
    %v4244 = vmul.f32 %v4158, %v4192
    %v4245 = vmul.f32 %v4159, %v4180
    %v4246 = vmul.f32 %v4160, %v4184
    %v4247 = vmul.f32 %v4161, %v4188
    %v4248 = vmul.f32 %v4162, %v4192
    %v4249 = vmul.f32 %v4163, %v4180
    %v4250 = vmul.f32 %v4164, %v4184
    %v4251 = vmul.f32 %v4165, %v4188
    %v4252 = vmul.f32 %v4166, %v4192
    %v4253 = vmul.f32 %v4167, %v4180
    %v4254 = vmul.f32 %v4168, %v4184
    %v4255 = vmul.f32 %v4169, %v4188
    %v4256 = vmul.f32 %v4170, %v4192
    %v4257 = vmul.f32 %v4171, %v4180
    %v4258 = vmul.f32 %v4172, %v4184
    %v4259 = vmul.f32 %v4173, %v4188
    %v4260 = vmul.f32 %v4174, %v4192
    %v4261 = vadd.f32 %v4197, %v4198
    %v4262 = vadd.f32 %v4261, %v4199
    %v4263 = vadd.f32 %v4262, %v4200
    %4264 = vadd.xlane.f32.xlu0 %v4263
    %v4265 = vpop.xlane.xlu0 %4264
    %v4266 = vadd.f32 %v4201, %v4202
    %v4267 = vadd.f32 %v4266, %v4203
    %v4268 = vadd.f32 %v4267, %v4204
    %4269 = vadd.xlane.f32.xlu0 %v4268
    %v4270 = vpop.xlane.xlu0 %4269
    %v4271 = vadd.f32 %v4205, %v4206
    %v4272 = vadd.f32 %v4271, %v4207
    %v4273 = vadd.f32 %v4272, %v4208
    %4274 = vadd.xlane.f32.xlu0 %v4273
    %v4275 = vpop.xlane.xlu0 %4274
    %v4276 = vadd.f32 %v4209, %v4210
    %v4277 = vadd.f32 %v4276, %v4211
    %v4278 = vadd.f32 %v4277, %v4212
    %4279 = vadd.xlane.f32.xlu0 %v4278
    %v4280 = vpop.xlane.xlu0 %4279
    %v4281 = vadd.f32 %v4213, %v4214
    %v4282 = vadd.f32 %v4281, %v4215
    %v4283 = vadd.f32 %v4282, %v4216
    %4284 = vadd.xlane.f32.xlu0 %v4283
    %v4285 = vpop.xlane.xlu0 %4284
    %v4286 = vadd.f32 %v4217, %v4218
    %v4287 = vadd.f32 %v4286, %v4219
    %v4288 = vadd.f32 %v4287, %v4220
    %4289 = vadd.xlane.f32.xlu0 %v4288
    %v4290 = vpop.xlane.xlu0 %4289
    %v4291 = vadd.f32 %v4221, %v4222
    %v4292 = vadd.f32 %v4291, %v4223
    %v4293 = vadd.f32 %v4292, %v4224
    %4294 = vadd.xlane.f32.xlu0 %v4293
    %v4295 = vpop.xlane.xlu0 %4294
    %v4296 = vadd.f32 %v4225, %v4226
    %v4297 = vadd.f32 %v4296, %v4227
    %v4298 = vadd.f32 %v4297, %v4228
    %4299 = vadd.xlane.f32.xlu0 %v4298
    %v4300 = vpop.xlane.xlu0 %4299
    %v4301 = vadd.f32 %v4229, %v4230
    %v4302 = vadd.f32 %v4301, %v4231
    %v4303 = vadd.f32 %v4302, %v4232
    %4304 = vadd.xlane.f32.xlu0 %v4303
    %v4305 = vpop.xlane.xlu0 %4304
    %v4306 = vadd.f32 %v4233, %v4234
    %v4307 = vadd.f32 %v4306, %v4235
    %v4308 = vadd.f32 %v4307, %v4236
    %4309 = vadd.xlane.f32.xlu0 %v4308
    %v4310 = vpop.xlane.xlu0 %4309
    %v4311 = vadd.f32 %v4237, %v4238
    %v4312 = vadd.f32 %v4311, %v4239
    %v4313 = vadd.f32 %v4312, %v4240
    %4314 = vadd.xlane.f32.xlu0 %v4313
    %v4315 = vpop.xlane.xlu0 %4314
    %v4316 = vadd.f32 %v4241, %v4242
    %v4317 = vadd.f32 %v4316, %v4243
    %v4318 = vadd.f32 %v4317, %v4244
    %4319 = vadd.xlane.f32.xlu0 %v4318
    %v4320 = vpop.xlane.xlu0 %4319
    %v4321 = vadd.f32 %v4245, %v4246
    %v4322 = vadd.f32 %v4321, %v4247
    %v4323 = vadd.f32 %v4322, %v4248
    %4324 = vadd.xlane.f32.xlu0 %v4323
    %v4325 = vpop.xlane.xlu0 %4324
    %v4326 = vadd.f32 %v4249, %v4250
    %v4327 = vadd.f32 %v4326, %v4251
    %v4328 = vadd.f32 %v4327, %v4252
    %4329 = vadd.xlane.f32.xlu0 %v4328
    %v4330 = vpop.xlane.xlu0 %4329
    %v4331 = vadd.f32 %v4253, %v4254
    %v4332 = vadd.f32 %v4331, %v4255
    %v4333 = vadd.f32 %v4332, %v4256
    %4334 = vadd.xlane.f32.xlu0 %v4333
    %v4335 = vpop.xlane.xlu0 %4334
    %v4336 = vadd.f32 %v4257, %v4258
    %v4337 = vadd.f32 %v4336, %v4259
    %v4338 = vadd.f32 %v4337, %v4260
    %4339 = vadd.xlane.f32.xlu0 %v4338
    %v4340 = vpop.xlane.xlu0 %4339
    %s4341 = sld [smem:[#allocation2]]
    %v4342 = vstv %s4341
    %v4343 = vadd.f32 %v4265, %v4342
    %v4344 = vadd.f32 %v4270, %v4342
    %v4345 = vadd.f32 %v4275, %v4342
    %v4346 = vadd.f32 %v4280, %v4342
    %v4347 = vadd.f32 %v4285, %v4342
    %v4348 = vadd.f32 %v4290, %v4342
    %v4349 = vadd.f32 %v4295, %v4342
    %v4350 = vadd.f32 %v4300, %v4342
    %v4351 = vadd.f32 %v4305, %v4342
    %v4352 = vadd.f32 %v4310, %v4342
    %v4353 = vadd.f32 %v4315, %v4342
    %v4354 = vadd.f32 %v4320, %v4342
    %v4355 = vadd.f32 %v4325, %v4342
    %v4356 = vadd.f32 %v4330, %v4342
    %v4357 = vadd.f32 %v4335, %v4342
    %v4358 = vadd.f32 %v4340, %v4342
    %v4359 = vsub.f32 0.0, %v4343
    %v4360 = vsub.f32 0.0, %v4344
    %v4361 = vsub.f32 0.0, %v4345
    %v4362 = vsub.f32 0.0, %v4346
    %v4363 = vsub.f32 0.0, %v4347
    %v4364 = vsub.f32 0.0, %v4348
    %v4365 = vsub.f32 0.0, %v4349
    %v4366 = vsub.f32 0.0, %v4350
    %v4367 = vsub.f32 0.0, %v4351
    %v4368 = vsub.f32 0.0, %v4352
    %v4369 = vsub.f32 0.0, %v4353
    %v4370 = vsub.f32 0.0, %v4354
    %v4371 = vsub.f32 0.0, %v4355
    %v4372 = vsub.f32 0.0, %v4356
    %v4373 = vsub.f32 0.0, %v4357
    %v4374 = vsub.f32 0.0, %v4358
    %v4375 = vmul.f32 %v4359, 1.442695
    %v4376 = vpow.pop %v4375
    %v4377 = vmul.f32 %v4360, 1.442695
    %v4378 = vpow.pop %v4377
    %v4379 = vmul.f32 %v4361, 1.442695
    %v4380 = vpow.pop %v4379
    %v4381 = vmul.f32 %v4362, 1.442695
    %v4382 = vpow.pop %v4381
    %v4383 = vmul.f32 %v4363, 1.442695
    %v4384 = vpow.pop %v4383
    %v4385 = vmul.f32 %v4364, 1.442695
    %v4386 = vpow.pop %v4385
    %v4387 = vmul.f32 %v4365, 1.442695
    %v4388 = vpow.pop %v4387
    %v4389 = vmul.f32 %v4366, 1.442695
    %v4390 = vpow.pop %v4389
    %v4391 = vmul.f32 %v4367, 1.442695
    %v4392 = vpow.pop %v4391
    %v4393 = vmul.f32 %v4368, 1.442695
    %v4394 = vpow.pop %v4393
    %v4395 = vmul.f32 %v4369, 1.442695
    %v4396 = vpow.pop %v4395
    %v4397 = vmul.f32 %v4370, 1.442695
    %v4398 = vpow.pop %v4397
    %v4399 = vmul.f32 %v4371, 1.442695
    %v4400 = vpow.pop %v4399
    %v4401 = vmul.f32 %v4372, 1.442695
    %v4402 = vpow.pop %v4401
    %v4403 = vmul.f32 %v4373, 1.442695
    %v4404 = vpow.pop %v4403
    %v4405 = vmul.f32 %v4374, 1.442695
    %v4406 = vpow.pop %v4405
    %v4407 = vadd.f32 %v4376, 1.0
    %v4408 = vadd.f32 %v4378, 1.0
    %v4409 = vadd.f32 %v4380, 1.0
    %v4410 = vadd.f32 %v4382, 1.0
    %v4411 = vadd.f32 %v4384, 1.0
    %v4412 = vadd.f32 %v4386, 1.0
    %v4413 = vadd.f32 %v4388, 1.0
    %v4414 = vadd.f32 %v4390, 1.0
    %v4415 = vadd.f32 %v4392, 1.0
    %v4416 = vadd.f32 %v4394, 1.0
    %v4417 = vadd.f32 %v4396, 1.0
    %v4418 = vadd.f32 %v4398, 1.0
    %v4419 = vadd.f32 %v4400, 1.0
    %v4420 = vadd.f32 %v4402, 1.0
    %v4421 = vadd.f32 %v4404, 1.0
    %v4422 = vadd.f32 %v4406, 1.0
    %v4423 = vrcp.pop %v4407
    %v4424 = vmul.f32 1.0, %v4423
    %v4425 = vrcp.pop %v4408
    %v4426 = vmul.f32 1.0, %v4425
    %v4427 = vrcp.pop %v4409
    %v4428 = vmul.f32 1.0, %v4427
    %v4429 = vrcp.pop %v4410
    %v4430 = vmul.f32 1.0, %v4429
    %v4431 = vrcp.pop %v4411
    %v4432 = vmul.f32 1.0, %v4431
    %v4433 = vrcp.pop %v4412
    %v4434 = vmul.f32 1.0, %v4433
    %v4435 = vrcp.pop %v4413
    %v4436 = vmul.f32 1.0, %v4435
    %v4437 = vrcp.pop %v4414
    %v4438 = vmul.f32 1.0, %v4437
    %v4439 = vrcp.pop %v4415
    %v4440 = vmul.f32 1.0, %v4439
    %v4441 = vrcp.pop %v4416
    %v4442 = vmul.f32 1.0, %v4441
    %v4443 = vrcp.pop %v4417
    %v4444 = vmul.f32 1.0, %v4443
    %v4445 = vrcp.pop %v4418
    %v4446 = vmul.f32 1.0, %v4445
    %v4447 = vrcp.pop %v4419
    %v4448 = vmul.f32 1.0, %v4447
    %v4449 = vrcp.pop %v4420
    %v4450 = vmul.f32 1.0, %v4449
    %v4451 = vrcp.pop %v4421
    %v4452 = vmul.f32 1.0, %v4451
    %v4453 = vrcp.pop %v4422
    %v4454 = vmul.f32 1.0, %v4453
    %v4471 = vlaneseq
    %v4472 = vand.u32 %v4471, 127
    %v4473 = vlaneseq
    %v4474 = vshrl.u32 %v4473, 7
    %v4475 = vsub.s32 %v4472, %v4474
    %v4476 = vrot.slane %v4424, %v4475
    %v4477 = vadd.s32 %v4472, 4294967288
    %v4478 = vlaneseq
    %v4479 = vshrl.u32 %v4478, 7
    %v4480 = vsub.s32 %v4477, %v4479
    %v4481 = vrot.slane %v4426, %v4480
    %vm4482 = vcmask 130112
    %v4483 = vsel %vm4482, %v4481, %v4476
    %v4484 = vadd.s32 %v4472, 4294967280
    %v4485 = vlaneseq
    %v4486 = vshrl.u32 %v4485, 7
    %v4487 = vsub.s32 %v4484, %v4486
    %v4488 = vrot.slane %v4428, %v4487
    %vm4489 = vcmask 195712
    %v4490 = vsel %vm4489, %v4488, %v4483
    %v4491 = vadd.s32 %v4472, 4294967272
    %v4492 = vlaneseq
    %v4493 = vshrl.u32 %v4492, 7
    %v4494 = vsub.s32 %v4491, %v4493
    %v4495 = vrot.slane %v4430, %v4494
    %vm4496 = vcmask 261312
    %v4497 = vsel %vm4496, %v4495, %v4490
    %v4498 = vadd.s32 %v4472, 4294967264
    %v4499 = vlaneseq
    %v4500 = vshrl.u32 %v4499, 7
    %v4501 = vsub.s32 %v4498, %v4500
    %v4502 = vrot.slane %v4432, %v4501
    %vm4503 = vcmask 326912
    %v4504 = vsel %vm4503, %v4502, %v4497
    %v4505 = vadd.s32 %v4472, 4294967256
    %v4506 = vlaneseq
    %v4507 = vshrl.u32 %v4506, 7
    %v4508 = vsub.s32 %v4505, %v4507
    %v4509 = vrot.slane %v4434, %v4508
    %vm4510 = vcmask 392512
    %v4511 = vsel %vm4510, %v4509, %v4504
    %v4512 = vadd.s32 %v4472, 4294967248
    %v4513 = vlaneseq
    %v4514 = vshrl.u32 %v4513, 7
    %v4515 = vsub.s32 %v4512, %v4514
    %v4516 = vrot.slane %v4436, %v4515
    %vm4517 = vcmask 458112
    %v4518 = vsel %vm4517, %v4516, %v4511
    %v4519 = vadd.s32 %v4472, 4294967240
    %v4520 = vlaneseq
    %v4521 = vshrl.u32 %v4520, 7
    %v4522 = vsub.s32 %v4519, %v4521
    %v4523 = vrot.slane %v4438, %v4522
    %vm4524 = vcmask 523712
    %v4525 = vsel %vm4524, %v4523, %v4518
    %v4526 = vadd.s32 %v4472, 4294967232
    %v4527 = vlaneseq
    %v4528 = vshrl.u32 %v4527, 7
    %v4529 = vsub.s32 %v4526, %v4528
    %v4530 = vrot.slane %v4440, %v4529
    %vm4531 = vcmask 589312
    %v4532 = vsel %vm4531, %v4530, %v4525
    %v4533 = vadd.s32 %v4472, 4294967224
    %v4534 = vlaneseq
    %v4535 = vshrl.u32 %v4534, 7
    %v4536 = vsub.s32 %v4533, %v4535
    %v4537 = vrot.slane %v4442, %v4536
    %vm4538 = vcmask 654912
    %v4539 = vsel %vm4538, %v4537, %v4532
    %v4540 = vadd.s32 %v4472, 4294967216
    %v4541 = vlaneseq
    %v4542 = vshrl.u32 %v4541, 7
    %v4543 = vsub.s32 %v4540, %v4542
    %v4544 = vrot.slane %v4444, %v4543
    %vm4545 = vcmask 720512
    %v4546 = vsel %vm4545, %v4544, %v4539
    %v4547 = vadd.s32 %v4472, 4294967208
    %v4548 = vlaneseq
    %v4549 = vshrl.u32 %v4548, 7
    %v4550 = vsub.s32 %v4547, %v4549
    %v4551 = vrot.slane %v4446, %v4550
    %vm4552 = vcmask 786112
    %v4553 = vsel %vm4552, %v4551, %v4546
    %v4554 = vadd.s32 %v4472, 4294967200
    %v4555 = vlaneseq
    %v4556 = vshrl.u32 %v4555, 7
    %v4557 = vsub.s32 %v4554, %v4556
    %v4558 = vrot.slane %v4448, %v4557
    %vm4559 = vcmask 851712
    %v4560 = vsel %vm4559, %v4558, %v4553
    %v4561 = vadd.s32 %v4472, 4294967192
    %v4562 = vlaneseq
    %v4563 = vshrl.u32 %v4562, 7
    %v4564 = vsub.s32 %v4561, %v4563
    %v4565 = vrot.slane %v4450, %v4564
    %vm4566 = vcmask 917312
    %v4567 = vsel %vm4566, %v4565, %v4560
    %v4568 = vadd.s32 %v4472, 4294967184
    %v4569 = vlaneseq
    %v4570 = vshrl.u32 %v4569, 7
    %v4571 = vsub.s32 %v4568, %v4570
    %v4572 = vrot.slane %v4452, %v4571
    %vm4573 = vcmask 982912
    %v4574 = vsel %vm4573, %v4572, %v4567
    %v4575 = vadd.s32 %v4472, 4294967176
    %v4576 = vlaneseq
    %v4577 = vshrl.u32 %v4576, 7
    %v4578 = vsub.s32 %v4575, %v4577
    %v4579 = vrot.slane %v4454, %v4578
    %vm4580 = vcmask 1048512
    %v4581 = vsel %vm4580, %v4579, %v4574
    %4583 = vst [vmem:[%s5] sm:$0x1] %v4581
    // Predicated region
    $region30: #{reward_model_forward.1} parent=1 // pred_check
      _
    $region31: #{reward_model_forward.1} parent=1 // pred_check_branch
      %4585 = sbr.rel (0) target = $region33
    $region32: #{reward_model_forward.1} parent=1 // pred_region
      _
    $region33: #{reward_model_forward.1} parent=1 // pred_fallthru
      _
    // Predicated region
    $region34: #{reward_model_forward.1} parent=1 // pred_check
      _
    $region35: #{reward_model_forward.1} parent=1 // pred_check_branch
      %4587 = sbr.rel (0) target = $region37
    $region36: #{reward_model_forward.1} parent=1 // pred_region
      _
    $region37: #{reward_model_forward.1} parent=1 // pred_fallthru
      _
    %4588 = vsyncpa [#allocation4], 1
    %4589 = vsyncpa [#allocation6], 1

</llo_original>
